<compile_context>
chip_gen: v5e
topology: v5e:2x2
jax: 0.10.0
libtpu: 0.0.40
codegen_flags: <defaults>
</compile_context>

<pallas_src>
import functools
import math

import jax
import jax.numpy as jnp
from jax.experimental import pallas as pl
from jax.experimental.pallas import tpu as pltpu

VMEM = pltpu.MemorySpace.VMEM


# --------------------------------------------------------------------------------------
# In-kernel helpers (traced inside the fused kernel)
# --------------------------------------------------------------------------------------
def _leaky_relu(x):
    return jnp.where(x >= 0, x, 0.01 * x)


def _elu(x):
    return jnp.where(x > 0, x, jnp.exp(x) - 1.0)


def _masked_row_softmax(logits, mask):
    """Softmax over axis=1 (incoming-edge / src axis), restricted to mask > 0."""
    z = jnp.where(mask > 0, logits, jnp.full_like(logits, -1e30))
    m = jnp.max(z, axis=1, keepdims=True)
    e = jnp.where(mask > 0, jnp.exp(z - m), 0.0)
    denom = jnp.maximum(jnp.sum(e, axis=1, keepdims=True), 1e-12)
    return e * pl.reciprocal(denom, approx=True)


def _gru(x, h, wih, whh, bih, bhh, hdim):
    """PyTorch nn.GRUCell semantics; wih/whh are gate-fused (in, 3H), gate order [r|z|n]."""
    xg = jnp.dot(x, wih, preferred_element_type=jnp.float32) + bih
    hg = jnp.dot(h, whh, preferred_element_type=jnp.float32) + bhh
    r = jax.nn.sigmoid(xg[:, :hdim] + hg[:, :hdim])
    z = jax.nn.sigmoid(xg[:, hdim:2 * hdim] + hg[:, hdim:2 * hdim])
    n = jnp.tanh(xg[:, 2 * hdim:] + r * hg[:, 2 * hdim:])
    return (1.0 - z) * n + z * h


# --------------------------------------------------------------------------------------
# The single fused kernel: whole SingleHeadJunctionLayer forward, VMEM resident
# --------------------------------------------------------------------------------------
def _fused_junction_kernel(*refs, n, hdim, num_gnn_layers, num_timesteps):
    it = iter(refs)
    nxt = lambda: next(it)[...]  # noqa: E731  (load full VMEM block)

    # ----- inputs ---------------------------------------------------------
    adj = nxt()                      # (N, N)  dst x src, {0,1}
    x_in = nxt()                     # (N, 2H)
    edge = nxt()                     # (N, N, He)

    # ----- weights (order must match the wrapper) -------------------------
    pm_w, pm_b = nxt(), nxt()

    gc_pn_w, gc_pn_b = nxt(), nxt()
    gc_pe1_src_w, gc_pe1_edge_w, gc_pe1_b = nxt(), nxt(), nxt()
    gc_pe2_dst_w, gc_pe2_he_w, gc_pe2_b = nxt(), nxt(), nxt()      # (1,H), (1,H), (1,1)
    gc_et_w, gc_et_b = nxt(), nxt()
    gc_wih, gc_whh, gc_bih, gc_bhh = nxt(), nxt(), nxt(), nxt()

    gnn = []
    for _ in range(num_gnn_layers):
        gnn.append(dict(
            pe_dst_w=nxt(), pe_src_w=nxt(), pe_b=nxt(),
            pn_w=nxt(), pn_b=nxt(),
            wih=nxt(), whh=nxt(), bih=nxt(), bhh=nxt(),
        ))

    mol_cl_g_w, mol_cl_node_w, mol_cl_b = nxt(), nxt(), nxt()      # (1,H), (1,H), (1,1)
    mol_pn_w, mol_pn_b = nxt(), nxt()
    mol_wih, mol_whh, mol_bih, mol_bhh = nxt(), nxt(), nxt(), nxt()

    out_graph_ref = next(it)         # (1, H)
    out_attn_ref = next(it)          # (N, 1)

    he_dim = edge.shape[-1]

    # ----- 1) project_motif : Linear(2H -> H) ------------------------------
    h0 = jnp.dot(x_in, pm_w, preferred_element_type=jnp.float32) + pm_b                     # (N, H)

    # ----- 2) Atom_AttentiveFP, layer 0 (GetContext, uses edge features) ---
    hv_new = _leaky_relu(jnp.dot(h0, gc_pn_w, preferred_element_type=jnp.float32) + gc_pn_b)

    # he1[i,j] = leaky_relu(h0[j] @ W_src + edge[i,j] @ W_edge + b)   (concat -> weight split)
    src_part = jnp.dot(h0, gc_pe1_src_w, preferred_element_type=jnp.float32) + gc_pe1_b     # (N, H)
    edge_part = jnp.dot(edge.reshape(n * n, he_dim), gc_pe1_edge_w,
                        preferred_element_type=jnp.float32).reshape(n, n, hdim)
    he1 = _leaky_relu(edge_part + src_part[None, :, :])                                     # (N, N, H)

    # logits1[i,j] = leaky_relu(hv_new[i]·w_dst + he1[i,j]·w_he + b)
    dst_col = jnp.sum(hv_new * gc_pe2_dst_w, axis=-1, keepdims=True) + gc_pe2_b             # (N, 1)
    he_dot = jnp.sum(he1 * gc_pe2_he_w, axis=-1)                                            # (N, N)
    logits1 = _leaky_relu(dst_col + he_dot)

    a1 = _masked_row_softmax(logits1, adj)                                                  # (N, N)
    ev = (jnp.dot(he1.reshape(n * n, hdim), gc_et_w, preferred_element_type=jnp.float32)
          + gc_et_b).reshape(n, n, hdim)                                                    # (N, N, H)
    ctx1 = _elu(jnp.sum(a1[:, :, None] * ev, axis=1))                                       # (N, H)
    node = jnp.maximum(_gru(ctx1, hv_new, gc_wih, gc_whh, gc_bih, gc_bhh, hdim), 0.0)

    # ----- 2b) Atom_AttentiveFP, layers 1..L-1 (no edge features) ----------
    for lp in gnn:
        d_col = jnp.sum(node * lp["pe_dst_w"], axis=-1, keepdims=True) + lp["pe_b"]         # (N, 1)
        s_row = jnp.sum(node[None, :, :] * lp["pe_src_w"], axis=-1)                         # (1, N)
        logits = _leaky_relu(d_col + s_row)                                                 # (N, N)
        a = _masked_row_softmax(logits, adj)
        hv = jnp.dot(node, lp["pn_w"], preferred_element_type=jnp.float32) + lp["pn_b"]     # (N, H)
        ctx = _elu(jnp.dot(a, hv, preferred_element_type=jnp.float32))                      # (N, H)
        node = jnp.maximum(
            _gru(ctx, node, lp["wih"], lp["whh"], lp["bih"], lp["bhh"], hdim), 0.0)

    # ----- 3) Mol_AttentiveFP readout (super node over the motif graph) ----
    g = jnp.sum(node, axis=0, keepdims=True)                                                # (1, H)
    attn = jnp.zeros((n, 1), jnp.float32)
    for _ in range(num_timesteps):
        g_scalar = (jnp.sum(jnp.maximum(g, 0.0) * mol_cl_g_w, axis=-1, keepdims=True)
                    + mol_cl_b)                                                             # (1, 1)
        node_col = jnp.sum(node * mol_cl_node_w, axis=-1, keepdims=True)                    # (N, 1)
        zlog = _leaky_relu(node_col + g_scalar)                                             # (N, 1)
        m = jnp.max(zlog, axis=0, keepdims=True)
        e = jnp.exp(zlog - m)
        attn = e * pl.reciprocal(jnp.sum(e, axis=0, keepdims=True), approx=True)            # (N, 1)
        hv = jnp.dot(node, mol_pn_w, preferred_element_type=jnp.float32) + mol_pn_b         # (N, H)
        ctx = _elu(jnp.sum(attn * hv, axis=0, keepdims=True))                               # (1, H)
        g = jnp.maximum(_gru(ctx, g, mol_wih, mol_whh, mol_bih, mol_bhh, hdim), 0.0)

    out_graph_ref[...] = g
    out_attn_ref[...] = attn


# --------------------------------------------------------------------------------------
# Wrapper: flatten params, one pallas_call, full-array VMEM blocks
# --------------------------------------------------------------------------------------
def single_head_junction_forward(params, adj_mask, motif_node, motif_edge):
    n = motif_node.shape[0]
    hdim = params["hidden_dim"]

    gc = params["get_context"]
    mp = params["mol"]

    args = [adj_mask, motif_node, motif_edge, params["pm_w"], params["pm_b"],
            gc["pn_w"], gc["pn_b"],
            gc["pe1_src_w"], gc["pe1_edge_w"], gc["pe1_b"],
            gc["pe2_dst_w"], gc["pe2_he_w"], gc["pe2_b"],
            gc["et_w"], gc["et_b"],
            gc["gru"]["wih"], gc["gru"]["whh"], gc["gru"]["bih"], gc["gru"]["bhh"]]
    for lp in params["gnn_layers"]:
        args += [lp["pe_dst_w"], lp["pe_src_w"], lp["pe_b"], lp["pn_w"], lp["pn_b"],
                 lp["gru"]["wih"], lp["gru"]["whh"], lp["gru"]["bih"], lp["gru"]["bhh"]]
    args += [mp["cl_g_w"], mp["cl_node_w"], mp["cl_b"], mp["pn_w"], mp["pn_b"],
             mp["gru"]["wih"], mp["gru"]["whh"], mp["gru"]["bih"], mp["gru"]["bhh"]]

    kernel = functools.partial(
        _fused_junction_kernel,
        n=n, hdim=hdim,
        num_gnn_layers=len(params["gnn_layers"]),
        num_timesteps=params["num_timesteps"],
    )

    return pl.pallas_call(
        kernel,
        out_shape=(jax.ShapeDtypeStruct((1, hdim), jnp.float32),
                   jax.ShapeDtypeStruct((n, 1), jnp.float32)),
        in_specs=[pl.BlockSpec(memory_space=VMEM) for _ in args],
        out_specs=(pl.BlockSpec(memory_space=VMEM),
                   pl.BlockSpec(memory_space=VMEM)),
    )(*args)


# --------------------------------------------------------------------------------------
# Deterministic parameter init (PyTorch default uniform bounds), kernel-friendly layouts
# --------------------------------------------------------------------------------------
def _init_linear(key, fan_in, fan_out):
    kw, kb = jax.random.split(key)
    bound = 1.0 / math.sqrt(fan_in)
    w = jax.random.uniform(kw, (fan_in, fan_out), jnp.float32, -bound, bound)
    b = jax.random.uniform(kb, (1, fan_out), jnp.float32, -bound, bound)
    return w, b


def _init_rowvec_pair(key, hdim_a, hdim_b):
    """Linear(concat(a, b) -> 1) split into two (1, H) row-vector weights + (1,1) bias."""
    bound = 1.0 / math.sqrt(hdim_a + hdim_b)
    k1, k2, k3 = jax.random.split(key, 3)
    wa = jax.random.uniform(k1, (1, hdim_a), jnp.float32, -bound, bound)
    wb = jax.random.uniform(k2, (1, hdim_b), jnp.float32, -bound, bound)
    b = jax.random.uniform(k3, (1, 1), jnp.float32, -bound, bound)
    return wa, wb, b


def _init_split_linear(key, fan_ins, fan_out):
    """Linear(concat(blocks) -> fan_out) split per input block (algebraic concat split)."""
    bound = 1.0 / math.sqrt(sum(fan_ins))
    ks = jax.random.split(key, len(fan_ins) + 1)
    ws = tuple(jax.random.uniform(ks[i], (f, fan_out), jnp.float32, -bound, bound)
               for i, f in enumerate(fan_ins))
    b = jax.random.uniform(ks[-1], (1, fan_out), jnp.float32, -bound, bound)
    return ws, b


def _init_gru(key, hdim):
    """Gate-fused GRUCell weights: (in, 3H) with gate order [r | z | n]."""
    ks = jax.random.split(key, 4)
    bound = 1.0 / math.sqrt(hdim)
    return {
        "wih": jax.random.uniform(ks[0], (hdim, 3 * hdim), jnp.float32, -bound, bound),
        "whh": jax.random.uniform(ks[1], (hdim, 3 * hdim), jnp.float32, -bound, bound),
        "bih": jax.random.uniform(ks[2], (1, 3 * hdim), jnp.float32, -bound, bound),
        "bhh": jax.random.uniform(ks[3], (1, 3 * hdim), jnp.float32, -bound, bound),
    }


def init_params(key, hidden_dim, edge_dim, num_atom_layers=2, num_timesteps=2):
    keys = jax.random.split(key, 10)
    pm_w, pm_b = _init_linear(keys[0], 2 * hidden_dim, hidden_dim)

    gc = {}
    gc["pn_w"], gc["pn_b"] = _init_linear(keys[1], hidden_dim, hidden_dim)
    (gc["pe1_src_w"], gc["pe1_edge_w"]), gc["pe1_b"] = _init_split_linear(
        keys[2], (hidden_dim, edge_dim), hidden_dim)
    gc["pe2_dst_w"], gc["pe2_he_w"], gc["pe2_b"] = _init_rowvec_pair(
        keys[3], hidden_dim, hidden_dim)
    gc["et_w"], gc["et_b"] = _init_linear(keys[4], hidden_dim, hidden_dim)
    gc["gru"] = _init_gru(keys[5], hidden_dim)

    gnn_layers = []
    kk = jax.random.split(keys[6], max(num_atom_layers - 1, 1) * 3)
    for i in range(num_atom_layers - 1):
        lp = {}
        lp["pe_dst_w"], lp["pe_src_w"], lp["pe_b"] = _init_rowvec_pair(
            kk[3 * i + 0], hidden_dim, hidden_dim)
        lp["pn_w"], lp["pn_b"] = _init_linear(kk[3 * i + 1], hidden_dim, hidden_dim)
        lp["gru"] = _init_gru(kk[3 * i + 2], hidden_dim)
        gnn_layers.append(lp)

    mol = {}
    mol["cl_g_w"], mol["cl_node_w"], mol["cl_b"] = _init_rowvec_pair(
        keys[7], hidden_dim, hidden_dim)
    mol["pn_w"], mol["pn_b"] = _init_linear(keys[8], hidden_dim, hidden_dim)
    mol["gru"] = _init_gru(keys[9], hidden_dim)

    return {
        "hidden_dim": hidden_dim,
        "num_timesteps": num_timesteps,
        "pm_w": pm_w, "pm_b": pm_b,
        "get_context": gc,
        "gnn_layers": gnn_layers,
        "mol": mol,
    }


if __name__ == "__main__":
    key = jax.random.PRNGKey(0)
    N, H, HE = 16, 32, 32                      # motif nodes, hidden_dim, edge feature dim

    k_node, k_edge, k_params = jax.random.split(key, 3)
    motif_node = jax.random.normal(k_node, (N, 2 * H), jnp.float32)   # project_motif input is 2*H

    # bidirectional ring motif graph: every node has exactly 2 incoming edges
    idx = jnp.arange(N)
    adj = jnp.zeros((N, N), jnp.float32)
    adj = adj.at[(idx + 1) % N, idx].set(1.0)
    adj = adj.at[(idx - 1) % N, idx].set(1.0)

    motif_edge = jax.random.normal(k_edge, (N, N, HE), jnp.float32) * adj[:, :, None]

    params = init_params(k_params, H, HE, num_atom_layers=2, num_timesteps=2)

    fwd = jax.jit(lambda a, x, e: single_head_junction_forward(params, a, x, e))
    super_graph, super_attn = fwd(adj, motif_node, motif_edge)
    jax.block_until_ready((super_graph, super_attn))

    assert super_graph.shape == (1, H)
    assert super_attn.shape == (N, 1)
    assert bool(jnp.all(jnp.isfinite(super_graph)))
    assert bool(jnp.all(jnp.isfinite(super_attn)))
    # readout attention of the last timestep must sum to 1 over the graph's nodes
    assert abs(float(jnp.sum(super_attn)) - 1.0) < 1e-3
    print("KERNEL_OK")
</pallas_src>

<mosaic_0001>
module attributes {stable_mosaic.version = 11 : i64} {
  func.func @_fused_junction_kernel(%arg0: memref<16x16xf32, #tpu.memory_space<vmem>>, %arg1: memref<16x64xf32, #tpu.memory_space<vmem>>, %arg2: memref<16x16x32xf32, #tpu.memory_space<vmem>>, %arg3: memref<64x32xf32, #tpu.memory_space<vmem>>, %arg4: memref<1x32xf32, #tpu.memory_space<vmem>>, %arg5: memref<32x32xf32, #tpu.memory_space<vmem>>, %arg6: memref<1x32xf32, #tpu.memory_space<vmem>>, %arg7: memref<32x32xf32, #tpu.memory_space<vmem>>, %arg8: memref<32x32xf32, #tpu.memory_space<vmem>>, %arg9: memref<1x32xf32, #tpu.memory_space<vmem>>, %arg10: memref<1x32xf32, #tpu.memory_space<vmem>>, %arg11: memref<1x32xf32, #tpu.memory_space<vmem>>, %arg12: memref<1x1xf32, #tpu.memory_space<vmem>>, %arg13: memref<32x32xf32, #tpu.memory_space<vmem>>, %arg14: memref<1x32xf32, #tpu.memory_space<vmem>>, %arg15: memref<32x96xf32, #tpu.memory_space<vmem>>, %arg16: memref<32x96xf32, #tpu.memory_space<vmem>>, %arg17: memref<1x96xf32, #tpu.memory_space<vmem>>, %arg18: memref<1x96xf32, #tpu.memory_space<vmem>>, %arg19: memref<1x32xf32, #tpu.memory_space<vmem>>, %arg20: memref<1x32xf32, #tpu.memory_space<vmem>>, %arg21: memref<1x1xf32, #tpu.memory_space<vmem>>, %arg22: memref<32x32xf32, #tpu.memory_space<vmem>>, %arg23: memref<1x32xf32, #tpu.memory_space<vmem>>, %arg24: memref<32x96xf32, #tpu.memory_space<vmem>>, %arg25: memref<32x96xf32, #tpu.memory_space<vmem>>, %arg26: memref<1x96xf32, #tpu.memory_space<vmem>>, %arg27: memref<1x96xf32, #tpu.memory_space<vmem>>, %arg28: memref<1x32xf32, #tpu.memory_space<vmem>>, %arg29: memref<1x32xf32, #tpu.memory_space<vmem>>, %arg30: memref<1x1xf32, #tpu.memory_space<vmem>>, %arg31: memref<32x32xf32, #tpu.memory_space<vmem>>, %arg32: memref<1x32xf32, #tpu.memory_space<vmem>>, %arg33: memref<32x96xf32, #tpu.memory_space<vmem>>, %arg34: memref<32x96xf32, #tpu.memory_space<vmem>>, %arg35: memref<1x96xf32, #tpu.memory_space<vmem>>, %arg36: memref<1x96xf32, #tpu.memory_space<vmem>>, %arg37: memref<1x32xf32, #tpu.memory_space<vmem>>, %arg38: memref<16x1xf32, #tpu.memory_space<vmem>>) attributes {dimension_semantics = [], scalar_prefetch = 0 : i64, scratch_operands = 0 : i64, tpu.core_type = #tpu.core_type<tc>} {
    %c0 = arith.constant 0 : index
    %c0_0 = arith.constant 0 : index
    %0 = vector.load %arg0[%c0, %c0_0] : memref<16x16xf32, #tpu.memory_space<vmem>>, vector<16x16xf32>
    %c0_1 = arith.constant 0 : index
    %c0_2 = arith.constant 0 : index
    %1 = vector.load %arg1[%c0_1, %c0_2] : memref<16x64xf32, #tpu.memory_space<vmem>>, vector<16x64xf32>
    %c0_3 = arith.constant 0 : index
    %c0_4 = arith.constant 0 : index
    %c0_5 = arith.constant 0 : index
    %2 = vector.load %arg2[%c0_3, %c0_4, %c0_5] : memref<16x16x32xf32, #tpu.memory_space<vmem>>, vector<16x16x32xf32>
    %c0_6 = arith.constant 0 : index
    %c0_7 = arith.constant 0 : index
    %3 = vector.load %arg3[%c0_6, %c0_7] : memref<64x32xf32, #tpu.memory_space<vmem>>, vector<64x32xf32>
    %c0_8 = arith.constant 0 : index
    %c0_9 = arith.constant 0 : index
    %4 = vector.load %arg4[%c0_8, %c0_9] : memref<1x32xf32, #tpu.memory_space<vmem>>, vector<1x32xf32>
    %c0_10 = arith.constant 0 : index
    %c0_11 = arith.constant 0 : index
    %5 = vector.load %arg5[%c0_10, %c0_11] : memref<32x32xf32, #tpu.memory_space<vmem>>, vector<32x32xf32>
    %c0_12 = arith.constant 0 : index
    %c0_13 = arith.constant 0 : index
    %6 = vector.load %arg6[%c0_12, %c0_13] : memref<1x32xf32, #tpu.memory_space<vmem>>, vector<1x32xf32>
    %c0_14 = arith.constant 0 : index
    %c0_15 = arith.constant 0 : index
    %7 = vector.load %arg7[%c0_14, %c0_15] : memref<32x32xf32, #tpu.memory_space<vmem>>, vector<32x32xf32>
    %c0_16 = arith.constant 0 : index
    %c0_17 = arith.constant 0 : index
    %8 = vector.load %arg8[%c0_16, %c0_17] : memref<32x32xf32, #tpu.memory_space<vmem>>, vector<32x32xf32>
    %c0_18 = arith.constant 0 : index
    %c0_19 = arith.constant 0 : index
    %9 = vector.load %arg9[%c0_18, %c0_19] : memref<1x32xf32, #tpu.memory_space<vmem>>, vector<1x32xf32>
    %c0_20 = arith.constant 0 : index
    %c0_21 = arith.constant 0 : index
    %10 = vector.load %arg10[%c0_20, %c0_21] : memref<1x32xf32, #tpu.memory_space<vmem>>, vector<1x32xf32>
    %c0_22 = arith.constant 0 : index
    %c0_23 = arith.constant 0 : index
    %11 = vector.load %arg11[%c0_22, %c0_23] : memref<1x32xf32, #tpu.memory_space<vmem>>, vector<1x32xf32>
    %c0_24 = arith.constant 0 : index
    %c0_25 = arith.constant 0 : index
    %12 = vector.load %arg12[%c0_24, %c0_25] : memref<1x1xf32, #tpu.memory_space<vmem>>, vector<1x1xf32>
    %c0_26 = arith.constant 0 : index
    %c0_27 = arith.constant 0 : index
    %13 = vector.load %arg13[%c0_26, %c0_27] : memref<32x32xf32, #tpu.memory_space<vmem>>, vector<32x32xf32>
    %c0_28 = arith.constant 0 : index
    %c0_29 = arith.constant 0 : index
    %14 = vector.load %arg14[%c0_28, %c0_29] : memref<1x32xf32, #tpu.memory_space<vmem>>, vector<1x32xf32>
    %c0_30 = arith.constant 0 : index
    %c0_31 = arith.constant 0 : index
    %15 = vector.load %arg15[%c0_30, %c0_31] : memref<32x96xf32, #tpu.memory_space<vmem>>, vector<32x96xf32>
    %c0_32 = arith.constant 0 : index
    %c0_33 = arith.constant 0 : index
    %16 = vector.load %arg16[%c0_32, %c0_33] : memref<32x96xf32, #tpu.memory_space<vmem>>, vector<32x96xf32>
    %c0_34 = arith.constant 0 : index
    %c0_35 = arith.constant 0 : index
    %17 = vector.load %arg17[%c0_34, %c0_35] : memref<1x96xf32, #tpu.memory_space<vmem>>, vector<1x96xf32>
    %c0_36 = arith.constant 0 : index
    %c0_37 = arith.constant 0 : index
    %18 = vector.load %arg18[%c0_36, %c0_37] : memref<1x96xf32, #tpu.memory_space<vmem>>, vector<1x96xf32>
    %c0_38 = arith.constant 0 : index
    %c0_39 = arith.constant 0 : index
    %19 = vector.load %arg19[%c0_38, %c0_39] : memref<1x32xf32, #tpu.memory_space<vmem>>, vector<1x32xf32>
    %c0_40 = arith.constant 0 : index
    %c0_41 = arith.constant 0 : index
    %20 = vector.load %arg20[%c0_40, %c0_41] : memref<1x32xf32, #tpu.memory_space<vmem>>, vector<1x32xf32>
    %c0_42 = arith.constant 0 : index
    %c0_43 = arith.constant 0 : index
    %21 = vector.load %arg21[%c0_42, %c0_43] : memref<1x1xf32, #tpu.memory_space<vmem>>, vector<1x1xf32>
    %c0_44 = arith.constant 0 : index
    %c0_45 = arith.constant 0 : index
    %22 = vector.load %arg22[%c0_44, %c0_45] : memref<32x32xf32, #tpu.memory_space<vmem>>, vector<32x32xf32>
    %c0_46 = arith.constant 0 : index
    %c0_47 = arith.constant 0 : index
    %23 = vector.load %arg23[%c0_46, %c0_47] : memref<1x32xf32, #tpu.memory_space<vmem>>, vector<1x32xf32>
    %c0_48 = arith.constant 0 : index
    %c0_49 = arith.constant 0 : index
    %24 = vector.load %arg24[%c0_48, %c0_49] : memref<32x96xf32, #tpu.memory_space<vmem>>, vector<32x96xf32>
    %c0_50 = arith.constant 0 : index
    %c0_51 = arith.constant 0 : index
    %25 = vector.load %arg25[%c0_50, %c0_51] : memref<32x96xf32, #tpu.memory_space<vmem>>, vector<32x96xf32>
    %c0_52 = arith.constant 0 : index
    %c0_53 = arith.constant 0 : index
    %26 = vector.load %arg26[%c0_52, %c0_53] : memref<1x96xf32, #tpu.memory_space<vmem>>, vector<1x96xf32>
    %c0_54 = arith.constant 0 : index
    %c0_55 = arith.constant 0 : index
    %27 = vector.load %arg27[%c0_54, %c0_55] : memref<1x96xf32, #tpu.memory_space<vmem>>, vector<1x96xf32>
    %c0_56 = arith.constant 0 : index
    %c0_57 = arith.constant 0 : index
    %28 = vector.load %arg28[%c0_56, %c0_57] : memref<1x32xf32, #tpu.memory_space<vmem>>, vector<1x32xf32>
    %c0_58 = arith.constant 0 : index
    %c0_59 = arith.constant 0 : index
    %29 = vector.load %arg29[%c0_58, %c0_59] : memref<1x32xf32, #tpu.memory_space<vmem>>, vector<1x32xf32>
    %c0_60 = arith.constant 0 : index
    %c0_61 = arith.constant 0 : index
    %30 = vector.load %arg30[%c0_60, %c0_61] : memref<1x1xf32, #tpu.memory_space<vmem>>, vector<1x1xf32>
    %c0_62 = arith.constant 0 : index
    %c0_63 = arith.constant 0 : index
    %31 = vector.load %arg31[%c0_62, %c0_63] : memref<32x32xf32, #tpu.memory_space<vmem>>, vector<32x32xf32>
    %c0_64 = arith.constant 0 : index
    %c0_65 = arith.constant 0 : index
    %32 = vector.load %arg32[%c0_64, %c0_65] : memref<1x32xf32, #tpu.memory_space<vmem>>, vector<1x32xf32>
    %c0_66 = arith.constant 0 : index
    %c0_67 = arith.constant 0 : index
    %33 = vector.load %arg33[%c0_66, %c0_67] : memref<32x96xf32, #tpu.memory_space<vmem>>, vector<32x96xf32>
    %c0_68 = arith.constant 0 : index
    %c0_69 = arith.constant 0 : index
    %34 = vector.load %arg34[%c0_68, %c0_69] : memref<32x96xf32, #tpu.memory_space<vmem>>, vector<32x96xf32>
    %c0_70 = arith.constant 0 : index
    %c0_71 = arith.constant 0 : index
    %35 = vector.load %arg35[%c0_70, %c0_71] : memref<1x96xf32, #tpu.memory_space<vmem>>, vector<1x96xf32>
    %c0_72 = arith.constant 0 : index
    %c0_73 = arith.constant 0 : index
    %36 = vector.load %arg36[%c0_72, %c0_73] : memref<1x96xf32, #tpu.memory_space<vmem>>, vector<1x96xf32>
    %cst = arith.constant dense<0.000000e+00> : vector<16x32xf32>
    %37 = tpu.matmul %1, %3, %cst {dimension_numbers = #tpu.dot_dimension_numbers<[1], [0], [0], [1], [0, 0, 1, 1], [], []>} : vector<16x64xf32>, vector<64x32xf32>, vector<16x32xf32> -> vector<16x32xf32>
    %38 = vector.broadcast %4 : vector<1x32xf32> to vector<16x32xf32>
    %39 = arith.addf %37, %38 : vector<16x32xf32>
    %cst_74 = arith.constant dense<0.000000e+00> : vector<16x32xf32>
    %40 = tpu.matmul %39, %5, %cst_74 {dimension_numbers = #tpu.dot_dimension_numbers<[1], [0], [0], [1], [0, 0, 1, 1], [], []>} : vector<16x32xf32>, vector<32x32xf32>, vector<16x32xf32> -> vector<16x32xf32>
    %41 = vector.broadcast %6 : vector<1x32xf32> to vector<16x32xf32>
    %42 = arith.addf %40, %41 : vector<16x32xf32>
    %cst_75 = arith.constant 0.000000e+00 : f32
    %43 = vector.broadcast %cst_75 : f32 to vector<16x32xf32>
    %44 = arith.cmpf oge, %42, %43 : vector<16x32xf32>
    %cst_76 = arith.constant 0.00999999977 : f32
    %45 = vector.broadcast %cst_76 : f32 to vector<16x32xf32>
    %46 = arith.mulf %45, %42 : vector<16x32xf32>
    %47 = arith.select %44, %42, %46 : vector<16x32xi1>, vector<16x32xf32>
    %cst_77 = arith.constant dense<0.000000e+00> : vector<16x32xf32>
    %48 = tpu.matmul %39, %7, %cst_77 {dimension_numbers = #tpu.dot_dimension_numbers<[1], [0], [0], [1], [0, 0, 1, 1], [], []>} : vector<16x32xf32>, vector<32x32xf32>, vector<16x32xf32> -> vector<16x32xf32>
    %49 = vector.broadcast %9 : vector<1x32xf32> to vector<16x32xf32>
    %50 = arith.addf %48, %49 : vector<16x32xf32>
    %51 = vector.shape_cast %2 : vector<16x16x32xf32> to vector<256x32xf32>
    %cst_78 = arith.constant dense<0.000000e+00> : vector<256x32xf32>
    %52 = tpu.matmul %51, %8, %cst_78 {dimension_numbers = #tpu.dot_dimension_numbers<[1], [0], [0], [1], [0, 0, 1, 1], [], []>} : vector<256x32xf32>, vector<32x32xf32>, vector<256x32xf32> -> vector<256x32xf32>
    %53 = vector.shape_cast %52 : vector<256x32xf32> to vector<16x16x32xf32>
    %54 = vector.shape_cast %50 : vector<16x32xf32> to vector<1x16x32xf32>
    %55 = vector.broadcast %54 : vector<1x16x32xf32> to vector<16x16x32xf32>
    %56 = arith.addf %53, %55 : vector<16x16x32xf32>
    %cst_79 = arith.constant 0.000000e+00 : f32
    %57 = vector.broadcast %cst_79 : f32 to vector<16x16x32xf32>
    %58 = arith.cmpf oge, %56, %57 : vector<16x16x32xf32>
    %cst_80 = arith.constant 0.00999999977 : f32
    %59 = vector.broadcast %cst_80 : f32 to vector<16x16x32xf32>
    %60 = arith.mulf %59, %56 : vector<16x16x32xf32>
    %61 = arith.select %58, %56, %60 : vector<16x16x32xi1>, vector<16x16x32xf32>
    %62 = vector.broadcast %10 : vector<1x32xf32> to vector<16x32xf32>
    %63 = arith.mulf %47, %62 : vector<16x32xf32>
    %cst_81 = arith.constant dense<0.000000e+00> : vector<16xf32>
    %64 = vector.multi_reduction <add>, %63, %cst_81 [1] : vector<16x32xf32> to vector<16xf32>
    %65 = vector.shape_cast %64 : vector<16xf32> to vector<16x1xf32>
    %66 = vector.broadcast %12 : vector<1x1xf32> to vector<16x1xf32>
    %67 = arith.addf %65, %66 : vector<16x1xf32>
    %68 = vector.shape_cast %11 : vector<1x32xf32> to vector<1x1x32xf32>
    %69 = vector.broadcast %68 : vector<1x1x32xf32> to vector<16x16x32xf32>
    %70 = arith.mulf %61, %69 : vector<16x16x32xf32>
    %cst_82 = arith.constant dense<0.000000e+00> : vector<16x16xf32>
    %71 = vector.multi_reduction <add>, %70, %cst_82 [2] : vector<16x16x32xf32> to vector<16x16xf32>
    %72 = vector.broadcast %67 : vector<16x1xf32> to vector<16x16xf32>
    %73 = arith.addf %72, %71 : vector<16x16xf32>
    %cst_83 = arith.constant 0.000000e+00 : f32
    %74 = vector.broadcast %cst_83 : f32 to vector<16x16xf32>
    %75 = arith.cmpf oge, %73, %74 : vector<16x16xf32>
    %cst_84 = arith.constant 0.00999999977 : f32
    %76 = vector.broadcast %cst_84 : f32 to vector<16x16xf32>
    %77 = arith.mulf %76, %73 : vector<16x16xf32>
    %78 = arith.select %75, %73, %77 : vector<16x16xi1>, vector<16x16xf32>
    %cst_85 = arith.constant 0.000000e+00 : f32
    %79 = vector.broadcast %cst_85 : f32 to vector<16x16xf32>
    %80 = arith.cmpf ogt, %0, %79 : vector<16x16xf32>
    %cst_86 = arith.constant -1.000000e+30 : f32
    %81 = vector.broadcast %cst_86 : f32 to vector<16x16xf32>
    %82 = arith.select %80, %78, %81 : vector<16x16xi1>, vector<16x16xf32>
    %cst_87 = arith.constant dense<0xFF800000> : vector<16xf32>
    %83 = vector.multi_reduction <maximumf>, %82, %cst_87 [1] : vector<16x16xf32> to vector<16xf32>
    %84 = vector.shape_cast %83 : vector<16xf32> to vector<16x1xf32>
    %cst_88 = arith.constant 0.000000e+00 : f32
    %85 = vector.broadcast %cst_88 : f32 to vector<16x16xf32>
    %86 = arith.cmpf ogt, %0, %85 : vector<16x16xf32>
    %87 = vector.broadcast %84 : vector<16x1xf32> to vector<16x16xf32>
    %88 = arith.subf %82, %87 : vector<16x16xf32>
    %89 = math.exp %88 : vector<16x16xf32>
    %cst_89 = arith.constant 0.000000e+00 : f32
    %90 = vector.broadcast %cst_89 : f32 to vector<16x16xf32>
    %91 = arith.select %86, %89, %90 : vector<16x16xi1>, vector<16x16xf32>
    %cst_90 = arith.constant dense<0.000000e+00> : vector<16xf32>
    %92 = vector.multi_reduction <add>, %91, %cst_90 [1] : vector<16x16xf32> to vector<16xf32>
    %93 = vector.shape_cast %92 : vector<16xf32> to vector<16x1xf32>
    %cst_91 = arith.constant 9.99999996E-13 : f32
    %94 = vector.broadcast %cst_91 : f32 to vector<16x1xf32>
    %95 = arith.maximumf %93, %94 : vector<16x1xf32>
    %96 = tpu.reciprocal %95 {approx = true} : vector<16x1xf32> -> vector<16x1xf32>
    %97 = vector.broadcast %96 : vector<16x1xf32> to vector<16x16xf32>
    %98 = arith.mulf %91, %97 : vector<16x16xf32>
    %99 = vector.shape_cast %61 : vector<16x16x32xf32> to vector<256x32xf32>
    %cst_92 = arith.constant dense<0.000000e+00> : vector<256x32xf32>
    %100 = tpu.matmul %99, %13, %cst_92 {dimension_numbers = #tpu.dot_dimension_numbers<[1], [0], [0], [1], [0, 0, 1, 1], [], []>} : vector<256x32xf32>, vector<32x32xf32>, vector<256x32xf32> -> vector<256x32xf32>
    %101 = vector.broadcast %14 : vector<1x32xf32> to vector<256x32xf32>
    %102 = arith.addf %100, %101 : vector<256x32xf32>
    %103 = vector.shape_cast %102 : vector<256x32xf32> to vector<16x16x32xf32>
    %104 = vector.shape_cast %98 : vector<16x16xf32> to vector<16x16x1xf32>
    %105 = vector.broadcast %104 : vector<16x16x1xf32> to vector<16x16x32xf32>
    %106 = arith.mulf %105, %103 : vector<16x16x32xf32>
    %cst_93 = arith.constant dense<0.000000e+00> : vector<16x32xf32>
    %107 = vector.multi_reduction <add>, %106, %cst_93 [1] : vector<16x16x32xf32> to vector<16x32xf32>
    %cst_94 = arith.constant 0.000000e+00 : f32
    %108 = vector.broadcast %cst_94 : f32 to vector<16x32xf32>
    %109 = arith.cmpf ogt, %107, %108 : vector<16x32xf32>
    %110 = math.exp %107 : vector<16x32xf32>
    %cst_95 = arith.constant 1.000000e+00 : f32
    %111 = vector.broadcast %cst_95 : f32 to vector<16x32xf32>
    %112 = arith.subf %110, %111 : vector<16x32xf32>
    %113 = arith.select %109, %107, %112 : vector<16x32xi1>, vector<16x32xf32>
    %cst_96 = arith.constant dense<0.000000e+00> : vector<16x96xf32>
    %114 = tpu.matmul %113, %15, %cst_96 {dimension_numbers = #tpu.dot_dimension_numbers<[1], [0], [0], [1], [0, 0, 1, 1], [], []>} : vector<16x32xf32>, vector<32x96xf32>, vector<16x96xf32> -> vector<16x96xf32>
    %115 = vector.broadcast %17 : vector<1x96xf32> to vector<16x96xf32>
    %116 = arith.addf %114, %115 : vector<16x96xf32>
    %cst_97 = arith.constant dense<0.000000e+00> : vector<16x96xf32>
    %117 = tpu.matmul %47, %16, %cst_97 {dimension_numbers = #tpu.dot_dimension_numbers<[1], [0], [0], [1], [0, 0, 1, 1], [], []>} : vector<16x32xf32>, vector<32x96xf32>, vector<16x96xf32> -> vector<16x96xf32>
    %118 = vector.broadcast %18 : vector<1x96xf32> to vector<16x96xf32>
    %119 = arith.addf %117, %118 : vector<16x96xf32>
    %120 = vector.extract_strided_slice %116 {offsets = [0, 0], sizes = [16, 32], strides = [1, 1]} : vector<16x96xf32> to vector<16x32xf32>
    %121 = vector.extract_strided_slice %119 {offsets = [0, 0], sizes = [16, 32], strides = [1, 1]} : vector<16x96xf32> to vector<16x32xf32>
    %122 = arith.addf %120, %121 : vector<16x32xf32>
    %123 = arith.negf %122 : vector<16x32xf32>
    %124 = math.exp %123 : vector<16x32xf32>
    %cst_98 = arith.constant 1.000000e+00 : f32
    %125 = vector.broadcast %cst_98 : f32 to vector<16x32xf32>
    %126 = arith.addf %125, %124 : vector<16x32xf32>
    %127 = arith.divf %125, %126 : vector<16x32xf32>
    %128 = vector.extract_strided_slice %116 {offsets = [0, 32], sizes = [16, 32], strides = [1, 1]} : vector<16x96xf32> to vector<16x32xf32>
    %129 = vector.extract_strided_slice %119 {offsets = [0, 32], sizes = [16, 32], strides = [1, 1]} : vector<16x96xf32> to vector<16x32xf32>
    %130 = arith.addf %128, %129 : vector<16x32xf32>
    %131 = arith.negf %130 : vector<16x32xf32>
    %132 = math.exp %131 : vector<16x32xf32>
    %cst_99 = arith.constant 1.000000e+00 : f32
    %133 = vector.broadcast %cst_99 : f32 to vector<16x32xf32>
    %134 = arith.addf %133, %132 : vector<16x32xf32>
    %135 = arith.divf %133, %134 : vector<16x32xf32>
    %136 = vector.extract_strided_slice %116 {offsets = [0, 64], sizes = [16, 32], strides = [1, 1]} : vector<16x96xf32> to vector<16x32xf32>
    %137 = vector.extract_strided_slice %119 {offsets = [0, 64], sizes = [16, 32], strides = [1, 1]} : vector<16x96xf32> to vector<16x32xf32>
    %138 = arith.mulf %127, %137 : vector<16x32xf32>
    %139 = arith.addf %136, %138 : vector<16x32xf32>
    %140 = math.tanh %139 : vector<16x32xf32>
    %cst_100 = arith.constant 1.000000e+00 : f32
    %141 = vector.broadcast %cst_100 : f32 to vector<16x32xf32>
    %142 = arith.subf %141, %135 : vector<16x32xf32>
    %143 = arith.mulf %142, %140 : vector<16x32xf32>
    %144 = arith.mulf %135, %47 : vector<16x32xf32>
    %145 = arith.addf %143, %144 : vector<16x32xf32>
    %cst_101 = arith.constant 0.000000e+00 : f32
    %146 = vector.broadcast %cst_101 : f32 to vector<16x32xf32>
    %147 = arith.maximumf %145, %146 : vector<16x32xf32>
    %148 = vector.broadcast %19 : vector<1x32xf32> to vector<16x32xf32>
    %149 = arith.mulf %147, %148 : vector<16x32xf32>
    %cst_102 = arith.constant dense<0.000000e+00> : vector<16xf32>
    %150 = vector.multi_reduction <add>, %149, %cst_102 [1] : vector<16x32xf32> to vector<16xf32>
    %151 = vector.shape_cast %150 : vector<16xf32> to vector<16x1xf32>
    %152 = vector.broadcast %21 : vector<1x1xf32> to vector<16x1xf32>
    %153 = arith.addf %151, %152 : vector<16x1xf32>
    %154 = vector.shape_cast %147 : vector<16x32xf32> to vector<1x16x32xf32>
    %155 = vector.shape_cast %20 : vector<1x32xf32> to vector<1x1x32xf32>
    %156 = vector.broadcast %155 : vector<1x1x32xf32> to vector<1x16x32xf32>
    %157 = arith.mulf %154, %156 : vector<1x16x32xf32>
    %cst_103 = arith.constant dense<0.000000e+00> : vector<1x16xf32>
    %158 = vector.multi_reduction <add>, %157, %cst_103 [2] : vector<1x16x32xf32> to vector<1x16xf32>
    %159 = vector.broadcast %153 : vector<16x1xf32> to vector<16x16xf32>
    %160 = vector.broadcast %158 : vector<1x16xf32> to vector<16x16xf32>
    %161 = arith.addf %159, %160 : vector<16x16xf32>
    %cst_104 = arith.constant 0.000000e+00 : f32
    %162 = vector.broadcast %cst_104 : f32 to vector<16x16xf32>
    %163 = arith.cmpf oge, %161, %162 : vector<16x16xf32>
    %cst_105 = arith.constant 0.00999999977 : f32
    %164 = vector.broadcast %cst_105 : f32 to vector<16x16xf32>
    %165 = arith.mulf %164, %161 : vector<16x16xf32>
    %166 = arith.select %163, %161, %165 : vector<16x16xi1>, vector<16x16xf32>
    %cst_106 = arith.constant 0.000000e+00 : f32
    %167 = vector.broadcast %cst_106 : f32 to vector<16x16xf32>
    %168 = arith.cmpf ogt, %0, %167 : vector<16x16xf32>
    %cst_107 = arith.constant -1.000000e+30 : f32
    %169 = vector.broadcast %cst_107 : f32 to vector<16x16xf32>
    %170 = arith.select %168, %166, %169 : vector<16x16xi1>, vector<16x16xf32>
    %cst_108 = arith.constant dense<0xFF800000> : vector<16xf32>
    %171 = vector.multi_reduction <maximumf>, %170, %cst_108 [1] : vector<16x16xf32> to vector<16xf32>
    %172 = vector.shape_cast %171 : vector<16xf32> to vector<16x1xf32>
    %cst_109 = arith.constant 0.000000e+00 : f32
    %173 = vector.broadcast %cst_109 : f32 to vector<16x16xf32>
    %174 = arith.cmpf ogt, %0, %173 : vector<16x16xf32>
    %175 = vector.broadcast %172 : vector<16x1xf32> to vector<16x16xf32>
    %176 = arith.subf %170, %175 : vector<16x16xf32>
    %177 = math.exp %176 : vector<16x16xf32>
    %cst_110 = arith.constant 0.000000e+00 : f32
    %178 = vector.broadcast %cst_110 : f32 to vector<16x16xf32>
    %179 = arith.select %174, %177, %178 : vector<16x16xi1>, vector<16x16xf32>
    %cst_111 = arith.constant dense<0.000000e+00> : vector<16xf32>
    %180 = vector.multi_reduction <add>, %179, %cst_111 [1] : vector<16x16xf32> to vector<16xf32>
    %181 = vector.shape_cast %180 : vector<16xf32> to vector<16x1xf32>
    %cst_112 = arith.constant 9.99999996E-13 : f32
    %182 = vector.broadcast %cst_112 : f32 to vector<16x1xf32>
    %183 = arith.maximumf %181, %182 : vector<16x1xf32>
    %184 = tpu.reciprocal %183 {approx = true} : vector<16x1xf32> -> vector<16x1xf32>
    %185 = vector.broadcast %184 : vector<16x1xf32> to vector<16x16xf32>
    %186 = arith.mulf %179, %185 : vector<16x16xf32>
    %cst_113 = arith.constant dense<0.000000e+00> : vector<16x32xf32>
    %187 = tpu.matmul %147, %22, %cst_113 {dimension_numbers = #tpu.dot_dimension_numbers<[1], [0], [0], [1], [0, 0, 1, 1], [], []>} : vector<16x32xf32>, vector<32x32xf32>, vector<16x32xf32> -> vector<16x32xf32>
    %188 = vector.broadcast %23 : vector<1x32xf32> to vector<16x32xf32>
    %189 = arith.addf %187, %188 : vector<16x32xf32>
    %cst_114 = arith.constant dense<0.000000e+00> : vector<16x32xf32>
    %190 = tpu.matmul %186, %189, %cst_114 {dimension_numbers = #tpu.dot_dimension_numbers<[1], [0], [0], [1], [0, 0, 1, 1], [], []>} : vector<16x16xf32>, vector<16x32xf32>, vector<16x32xf32> -> vector<16x32xf32>
    %cst_115 = arith.constant 0.000000e+00 : f32
    %191 = vector.broadcast %cst_115 : f32 to vector<16x32xf32>
    %192 = arith.cmpf ogt, %190, %191 : vector<16x32xf32>
    %193 = math.exp %190 : vector<16x32xf32>
    %cst_116 = arith.constant 1.000000e+00 : f32
    %194 = vector.broadcast %cst_116 : f32 to vector<16x32xf32>
    %195 = arith.subf %193, %194 : vector<16x32xf32>
    %196 = arith.select %192, %190, %195 : vector<16x32xi1>, vector<16x32xf32>
    %cst_117 = arith.constant dense<0.000000e+00> : vector<16x96xf32>
    %197 = tpu.matmul %196, %24, %cst_117 {dimension_numbers = #tpu.dot_dimension_numbers<[1], [0], [0], [1], [0, 0, 1, 1], [], []>} : vector<16x32xf32>, vector<32x96xf32>, vector<16x96xf32> -> vector<16x96xf32>
    %198 = vector.broadcast %26 : vector<1x96xf32> to vector<16x96xf32>
    %199 = arith.addf %197, %198 : vector<16x96xf32>
    %cst_118 = arith.constant dense<0.000000e+00> : vector<16x96xf32>
    %200 = tpu.matmul %147, %25, %cst_118 {dimension_numbers = #tpu.dot_dimension_numbers<[1], [0], [0], [1], [0, 0, 1, 1], [], []>} : vector<16x32xf32>, vector<32x96xf32>, vector<16x96xf32> -> vector<16x96xf32>
    %201 = vector.broadcast %27 : vector<1x96xf32> to vector<16x96xf32>
    %202 = arith.addf %200, %201 : vector<16x96xf32>
    %203 = vector.extract_strided_slice %199 {offsets = [0, 0], sizes = [16, 32], strides = [1, 1]} : vector<16x96xf32> to vector<16x32xf32>
    %204 = vector.extract_strided_slice %202 {offsets = [0, 0], sizes = [16, 32], strides = [1, 1]} : vector<16x96xf32> to vector<16x32xf32>
    %205 = arith.addf %203, %204 : vector<16x32xf32>
    %206 = arith.negf %205 : vector<16x32xf32>
    %207 = math.exp %206 : vector<16x32xf32>
    %cst_119 = arith.constant 1.000000e+00 : f32
    %208 = vector.broadcast %cst_119 : f32 to vector<16x32xf32>
    %209 = arith.addf %208, %207 : vector<16x32xf32>
    %210 = arith.divf %208, %209 : vector<16x32xf32>
    %211 = vector.extract_strided_slice %199 {offsets = [0, 32], sizes = [16, 32], strides = [1, 1]} : vector<16x96xf32> to vector<16x32xf32>
    %212 = vector.extract_strided_slice %202 {offsets = [0, 32], sizes = [16, 32], strides = [1, 1]} : vector<16x96xf32> to vector<16x32xf32>
    %213 = arith.addf %211, %212 : vector<16x32xf32>
    %214 = arith.negf %213 : vector<16x32xf32>
    %215 = math.exp %214 : vector<16x32xf32>
    %cst_120 = arith.constant 1.000000e+00 : f32
    %216 = vector.broadcast %cst_120 : f32 to vector<16x32xf32>
    %217 = arith.addf %216, %215 : vector<16x32xf32>
    %218 = arith.divf %216, %217 : vector<16x32xf32>
    %219 = vector.extract_strided_slice %199 {offsets = [0, 64], sizes = [16, 32], strides = [1, 1]} : vector<16x96xf32> to vector<16x32xf32>
    %220 = vector.extract_strided_slice %202 {offsets = [0, 64], sizes = [16, 32], strides = [1, 1]} : vector<16x96xf32> to vector<16x32xf32>
    %221 = arith.mulf %210, %220 : vector<16x32xf32>
    %222 = arith.addf %219, %221 : vector<16x32xf32>
    %223 = math.tanh %222 : vector<16x32xf32>
    %cst_121 = arith.constant 1.000000e+00 : f32
    %224 = vector.broadcast %cst_121 : f32 to vector<16x32xf32>
    %225 = arith.subf %224, %218 : vector<16x32xf32>
    %226 = arith.mulf %225, %223 : vector<16x32xf32>
    %227 = arith.mulf %218, %147 : vector<16x32xf32>
    %228 = arith.addf %226, %227 : vector<16x32xf32>
    %cst_122 = arith.constant 0.000000e+00 : f32
    %229 = vector.broadcast %cst_122 : f32 to vector<16x32xf32>
    %230 = arith.maximumf %228, %229 : vector<16x32xf32>
    %cst_123 = arith.constant dense<0.000000e+00> : vector<32xf32>
    %231 = vector.multi_reduction <add>, %230, %cst_123 [0] : vector<16x32xf32> to vector<32xf32>
    %232 = vector.shape_cast %231 : vector<32xf32> to vector<1x32xf32>
    %cst_124 = arith.constant 0.000000e+00 : f32
    %233 = vector.broadcast %cst_124 : f32 to vector<1x32xf32>
    %234 = arith.maximumf %232, %233 : vector<1x32xf32>
    %235 = arith.mulf %234, %28 : vector<1x32xf32>
    %cst_125 = arith.constant dense<0.000000e+00> : vector<1xf32>
    %236 = vector.multi_reduction <add>, %235, %cst_125 [1] : vector<1x32xf32> to vector<1xf32>
    %237 = vector.shape_cast %236 : vector<1xf32> to vector<1x1xf32>
    %238 = arith.addf %237, %30 : vector<1x1xf32>
    %239 = vector.broadcast %29 : vector<1x32xf32> to vector<16x32xf32>
    %240 = arith.mulf %230, %239 : vector<16x32xf32>
    %cst_126 = arith.constant dense<0.000000e+00> : vector<16xf32>
    %241 = vector.multi_reduction <add>, %240, %cst_126 [1] : vector<16x32xf32> to vector<16xf32>
    %242 = vector.shape_cast %241 : vector<16xf32> to vector<16x1xf32>
    %243 = vector.broadcast %238 : vector<1x1xf32> to vector<16x1xf32>
    %244 = arith.addf %242, %243 : vector<16x1xf32>
    %cst_127 = arith.constant 0.000000e+00 : f32
    %245 = vector.broadcast %cst_127 : f32 to vector<16x1xf32>
    %246 = arith.cmpf oge, %244, %245 : vector<16x1xf32>
    %cst_128 = arith.constant 0.00999999977 : f32
    %247 = vector.broadcast %cst_128 : f32 to vector<16x1xf32>
    %248 = arith.mulf %247, %244 : vector<16x1xf32>
    %249 = arith.select %246, %244, %248 : vector<16x1xi1>, vector<16x1xf32>
    %cst_129 = arith.constant dense<0xFF800000> : vector<1xf32>
    %250 = vector.multi_reduction <maximumf>, %249, %cst_129 [0] : vector<16x1xf32> to vector<1xf32>
    %251 = vector.shape_cast %250 : vector<1xf32> to vector<1x1xf32>
    %252 = vector.broadcast %251 : vector<1x1xf32> to vector<16x1xf32>
    %253 = arith.subf %249, %252 : vector<16x1xf32>
    %254 = math.exp %253 : vector<16x1xf32>
    %cst_130 = arith.constant dense<0.000000e+00> : vector<1xf32>
    %255 = vector.multi_reduction <add>, %254, %cst_130 [0] : vector<16x1xf32> to vector<1xf32>
    %256 = vector.shape_cast %255 : vector<1xf32> to vector<1x1xf32>
    %257 = tpu.reciprocal %256 {approx = true} : vector<1x1xf32> -> vector<1x1xf32>
    %258 = vector.broadcast %257 : vector<1x1xf32> to vector<16x1xf32>
    %259 = arith.mulf %254, %258 : vector<16x1xf32>
    %cst_131 = arith.constant dense<0.000000e+00> : vector<16x32xf32>
    %260 = tpu.matmul %230, %31, %cst_131 {dimension_numbers = #tpu.dot_dimension_numbers<[1], [0], [0], [1], [0, 0, 1, 1], [], []>} : vector<16x32xf32>, vector<32x32xf32>, vector<16x32xf32> -> vector<16x32xf32>
    %261 = vector.broadcast %32 : vector<1x32xf32> to vector<16x32xf32>
    %262 = arith.addf %260, %261 : vector<16x32xf32>
    %263 = vector.broadcast %259 : vector<16x1xf32> to vector<16x32xf32>
    %264 = arith.mulf %263, %262 : vector<16x32xf32>
    %cst_132 = arith.constant dense<0.000000e+00> : vector<32xf32>
    %265 = vector.multi_reduction <add>, %264, %cst_132 [0] : vector<16x32xf32> to vector<32xf32>
    %266 = vector.shape_cast %265 : vector<32xf32> to vector<1x32xf32>
    %cst_133 = arith.constant 0.000000e+00 : f32
    %267 = vector.broadcast %cst_133 : f32 to vector<1x32xf32>
    %268 = arith.cmpf ogt, %266, %267 : vector<1x32xf32>
    %269 = math.exp %266 : vector<1x32xf32>
    %cst_134 = arith.constant 1.000000e+00 : f32
    %270 = vector.broadcast %cst_134 : f32 to vector<1x32xf32>
    %271 = arith.subf %269, %270 : vector<1x32xf32>
    %272 = arith.select %268, %266, %271 : vector<1x32xi1>, vector<1x32xf32>
    %cst_135 = arith.constant dense<0.000000e+00> : vector<1x96xf32>
    %273 = tpu.matmul %272, %33, %cst_135 {dimension_numbers = #tpu.dot_dimension_numbers<[1], [0], [0], [1], [0, 0, 1, 1], [], []>} : vector<1x32xf32>, vector<32x96xf32>, vector<1x96xf32> -> vector<1x96xf32>
    %274 = arith.addf %273, %35 : vector<1x96xf32>
    %cst_136 = arith.constant dense<0.000000e+00> : vector<1x96xf32>
    %275 = tpu.matmul %232, %34, %cst_136 {dimension_numbers = #tpu.dot_dimension_numbers<[1], [0], [0], [1], [0, 0, 1, 1], [], []>} : vector<1x32xf32>, vector<32x96xf32>, vector<1x96xf32> -> vector<1x96xf32>
    %276 = arith.addf %275, %36 : vector<1x96xf32>
    %277 = vector.extract_strided_slice %274 {offsets = [0, 0], sizes = [1, 32], strides = [1, 1]} : vector<1x96xf32> to vector<1x32xf32>
    %278 = vector.extract_strided_slice %276 {offsets = [0, 0], sizes = [1, 32], strides = [1, 1]} : vector<1x96xf32> to vector<1x32xf32>
    %279 = arith.addf %277, %278 : vector<1x32xf32>
    %280 = arith.negf %279 : vector<1x32xf32>
    %281 = math.exp %280 : vector<1x32xf32>
    %cst_137 = arith.constant 1.000000e+00 : f32
    %282 = vector.broadcast %cst_137 : f32 to vector<1x32xf32>
    %283 = arith.addf %282, %281 : vector<1x32xf32>
    %284 = arith.divf %282, %283 : vector<1x32xf32>
    %285 = vector.extract_strided_slice %274 {offsets = [0, 32], sizes = [1, 32], strides = [1, 1]} : vector<1x96xf32> to vector<1x32xf32>
    %286 = vector.extract_strided_slice %276 {offsets = [0, 32], sizes = [1, 32], strides = [1, 1]} : vector<1x96xf32> to vector<1x32xf32>
    %287 = arith.addf %285, %286 : vector<1x32xf32>
    %288 = arith.negf %287 : vector<1x32xf32>
    %289 = math.exp %288 : vector<1x32xf32>
    %cst_138 = arith.constant 1.000000e+00 : f32
    %290 = vector.broadcast %cst_138 : f32 to vector<1x32xf32>
    %291 = arith.addf %290, %289 : vector<1x32xf32>
    %292 = arith.divf %290, %291 : vector<1x32xf32>
    %293 = vector.extract_strided_slice %274 {offsets = [0, 64], sizes = [1, 32], strides = [1, 1]} : vector<1x96xf32> to vector<1x32xf32>
    %294 = vector.extract_strided_slice %276 {offsets = [0, 64], sizes = [1, 32], strides = [1, 1]} : vector<1x96xf32> to vector<1x32xf32>
    %295 = arith.mulf %284, %294 : vector<1x32xf32>
    %296 = arith.addf %293, %295 : vector<1x32xf32>
    %297 = math.tanh %296 : vector<1x32xf32>
    %cst_139 = arith.constant 1.000000e+00 : f32
    %298 = vector.broadcast %cst_139 : f32 to vector<1x32xf32>
    %299 = arith.subf %298, %292 : vector<1x32xf32>
    %300 = arith.mulf %299, %297 : vector<1x32xf32>
    %301 = arith.mulf %292, %232 : vector<1x32xf32>
    %302 = arith.addf %300, %301 : vector<1x32xf32>
    %cst_140 = arith.constant 0.000000e+00 : f32
    %303 = vector.broadcast %cst_140 : f32 to vector<1x32xf32>
    %304 = arith.maximumf %302, %303 : vector<1x32xf32>
    %cst_141 = arith.constant 0.000000e+00 : f32
    %305 = vector.broadcast %cst_141 : f32 to vector<1x32xf32>
    %306 = arith.maximumf %304, %305 : vector<1x32xf32>
    %307 = arith.mulf %306, %28 : vector<1x32xf32>
    %cst_142 = arith.constant dense<0.000000e+00> : vector<1xf32>
    %308 = vector.multi_reduction <add>, %307, %cst_142 [1] : vector<1x32xf32> to vector<1xf32>
    %309 = vector.shape_cast %308 : vector<1xf32> to vector<1x1xf32>
    %310 = arith.addf %309, %30 : vector<1x1xf32>
    %311 = vector.broadcast %29 : vector<1x32xf32> to vector<16x32xf32>
    %312 = arith.mulf %230, %311 : vector<16x32xf32>
    %cst_143 = arith.constant dense<0.000000e+00> : vector<16xf32>
    %313 = vector.multi_reduction <add>, %312, %cst_143 [1] : vector<16x32xf32> to vector<16xf32>
    %314 = vector.shape_cast %313 : vector<16xf32> to vector<16x1xf32>
    %315 = vector.broadcast %310 : vector<1x1xf32> to vector<16x1xf32>
    %316 = arith.addf %314, %315 : vector<16x1xf32>
    %cst_144 = arith.constant 0.000000e+00 : f32
    %317 = vector.broadcast %cst_144 : f32 to vector<16x1xf32>
    %318 = arith.cmpf oge, %316, %317 : vector<16x1xf32>
    %cst_145 = arith.constant 0.00999999977 : f32
    %319 = vector.broadcast %cst_145 : f32 to vector<16x1xf32>
    %320 = arith.mulf %319, %316 : vector<16x1xf32>
    %321 = arith.select %318, %316, %320 : vector<16x1xi1>, vector<16x1xf32>
    %cst_146 = arith.constant dense<0xFF800000> : vector<1xf32>
    %322 = vector.multi_reduction <maximumf>, %321, %cst_146 [0] : vector<16x1xf32> to vector<1xf32>
    %323 = vector.shape_cast %322 : vector<1xf32> to vector<1x1xf32>
    %324 = vector.broadcast %323 : vector<1x1xf32> to vector<16x1xf32>
    %325 = arith.subf %321, %324 : vector<16x1xf32>
    %326 = math.exp %325 : vector<16x1xf32>
    %cst_147 = arith.constant dense<0.000000e+00> : vector<1xf32>
    %327 = vector.multi_reduction <add>, %326, %cst_147 [0] : vector<16x1xf32> to vector<1xf32>
    %328 = vector.shape_cast %327 : vector<1xf32> to vector<1x1xf32>
    %329 = tpu.reciprocal %328 {approx = true} : vector<1x1xf32> -> vector<1x1xf32>
    %330 = vector.broadcast %329 : vector<1x1xf32> to vector<16x1xf32>
    %331 = arith.mulf %326, %330 : vector<16x1xf32>
    %cst_148 = arith.constant dense<0.000000e+00> : vector<16x32xf32>
    %332 = tpu.matmul %230, %31, %cst_148 {dimension_numbers = #tpu.dot_dimension_numbers<[1], [0], [0], [1], [0, 0, 1, 1], [], []>} : vector<16x32xf32>, vector<32x32xf32>, vector<16x32xf32> -> vector<16x32xf32>
    %333 = vector.broadcast %32 : vector<1x32xf32> to vector<16x32xf32>
    %334 = arith.addf %332, %333 : vector<16x32xf32>
    %335 = vector.broadcast %331 : vector<16x1xf32> to vector<16x32xf32>
    %336 = arith.mulf %335, %334 : vector<16x32xf32>
    %cst_149 = arith.constant dense<0.000000e+00> : vector<32xf32>
    %337 = vector.multi_reduction <add>, %336, %cst_149 [0] : vector<16x32xf32> to vector<32xf32>
    %338 = vector.shape_cast %337 : vector<32xf32> to vector<1x32xf32>
    %cst_150 = arith.constant 0.000000e+00 : f32
    %339 = vector.broadcast %cst_150 : f32 to vector<1x32xf32>
    %340 = arith.cmpf ogt, %338, %339 : vector<1x32xf32>
    %341 = math.exp %338 : vector<1x32xf32>
    %cst_151 = arith.constant 1.000000e+00 : f32
    %342 = vector.broadcast %cst_151 : f32 to vector<1x32xf32>
    %343 = arith.subf %341, %342 : vector<1x32xf32>
    %344 = arith.select %340, %338, %343 : vector<1x32xi1>, vector<1x32xf32>
    %cst_152 = arith.constant dense<0.000000e+00> : vector<1x96xf32>
    %345 = tpu.matmul %344, %33, %cst_152 {dimension_numbers = #tpu.dot_dimension_numbers<[1], [0], [0], [1], [0, 0, 1, 1], [], []>} : vector<1x32xf32>, vector<32x96xf32>, vector<1x96xf32> -> vector<1x96xf32>
    %346 = arith.addf %345, %35 : vector<1x96xf32>
    %cst_153 = arith.constant dense<0.000000e+00> : vector<1x96xf32>
    %347 = tpu.matmul %304, %34, %cst_153 {dimension_numbers = #tpu.dot_dimension_numbers<[1], [0], [0], [1], [0, 0, 1, 1], [], []>} : vector<1x32xf32>, vector<32x96xf32>, vector<1x96xf32> -> vector<1x96xf32>
    %348 = arith.addf %347, %36 : vector<1x96xf32>
    %349 = vector.extract_strided_slice %346 {offsets = [0, 0], sizes = [1, 32], strides = [1, 1]} : vector<1x96xf32> to vector<1x32xf32>
    %350 = vector.extract_strided_slice %348 {offsets = [0, 0], sizes = [1, 32], strides = [1, 1]} : vector<1x96xf32> to vector<1x32xf32>
    %351 = arith.addf %349, %350 : vector<1x32xf32>
    %352 = arith.negf %351 : vector<1x32xf32>
    %353 = math.exp %352 : vector<1x32xf32>
    %cst_154 = arith.constant 1.000000e+00 : f32
    %354 = vector.broadcast %cst_154 : f32 to vector<1x32xf32>
    %355 = arith.addf %354, %353 : vector<1x32xf32>
    %356 = arith.divf %354, %355 : vector<1x32xf32>
    %357 = vector.extract_strided_slice %346 {offsets = [0, 32], sizes = [1, 32], strides = [1, 1]} : vector<1x96xf32> to vector<1x32xf32>
    %358 = vector.extract_strided_slice %348 {offsets = [0, 32], sizes = [1, 32], strides = [1, 1]} : vector<1x96xf32> to vector<1x32xf32>
    %359 = arith.addf %357, %358 : vector<1x32xf32>
    %360 = arith.negf %359 : vector<1x32xf32>
    %361 = math.exp %360 : vector<1x32xf32>
    %cst_155 = arith.constant 1.000000e+00 : f32
    %362 = vector.broadcast %cst_155 : f32 to vector<1x32xf32>
    %363 = arith.addf %362, %361 : vector<1x32xf32>
    %364 = arith.divf %362, %363 : vector<1x32xf32>
    %365 = vector.extract_strided_slice %346 {offsets = [0, 64], sizes = [1, 32], strides = [1, 1]} : vector<1x96xf32> to vector<1x32xf32>
    %366 = vector.extract_strided_slice %348 {offsets = [0, 64], sizes = [1, 32], strides = [1, 1]} : vector<1x96xf32> to vector<1x32xf32>
    %367 = arith.mulf %356, %366 : vector<1x32xf32>
    %368 = arith.addf %365, %367 : vector<1x32xf32>
    %369 = math.tanh %368 : vector<1x32xf32>
    %cst_156 = arith.constant 1.000000e+00 : f32
    %370 = vector.broadcast %cst_156 : f32 to vector<1x32xf32>
    %371 = arith.subf %370, %364 : vector<1x32xf32>
    %372 = arith.mulf %371, %369 : vector<1x32xf32>
    %373 = arith.mulf %364, %304 : vector<1x32xf32>
    %374 = arith.addf %372, %373 : vector<1x32xf32>
    %cst_157 = arith.constant 0.000000e+00 : f32
    %375 = vector.broadcast %cst_157 : f32 to vector<1x32xf32>
    %376 = arith.maximumf %374, %375 : vector<1x32xf32>
    %c0_158 = arith.constant 0 : index
    %c0_159 = arith.constant 0 : index
    %377 = vector.load %arg37[%c0_158, %c0_159] : memref<1x32xf32, #tpu.memory_space<vmem>>, vector<1x32xf32>
    tpu.vector_store %arg37[%c0_158, %c0_159], %376 {strides = array<i32>} : memref<1x32xf32, #tpu.memory_space<vmem>>, vector<1x32xf32>,
    %c0_160 = arith.constant 0 : index
    %c0_161 = arith.constant 0 : index
    %378 = vector.load %arg38[%c0_160, %c0_161] : memref<16x1xf32, #tpu.memory_space<vmem>>, vector<16x1xf32>
    tpu.vector_store %arg38[%c0_160, %c0_161], %331 {strides = array<i32>} : memref<16x1xf32, #tpu.memory_space<vmem>>, vector<16x1xf32>,
    return
  }
}

</mosaic_0001>

<llo_original>
// kernel: _lambda_.1
$region0: #{_lambda_.1}
  #allocation0 [shape = 'u32[]', space=smem, size = 0x4, offset = 0x4, fixed_abs, tag = 'smem constant byte address 0x4 - core index']
  #allocation1 [shape = 'u32[72,128]{1,0:T(1,128)}', space=vmem, size = 0x9000, scoped, tag = 'internal scratch']
  #allocation2 [shape = 'f32[1,1]{1,0:T(1,128)S(1)}', space=vmem, size = 0x200, scoped, tag = 'scoped memory for _lambda_.1']
  #allocation3 [shape = 'f32[1,1]{1,0:T(1,128)S(1)}', space=vmem, size = 0x200, scoped, tag = 'scoped memory for _lambda_.1']
  #allocation4 [shape = 'f32[1,1]{1,0:T(1,128)S(1)}', space=vmem, size = 0x200, scoped, tag = 'scoped memory for _lambda_.1']
  %s0 = inlined_call_operand.smem [shape: u32[39], index: -1, kind: input, shape index: {}]
  %s1 = sld [smem:[%s0]]
  %s2 = scalar_lea.smem %s0, 1
  %s3 = sld [smem:[%s2]]
  %s4 = scalar_lea.smem %s0, 2
  %s5 = sld [smem:[%s4]]
  %s6 = scalar_lea.smem %s0, 3
  %s7 = sld [smem:[%s6]]
  %s8 = scalar_lea.smem %s0, 4
  %s9 = sld [smem:[%s8]]
  %s10 = scalar_lea.smem %s0, 5
  %s11 = sld [smem:[%s10]]
  %s12 = scalar_lea.smem %s0, 6
  %s13 = sld [smem:[%s12]]
  %s14 = scalar_lea.smem %s0, 7
  %s15 = sld [smem:[%s14]]
  %s16 = scalar_lea.smem %s0, 8
  %s17 = sld [smem:[%s16]]
  %s18 = scalar_lea.smem %s0, 9
  %s19 = sld [smem:[%s18]]
  %s20 = scalar_lea.smem %s0, 10
  %s21 = sld [smem:[%s20]]
  %s22 = scalar_lea.smem %s0, 11
  %s23 = sld [smem:[%s22]]
  %s24 = scalar_lea.smem %s0, 12
  %s25 = sld [smem:[%s24]]
  %s26 = scalar_lea.smem %s0, 13
  %s27 = sld [smem:[%s26]]
  %s28 = scalar_lea.smem %s0, 14
  %s29 = sld [smem:[%s28]]
  %s30 = scalar_lea.smem %s0, 15
  %s31 = sld [smem:[%s30]]
  %s32 = scalar_lea.smem %s0, 16
  %s33 = sld [smem:[%s32]]
  %s34 = scalar_lea.smem %s0, 17
  %s35 = sld [smem:[%s34]]
  %s36 = scalar_lea.smem %s0, 18
  %s37 = sld [smem:[%s36]]
  %s38 = scalar_lea.smem %s0, 19
  %s39 = sld [smem:[%s38]]
  %s40 = scalar_lea.smem %s0, 20
  %s41 = sld [smem:[%s40]]
  %s42 = scalar_lea.smem %s0, 21
  %s43 = sld [smem:[%s42]]
  %s44 = scalar_lea.smem %s0, 22
  %s45 = sld [smem:[%s44]]
  %s46 = scalar_lea.smem %s0, 23
  %s47 = sld [smem:[%s46]]
  %s48 = scalar_lea.smem %s0, 24
  %s49 = sld [smem:[%s48]]
  %s50 = scalar_lea.smem %s0, 25
  %s51 = sld [smem:[%s50]]
  %s52 = scalar_lea.smem %s0, 26
  %s53 = sld [smem:[%s52]]
  %s54 = scalar_lea.smem %s0, 27
  %s55 = sld [smem:[%s54]]
  %s56 = scalar_lea.smem %s0, 28
  %s57 = sld [smem:[%s56]]
  %s58 = scalar_lea.smem %s0, 29
  %s59 = sld [smem:[%s58]]
  %s60 = scalar_lea.smem %s0, 30
  %s61 = sld [smem:[%s60]]
  %s62 = scalar_lea.smem %s0, 31
  %s63 = sld [smem:[%s62]]
  %s64 = scalar_lea.smem %s0, 32
  %s65 = sld [smem:[%s64]]
  %s66 = scalar_lea.smem %s0, 33
  %s67 = sld [smem:[%s66]]
  %s68 = scalar_lea.smem %s0, 34
  %s69 = sld [smem:[%s68]]
  %s70 = scalar_lea.smem %s0, 35
  %s71 = sld [smem:[%s70]]
  %s72 = scalar_lea.smem %s0, 36
  %s73 = sld [smem:[%s72]]
  %s74 = scalar_lea.smem %s0, 37
  %s75 = sld [smem:[%s74]]
  %s76 = scalar_lea.smem %s0, 38
  %s77 = sld [smem:[%s76]]
  %78 = xla_tuple %s75, %s77
  %s79 = sld [smem:[#allocation0]]
  $region254: #{_lambda_.1} parent=0
    _
  %s81 = ssub.s32 1, %s79
  %s82 = scalar_select 0, %s81, %s79
  %v83 = vstv %s25
  %84 = vst [vmem:[#allocation2] sm:$0x1] %v83
  %v85 = vstv %s43
  %86 = vst [vmem:[#allocation3] sm:$0x1] %v85
  %v87 = vstv %s61
  %88 = vst [vmem:[#allocation4] sm:$0x1] %v87
  $region1: #{_lambda_.1} parent=0
    #allocation5 [shape = 'u8[8192]{0}', space=vmem, size = 0x2000, scoped, tag = 'input window, operand 0, single buffered']
    #allocation6 [shape = 's32[1]{0}', space=sflag, size = 0x4, scoped, tag = 'scoped memory for _lambda_.1']
    #allocation7 [shape = 's32[1]{0}', space=sflag, size = 0x4, scoped, tag = 'scoped memory for _lambda_.1']
    #allocation8 [shape = 'u8[8192]{0}', space=vmem, size = 0x2000, scoped, tag = 'input window, operand 1, single buffered']
    #allocation9 [shape = 's32[1]{0}', space=sflag, size = 0x4, scoped, tag = 'scoped memory for _lambda_.1']
    #allocation10 [shape = 'u8[131072]{0}', space=vmem, size = 0x20000, scoped, tag = 'input window, operand 2, single buffered']
    #allocation11 [shape = 'u8[32768]{0}', space=vmem, size = 0x8000, scoped, tag = 'input window, operand 3, single buffered']
    #allocation12 [shape = 's32[1]{0}', space=sflag, size = 0x4, scoped, tag = 'scoped memory for _lambda_.1']
    #allocation13 [shape = 'u8[512]{0}', space=vmem, size = 0x400, scoped, tag = 'input window, operand 4, single buffered']
    #allocation14 [shape = 'u8[16384]{0}', space=vmem, size = 0x4000, scoped, tag = 'input window, operand 5, single buffered']
    #allocation15 [shape = 's32[1]{0}', space=sflag, size = 0x4, scoped, tag = 'scoped memory for _lambda_.1']
    #allocation16 [shape = 'u8[512]{0}', space=vmem, size = 0x400, scoped, tag = 'input window, operand 6, single buffered']
    #allocation17 [shape = 'u8[16384]{0}', space=vmem, size = 0x4000, scoped, tag = 'input window, operand 7, single buffered']
    #allocation18 [shape = 's32[1]{0}', space=sflag, size = 0x4, scoped, tag = 'scoped memory for _lambda_.1']
    #allocation19 [shape = 'u8[16384]{0}', space=vmem, size = 0x4000, scoped, tag = 'input window, operand 8, single buffered']
    #allocation20 [shape = 'u8[512]{0}', space=vmem, size = 0x400, scoped, tag = 'input window, operand 9, single buffered']
    #allocation21 [shape = 's32[1]{0}', space=sflag, size = 0x4, scoped, tag = 'scoped memory for _lambda_.1']
    #allocation22 [shape = 'u8[512]{0}', space=vmem, size = 0x400, scoped, tag = 'input window, operand 10, single buffered']
    #allocation23 [shape = 'u8[512]{0}', space=vmem, size = 0x400, scoped, tag = 'input window, operand 11, single buffered']
    #allocation24 [shape = 's32[1]{0}', space=sflag, size = 0x4, scoped, tag = 'scoped memory for _lambda_.1']
    #allocation25 [shape = 'u8[16384]{0}', space=vmem, size = 0x4000, scoped, tag = 'input window, operand 13, single buffered']
    #allocation26 [shape = 'u8[512]{0}', space=vmem, size = 0x400, scoped, tag = 'input window, operand 14, single buffered']
    #allocation27 [shape = 's32[1]{0}', space=sflag, size = 0x4, scoped, tag = 'scoped memory for _lambda_.1']
    #allocation28 [shape = 'u8[16384]{0}', space=vmem, size = 0x4000, scoped, tag = 'input window, operand 15, single buffered']
    #allocation29 [shape = 'u8[16384]{0}', space=vmem, size = 0x4000, scoped, tag = 'input window, operand 16, single buffered']
    #allocation30 [shape = 's32[1]{0}', space=sflag, size = 0x4, scoped, tag = 'scoped memory for _lambda_.1']
    #allocation31 [shape = 'u8[16384]{0}', space=vmem, size = 0x4000, scoped, tag = 'input window, operand 22, single buffered']
    #allocation32 [shape = 'u8[16384]{0}', space=vmem, size = 0x4000, scoped, tag = 'input window, operand 24, single buffered']
    #allocation33 [shape = 's32[1]{0}', space=sflag, size = 0x4, scoped, tag = 'scoped memory for _lambda_.1']
    #allocation34 [shape = 'u8[16384]{0}', space=vmem, size = 0x4000, scoped, tag = 'input window, operand 25, single buffered']
    #allocation35 [shape = 'u8[16384]{0}', space=vmem, size = 0x4000, scoped, tag = 'input window, operand 31, single buffered']
    #allocation36 [shape = 's32[1]{0}', space=sflag, size = 0x4, scoped, tag = 'scoped memory for _lambda_.1']
    #allocation37 [shape = 'u8[16384]{0}', space=vmem, size = 0x4000, scoped, tag = 'input window, operand 33, single buffered']
    #allocation38 [shape = 'u8[16384]{0}', space=vmem, size = 0x4000, scoped, tag = 'input window, operand 34, single buffered']
    #allocation39 [shape = 's32[1]{0}', space=sflag, size = 0x4, scoped, tag = 'scoped memory for _lambda_.1']
    #allocation40 [shape = 'u8[512]{0}', space=vmem, size = 0x400, scoped, tag = 'output window, operand 0, single buffered']
    %89 = vsyncpa [#allocation6], 0
    %90 = vsyncpa [#allocation9], 0
    %91 = vsyncpa [#allocation12], 0
    %92 = vsyncpa [#allocation15], 0
    %93 = vsyncpa [#allocation18], 0
    %94 = vsyncpa [#allocation21], 0
    %95 = vsyncpa [#allocation24], 0
    %96 = vsyncpa [#allocation27], 0
    %97 = vsyncpa [#allocation30], 0
    %98 = vsyncpa [#allocation33], 0
    %99 = vsyncpa [#allocation36], 0
    %100 = vsyncpa [#allocation39], 0
    %101 = vsyncpa [#allocation7], 0
    // Predicated region
    $region2: #{_lambda_.1} parent=1 // pred_check
      _
    $region3: #{_lambda_.1} parent=1 // pred_check_branch
      %103 = sbr.rel (0) target = $region5
    $region4: #{_lambda_.1} parent=1 // pred_region
      %105 = vsyncadd [#allocation6], 0
      %s106 = sshll.u32 %s1, 4
      %s107 = int_to_ptr.hbm [resolvable:$true] %s106
      %s108 = sshll.u32 [#allocation5], 4
      %s109 = int_to_ptr.vmem [resolvable:$true] %s108
      %114 = dma.hbm_to_vmem [thread:$0]  %s107, 256, %s109, [#allocation6], 128, 128, 8
    $region5: #{_lambda_.1} parent=1 // pred_fallthru
      _
    // Predicated region
    $region6: #{_lambda_.1} parent=1 // pred_check
      _
    $region7: #{_lambda_.1} parent=1 // pred_check_branch
      %116 = sbr.rel (0) target = $region9
    $region8: #{_lambda_.1} parent=1 // pred_region
      %118 = vsyncadd [#allocation9], 0
      %s119 = sshll.u32 %s3, 4
      %s120 = int_to_ptr.hbm [resolvable:$true] %s119
      %s121 = sshll.u32 [#allocation8], 4
      %s122 = int_to_ptr.vmem [resolvable:$true] %s121
      %127 = dma.hbm_to_vmem [thread:$0]  %s120, 256, %s122, [#allocation9], 128, 128, 8
    $region9: #{_lambda_.1} parent=1 // pred_fallthru
      _
    // Predicated region
    $region10: #{_lambda_.1} parent=1 // pred_check
      _
    $region11: #{_lambda_.1} parent=1 // pred_check_branch
      %129 = sbr.rel (0) target = $region13
    $region12: #{_lambda_.1} parent=1 // pred_region
      %131 = vsyncadd [#allocation9], 0
      %s132 = sshll.u32 %s5, 4
      %s133 = int_to_ptr.hbm [resolvable:$true] %s132
      %s134 = sshll.u32 [#allocation10], 4
      %s135 = int_to_ptr.vmem [resolvable:$true] %s134
      %140 = dma.hbm_to_vmem [thread:$0]  %s133, 4096, %s135, [#allocation9], 128, 128, 8
    $region13: #{_lambda_.1} parent=1 // pred_fallthru
      _
    // Predicated region
    $region14: #{_lambda_.1} parent=1 // pred_check
      _
    $region15: #{_lambda_.1} parent=1 // pred_check_branch
      %142 = sbr.rel (0) target = $region17
    $region16: #{_lambda_.1} parent=1 // pred_region
      %144 = vsyncadd [#allocation12], 0
      %s145 = sshll.u32 %s7, 4
      %s146 = int_to_ptr.hbm [resolvable:$true] %s145
      %s147 = sshll.u32 [#allocation11], 4
      %s148 = int_to_ptr.vmem [resolvable:$true] %s147
      %153 = dma.hbm_to_vmem [thread:$0]  %s146, 1024, %s148, [#allocation12], 128, 128, 8
    $region17: #{_lambda_.1} parent=1 // pred_fallthru
      _
    // Predicated region
    $region18: #{_lambda_.1} parent=1 // pred_check
      _
    $region19: #{_lambda_.1} parent=1 // pred_check_branch
      %155 = sbr.rel (0) target = $region21
    $region20: #{_lambda_.1} parent=1 // pred_region
      %157 = vsyncadd [#allocation12], 0
      %s159 = sshll.u32 %s9, 4
      %s160 = int_to_ptr.hbm [resolvable:$true] %s159
      %s161 = sshll.u32 [#allocation13], 4
      %s162 = int_to_ptr.vmem [resolvable:$true] %s161
      %164 = dma.hbm_to_vmem [thread:$0]  %s160, 16, %s162, [#allocation12]
    $region21: #{_lambda_.1} parent=1 // pred_fallthru
      _
    // Predicated region
    $region22: #{_lambda_.1} parent=1 // pred_check
      _
    $region23: #{_lambda_.1} parent=1 // pred_check_branch
      %166 = sbr.rel (0) target = $region25
    $region24: #{_lambda_.1} parent=1 // pred_region
      %168 = vsyncadd [#allocation15], 0
      %s169 = sshll.u32 %s11, 4
      %s170 = int_to_ptr.hbm [resolvable:$true] %s169
      %s171 = sshll.u32 [#allocation14], 4
      %s172 = int_to_ptr.vmem [resolvable:$true] %s171
      %177 = dma.hbm_to_vmem [thread:$0]  %s170, 512, %s172, [#allocation15], 128, 128, 8
    $region25: #{_lambda_.1} parent=1 // pred_fallthru
      _
    // Predicated region
    $region26: #{_lambda_.1} parent=1 // pred_check
      _
    $region27: #{_lambda_.1} parent=1 // pred_check_branch
      %179 = sbr.rel (0) target = $region29
    $region28: #{_lambda_.1} parent=1 // pred_region
      %181 = vsyncadd [#allocation15], 0
      %s183 = sshll.u32 %s13, 4
      %s184 = int_to_ptr.hbm [resolvable:$true] %s183
      %s185 = sshll.u32 [#allocation16], 4
      %s186 = int_to_ptr.vmem [resolvable:$true] %s185
      %188 = dma.hbm_to_vmem [thread:$0]  %s184, 16, %s186, [#allocation15]
    $region29: #{_lambda_.1} parent=1 // pred_fallthru
      _
    // Predicated region
    $region30: #{_lambda_.1} parent=1 // pred_check
      _
    $region31: #{_lambda_.1} parent=1 // pred_check_branch
      %190 = sbr.rel (0) target = $region33
    $region32: #{_lambda_.1} parent=1 // pred_region
      %192 = vsyncadd [#allocation18], 0
      %s193 = sshll.u32 %s15, 4
      %s194 = int_to_ptr.hbm [resolvable:$true] %s193
      %s195 = sshll.u32 [#allocation17], 4
      %s196 = int_to_ptr.vmem [resolvable:$true] %s195
      %201 = dma.hbm_to_vmem [thread:$0]  %s194, 512, %s196, [#allocation18], 128, 128, 8
    $region33: #{_lambda_.1} parent=1 // pred_fallthru
      _
    // Predicated region
    $region34: #{_lambda_.1} parent=1 // pred_check
      _
    $region35: #{_lambda_.1} parent=1 // pred_check_branch
      %203 = sbr.rel (0) target = $region37
    $region36: #{_lambda_.1} parent=1 // pred_region
      %205 = vsyncadd [#allocation18], 0
      %s206 = sshll.u32 %s17, 4
      %s207 = int_to_ptr.hbm [resolvable:$true] %s206
      %s208 = sshll.u32 [#allocation19], 4
      %s209 = int_to_ptr.vmem [resolvable:$true] %s208
      %214 = dma.hbm_to_vmem [thread:$0]  %s207, 512, %s209, [#allocation18], 128, 128, 8
    $region37: #{_lambda_.1} parent=1 // pred_fallthru
      _
    // Predicated region
    $region38: #{_lambda_.1} parent=1 // pred_check
      _
    $region39: #{_lambda_.1} parent=1 // pred_check_branch
      %216 = sbr.rel (0) target = $region41
    $region40: #{_lambda_.1} parent=1 // pred_region
      %218 = vsyncadd [#allocation21], 0
      %s220 = sshll.u32 %s19, 4
      %s221 = int_to_ptr.hbm [resolvable:$true] %s220
      %s222 = sshll.u32 [#allocation20], 4
      %s223 = int_to_ptr.vmem [resolvable:$true] %s222
      %225 = dma.hbm_to_vmem [thread:$0]  %s221, 16, %s223, [#allocation21]
    $region41: #{_lambda_.1} parent=1 // pred_fallthru
      _
    // Predicated region
    $region42: #{_lambda_.1} parent=1 // pred_check
      _
    $region43: #{_lambda_.1} parent=1 // pred_check_branch
      %227 = sbr.rel (0) target = $region45
    $region44: #{_lambda_.1} parent=1 // pred_region
      %229 = vsyncadd [#allocation21], 0
      %s231 = sshll.u32 %s21, 4
      %s232 = int_to_ptr.hbm [resolvable:$true] %s231
      %s233 = sshll.u32 [#allocation22], 4
      %s234 = int_to_ptr.vmem [resolvable:$true] %s233
      %236 = dma.hbm_to_vmem [thread:$0]  %s232, 16, %s234, [#allocation21]
    $region45: #{_lambda_.1} parent=1 // pred_fallthru
      _
    // Predicated region
    $region46: #{_lambda_.1} parent=1 // pred_check
      _
    $region47: #{_lambda_.1} parent=1 // pred_check_branch
      %238 = sbr.rel (0) target = $region49
    $region48: #{_lambda_.1} parent=1 // pred_region
      %240 = vsyncadd [#allocation24], 0
      %s242 = sshll.u32 %s23, 4
      %s243 = int_to_ptr.hbm [resolvable:$true] %s242
      %s244 = sshll.u32 [#allocation23], 4
      %s245 = int_to_ptr.vmem [resolvable:$true] %s244
      %247 = dma.hbm_to_vmem [thread:$0]  %s243, 16, %s245, [#allocation24]
    $region49: #{_lambda_.1} parent=1 // pred_fallthru
      _
    // Predicated region
    $region50: #{_lambda_.1} parent=1 // pred_check
      _
    $region51: #{_lambda_.1} parent=1 // pred_check_branch
      %249 = sbr.rel (0) target = $region53
    $region52: #{_lambda_.1} parent=1 // pred_region
      _
    $region53: #{_lambda_.1} parent=1 // pred_fallthru
      _
    // Predicated region
    $region54: #{_lambda_.1} parent=1 // pred_check
      _
    $region55: #{_lambda_.1} parent=1 // pred_check_branch
      %251 = sbr.rel (0) target = $region57
    $region56: #{_lambda_.1} parent=1 // pred_region
      %253 = vsyncadd [#allocation24], 0
      %s254 = sshll.u32 %s27, 4
      %s255 = int_to_ptr.hbm [resolvable:$true] %s254
      %s256 = sshll.u32 [#allocation25], 4
      %s257 = int_to_ptr.vmem [resolvable:$true] %s256
      %262 = dma.hbm_to_vmem [thread:$0]  %s255, 512, %s257, [#allocation24], 128, 128, 8
    $region57: #{_lambda_.1} parent=1 // pred_fallthru
      _
    // Predicated region
    $region58: #{_lambda_.1} parent=1 // pred_check
      _
    $region59: #{_lambda_.1} parent=1 // pred_check_branch
      %264 = sbr.rel (0) target = $region61
    $region60: #{_lambda_.1} parent=1 // pred_region
      %266 = vsyncadd [#allocation27], 0
      %s268 = sshll.u32 %s29, 4
      %s269 = int_to_ptr.hbm [resolvable:$true] %s268
      %s270 = sshll.u32 [#allocation26], 4
      %s271 = int_to_ptr.vmem [resolvable:$true] %s270
      %273 = dma.hbm_to_vmem [thread:$0]  %s269, 16, %s271, [#allocation27]
    $region61: #{_lambda_.1} parent=1 // pred_fallthru
      _
    // Predicated region
    $region62: #{_lambda_.1} parent=1 // pred_check
      _
    $region63: #{_lambda_.1} parent=1 // pred_check_branch
      %275 = sbr.rel (0) target = $region65
    $region64: #{_lambda_.1} parent=1 // pred_region
      %277 = vsyncadd [#allocation27], 0
      %s278 = sshll.u32 %s31, 4
      %s279 = int_to_ptr.hbm [resolvable:$true] %s278
      %s280 = sshll.u32 [#allocation28], 4
      %s281 = int_to_ptr.vmem [resolvable:$true] %s280
      %286 = dma.hbm_to_vmem [thread:$0]  %s279, 512, %s281, [#allocation27], 128, 128, 8
    $region65: #{_lambda_.1} parent=1 // pred_fallthru
      _
    // Predicated region
    $region66: #{_lambda_.1} parent=1 // pred_check
      _
    $region67: #{_lambda_.1} parent=1 // pred_check_branch
      %288 = sbr.rel (0) target = $region69
    $region68: #{_lambda_.1} parent=1 // pred_region
      %290 = vsyncadd [#allocation30], 0
      %s291 = sshll.u32 %s33, 4
      %s292 = int_to_ptr.hbm [resolvable:$true] %s291
      %s293 = sshll.u32 [#allocation29], 4
      %s294 = int_to_ptr.vmem [resolvable:$true] %s293
      %299 = dma.hbm_to_vmem [thread:$0]  %s292, 512, %s294, [#allocation30], 128, 128, 8
    $region69: #{_lambda_.1} parent=1 // pred_fallthru
      _
    // Predicated region
    $region70: #{_lambda_.1} parent=1 // pred_check
      _
    $region71: #{_lambda_.1} parent=1 // pred_check_branch
      %301 = sbr.rel (0) target = $region73
    $region72: #{_lambda_.1} parent=1 // pred_region
      _
    $region73: #{_lambda_.1} parent=1 // pred_fallthru
      _
    // Predicated region
    $region74: #{_lambda_.1} parent=1 // pred_check
      _
    $region75: #{_lambda_.1} parent=1 // pred_check_branch
      %303 = sbr.rel (0) target = $region77
    $region76: #{_lambda_.1} parent=1 // pred_region
      _
    $region77: #{_lambda_.1} parent=1 // pred_fallthru
      _
    // Predicated region
    $region78: #{_lambda_.1} parent=1 // pred_check
      _
    $region79: #{_lambda_.1} parent=1 // pred_check_branch
      %305 = sbr.rel (0) target = $region81
    $region80: #{_lambda_.1} parent=1 // pred_region
      _
    $region81: #{_lambda_.1} parent=1 // pred_fallthru
      _
    // Predicated region
    $region82: #{_lambda_.1} parent=1 // pred_check
      _
    $region83: #{_lambda_.1} parent=1 // pred_check_branch
      %307 = sbr.rel (0) target = $region85
    $region84: #{_lambda_.1} parent=1 // pred_region
      _
    $region85: #{_lambda_.1} parent=1 // pred_fallthru
      _
    // Predicated region
    $region86: #{_lambda_.1} parent=1 // pred_check
      _
    $region87: #{_lambda_.1} parent=1 // pred_check_branch
      %309 = sbr.rel (0) target = $region89
    $region88: #{_lambda_.1} parent=1 // pred_region
      _
    $region89: #{_lambda_.1} parent=1 // pred_fallthru
      _
    // Predicated region
    $region90: #{_lambda_.1} parent=1 // pred_check
      _
    $region91: #{_lambda_.1} parent=1 // pred_check_branch
      %311 = sbr.rel (0) target = $region93
    $region92: #{_lambda_.1} parent=1 // pred_region
      %313 = vsyncadd [#allocation30], 0
      %s314 = sshll.u32 %s45, 4
      %s315 = int_to_ptr.hbm [resolvable:$true] %s314
      %s316 = sshll.u32 [#allocation31], 4
      %s317 = int_to_ptr.vmem [resolvable:$true] %s316
      %322 = dma.hbm_to_vmem [thread:$0]  %s315, 512, %s317, [#allocation30], 128, 128, 8
    $region93: #{_lambda_.1} parent=1 // pred_fallthru
      _
    // Predicated region
    $region94: #{_lambda_.1} parent=1 // pred_check
      _
    $region95: #{_lambda_.1} parent=1 // pred_check_branch
      %324 = sbr.rel (0) target = $region97
    $region96: #{_lambda_.1} parent=1 // pred_region
      _
    $region97: #{_lambda_.1} parent=1 // pred_fallthru
      _
    // Predicated region
    $region98: #{_lambda_.1} parent=1 // pred_check
      _
    $region99: #{_lambda_.1} parent=1 // pred_check_branch
      %326 = sbr.rel (0) target = $region101
    $region100: #{_lambda_.1} parent=1 // pred_region
      %328 = vsyncadd [#allocation33], 0
      %s329 = sshll.u32 %s49, 4
      %s330 = int_to_ptr.hbm [resolvable:$true] %s329
      %s331 = sshll.u32 [#allocation32], 4
      %s332 = int_to_ptr.vmem [resolvable:$true] %s331
      %337 = dma.hbm_to_vmem [thread:$0]  %s330, 512, %s332, [#allocation33], 128, 128, 8
    $region101: #{_lambda_.1} parent=1 // pred_fallthru
      _
    // Predicated region
    $region102: #{_lambda_.1} parent=1 // pred_check
      _
    $region103: #{_lambda_.1} parent=1 // pred_check_branch
      %339 = sbr.rel (0) target = $region105
    $region104: #{_lambda_.1} parent=1 // pred_region
      %341 = vsyncadd [#allocation33], 0
      %s342 = sshll.u32 %s51, 4
      %s343 = int_to_ptr.hbm [resolvable:$true] %s342
      %s344 = sshll.u32 [#allocation34], 4
      %s345 = int_to_ptr.vmem [resolvable:$true] %s344
      %350 = dma.hbm_to_vmem [thread:$0]  %s343, 512, %s345, [#allocation33], 128, 128, 8
    $region105: #{_lambda_.1} parent=1 // pred_fallthru
      _
    // Predicated region
    $region106: #{_lambda_.1} parent=1 // pred_check
      _
    $region107: #{_lambda_.1} parent=1 // pred_check_branch
      %352 = sbr.rel (0) target = $region109
    $region108: #{_lambda_.1} parent=1 // pred_region
      _
    $region109: #{_lambda_.1} parent=1 // pred_fallthru
      _
    // Predicated region
    $region110: #{_lambda_.1} parent=1 // pred_check
      _
    $region111: #{_lambda_.1} parent=1 // pred_check_branch
      %354 = sbr.rel (0) target = $region113
    $region112: #{_lambda_.1} parent=1 // pred_region
      _
    $region113: #{_lambda_.1} parent=1 // pred_fallthru
      _
    // Predicated region
    $region114: #{_lambda_.1} parent=1 // pred_check
      _
    $region115: #{_lambda_.1} parent=1 // pred_check_branch
      %356 = sbr.rel (0) target = $region117
    $region116: #{_lambda_.1} parent=1 // pred_region
      _
    $region117: #{_lambda_.1} parent=1 // pred_fallthru
      _
    // Predicated region
    $region118: #{_lambda_.1} parent=1 // pred_check
      _
    $region119: #{_lambda_.1} parent=1 // pred_check_branch
      %358 = sbr.rel (0) target = $region121
    $region120: #{_lambda_.1} parent=1 // pred_region
      _
    $region121: #{_lambda_.1} parent=1 // pred_fallthru
      _
    // Predicated region
    $region122: #{_lambda_.1} parent=1 // pred_check
      _
    $region123: #{_lambda_.1} parent=1 // pred_check_branch
      %360 = sbr.rel (0) target = $region125
    $region124: #{_lambda_.1} parent=1 // pred_region
      _
    $region125: #{_lambda_.1} parent=1 // pred_fallthru
      _
    // Predicated region
    $region126: #{_lambda_.1} parent=1 // pred_check
      _
    $region127: #{_lambda_.1} parent=1 // pred_check_branch
      %362 = sbr.rel (0) target = $region129
    $region128: #{_lambda_.1} parent=1 // pred_region
      %364 = vsyncadd [#allocation36], 0
      %s365 = sshll.u32 %s63, 4
      %s366 = int_to_ptr.hbm [resolvable:$true] %s365
      %s367 = sshll.u32 [#allocation35], 4
      %s368 = int_to_ptr.vmem [resolvable:$true] %s367
      %373 = dma.hbm_to_vmem [thread:$0]  %s366, 512, %s368, [#allocation36], 128, 128, 8
    $region129: #{_lambda_.1} parent=1 // pred_fallthru
      _
    // Predicated region
    $region130: #{_lambda_.1} parent=1 // pred_check
      _
    $region131: #{_lambda_.1} parent=1 // pred_check_branch
      %375 = sbr.rel (0) target = $region133
    $region132: #{_lambda_.1} parent=1 // pred_region
      _
    $region133: #{_lambda_.1} parent=1 // pred_fallthru
      _
    // Predicated region
    $region134: #{_lambda_.1} parent=1 // pred_check
      _
    $region135: #{_lambda_.1} parent=1 // pred_check_branch
      %377 = sbr.rel (0) target = $region137
    $region136: #{_lambda_.1} parent=1 // pred_region
      %379 = vsyncadd [#allocation36], 0
      %s380 = sshll.u32 %s67, 4
      %s381 = int_to_ptr.hbm [resolvable:$true] %s380
      %s382 = sshll.u32 [#allocation37], 4
      %s383 = int_to_ptr.vmem [resolvable:$true] %s382
      %388 = dma.hbm_to_vmem [thread:$0]  %s381, 512, %s383, [#allocation36], 128, 128, 8
    $region137: #{_lambda_.1} parent=1 // pred_fallthru
      _
    // Predicated region
    $region138: #{_lambda_.1} parent=1 // pred_check
      _
    $region139: #{_lambda_.1} parent=1 // pred_check_branch
      %390 = sbr.rel (0) target = $region141
    $region140: #{_lambda_.1} parent=1 // pred_region
      %392 = vsyncadd [#allocation39], 0
      %s393 = sshll.u32 %s69, 4
      %s394 = int_to_ptr.hbm [resolvable:$true] %s393
      %s395 = sshll.u32 [#allocation38], 4
      %s396 = int_to_ptr.vmem [resolvable:$true] %s395
      %401 = dma.hbm_to_vmem [thread:$0]  %s394, 512, %s396, [#allocation39], 128, 128, 8
    $region141: #{_lambda_.1} parent=1 // pred_fallthru
      _
    // Predicated region
    $region142: #{_lambda_.1} parent=1 // pred_check
      _
    $region143: #{_lambda_.1} parent=1 // pred_check_branch
      %403 = sbr.rel (0) target = $region145
    $region144: #{_lambda_.1} parent=1 // pred_region
      _
    $region145: #{_lambda_.1} parent=1 // pred_fallthru
      _
    // Predicated region
    $region146: #{_lambda_.1} parent=1 // pred_check
      _
    $region147: #{_lambda_.1} parent=1 // pred_check_branch
      %405 = sbr.rel (0) target = $region149
    $region148: #{_lambda_.1} parent=1 // pred_region
      _
    $region149: #{_lambda_.1} parent=1 // pred_fallthru
      _
    // Predicated region
    $region150: #{_lambda_.1} parent=1 // pred_check
      _
    $region151: #{_lambda_.1} parent=1 // pred_check_branch
      %407 = sbr.rel (0) target = $region153
    $region152: #{_lambda_.1} parent=1 // pred_region
      %409 = dma.done [#allocation6], 256
    $region153: #{_lambda_.1} parent=1 // pred_fallthru
      _
    // Predicated region
    $region154: #{_lambda_.1} parent=1 // pred_check
      _
    $region155: #{_lambda_.1} parent=1 // pred_check_branch
      %411 = sbr.rel (0) target = $region157
    $region156: #{_lambda_.1} parent=1 // pred_region
      %413 = dma.done [#allocation9], 256
    $region157: #{_lambda_.1} parent=1 // pred_fallthru
      _
    // Predicated region
    $region158: #{_lambda_.1} parent=1 // pred_check
      _
    $region159: #{_lambda_.1} parent=1 // pred_check_branch
      %415 = sbr.rel (0) target = $region161
    $region160: #{_lambda_.1} parent=1 // pred_region
      %417 = dma.done [#allocation9], 4096
    $region161: #{_lambda_.1} parent=1 // pred_fallthru
      _
    // Predicated region
    $region162: #{_lambda_.1} parent=1 // pred_check
      _
    $region163: #{_lambda_.1} parent=1 // pred_check_branch
      %419 = sbr.rel (0) target = $region165
    $region164: #{_lambda_.1} parent=1 // pred_region
      %421 = dma.done [#allocation12], 1024
    $region165: #{_lambda_.1} parent=1 // pred_fallthru
      _
    // Predicated region
    $region166: #{_lambda_.1} parent=1 // pred_check
      _
    $region167: #{_lambda_.1} parent=1 // pred_check_branch
      %423 = sbr.rel (0) target = $region169
    $region168: #{_lambda_.1} parent=1 // pred_region
      %425 = dma.done [#allocation12], 16
    $region169: #{_lambda_.1} parent=1 // pred_fallthru
      _
    // Predicated region
    $region170: #{_lambda_.1} parent=1 // pred_check
      _
    $region171: #{_lambda_.1} parent=1 // pred_check_branch
      %427 = sbr.rel (0) target = $region173
    $region172: #{_lambda_.1} parent=1 // pred_region
      %429 = dma.done [#allocation15], 512
    $region173: #{_lambda_.1} parent=1 // pred_fallthru
      _
    // Predicated region
    $region174: #{_lambda_.1} parent=1 // pred_check
      _
    $region175: #{_lambda_.1} parent=1 // pred_check_branch
      %431 = sbr.rel (0) target = $region177
    $region176: #{_lambda_.1} parent=1 // pred_region
      %433 = dma.done [#allocation15], 16
    $region177: #{_lambda_.1} parent=1 // pred_fallthru
      _
    // Predicated region
    $region178: #{_lambda_.1} parent=1 // pred_check
      _
    $region179: #{_lambda_.1} parent=1 // pred_check_branch
      %435 = sbr.rel (0) target = $region181
    $region180: #{_lambda_.1} parent=1 // pred_region
      %437 = dma.done [#allocation18], 512
    $region181: #{_lambda_.1} parent=1 // pred_fallthru
      _
    // Predicated region
    $region182: #{_lambda_.1} parent=1 // pred_check
      _
    $region183: #{_lambda_.1} parent=1 // pred_check_branch
      %439 = sbr.rel (0) target = $region185
    $region184: #{_lambda_.1} parent=1 // pred_region
      %441 = dma.done [#allocation18], 512
    $region185: #{_lambda_.1} parent=1 // pred_fallthru
      _
    // Predicated region
    $region186: #{_lambda_.1} parent=1 // pred_check
      _
    $region187: #{_lambda_.1} parent=1 // pred_check_branch
      %443 = sbr.rel (0) target = $region189
    $region188: #{_lambda_.1} parent=1 // pred_region
      %445 = dma.done [#allocation21], 16
    $region189: #{_lambda_.1} parent=1 // pred_fallthru
      _
    // Predicated region
    $region190: #{_lambda_.1} parent=1 // pred_check
      _
    $region191: #{_lambda_.1} parent=1 // pred_check_branch
      %447 = sbr.rel (0) target = $region193
    $region192: #{_lambda_.1} parent=1 // pred_region
      %449 = dma.done [#allocation21], 16
    $region193: #{_lambda_.1} parent=1 // pred_fallthru
      _
    // Predicated region
    $region194: #{_lambda_.1} parent=1 // pred_check
      _
    $region195: #{_lambda_.1} parent=1 // pred_check_branch
      %451 = sbr.rel (0) target = $region197
    $region196: #{_lambda_.1} parent=1 // pred_region
      %453 = dma.done [#allocation24], 16
    $region197: #{_lambda_.1} parent=1 // pred_fallthru
      _
    // Predicated region
    $region198: #{_lambda_.1} parent=1 // pred_check
      _
    $region199: #{_lambda_.1} parent=1 // pred_check_branch
      %455 = sbr.rel (0) target = $region201
    $region200: #{_lambda_.1} parent=1 // pred_region
      %457 = dma.done [#allocation24], 512
    $region201: #{_lambda_.1} parent=1 // pred_fallthru
      _
    // Predicated region
    $region202: #{_lambda_.1} parent=1 // pred_check
      _
    $region203: #{_lambda_.1} parent=1 // pred_check_branch
      %459 = sbr.rel (0) target = $region205
    $region204: #{_lambda_.1} parent=1 // pred_region
      %461 = dma.done [#allocation27], 16
    $region205: #{_lambda_.1} parent=1 // pred_fallthru
      _
    // Predicated region
    $region206: #{_lambda_.1} parent=1 // pred_check
      _
    $region207: #{_lambda_.1} parent=1 // pred_check_branch
      %463 = sbr.rel (0) target = $region209
    $region208: #{_lambda_.1} parent=1 // pred_region
      %465 = dma.done [#allocation27], 512
    $region209: #{_lambda_.1} parent=1 // pred_fallthru
      _
    // Predicated region
    $region210: #{_lambda_.1} parent=1 // pred_check
      _
    $region211: #{_lambda_.1} parent=1 // pred_check_branch
      %467 = sbr.rel (0) target = $region213
    $region212: #{_lambda_.1} parent=1 // pred_region
      %469 = dma.done [#allocation30], 512
    $region213: #{_lambda_.1} parent=1 // pred_fallthru
      _
    // Predicated region
    $region214: #{_lambda_.1} parent=1 // pred_check
      _
    $region215: #{_lambda_.1} parent=1 // pred_check_branch
      %471 = sbr.rel (0) target = $region217
    $region216: #{_lambda_.1} parent=1 // pred_region
      %473 = dma.done [#allocation30], 512
    $region217: #{_lambda_.1} parent=1 // pred_fallthru
      _
    // Predicated region
    $region218: #{_lambda_.1} parent=1 // pred_check
      _
    $region219: #{_lambda_.1} parent=1 // pred_check_branch
      %475 = sbr.rel (0) target = $region221
    $region220: #{_lambda_.1} parent=1 // pred_region
      %477 = dma.done [#allocation33], 512
    $region221: #{_lambda_.1} parent=1 // pred_fallthru
      _
    // Predicated region
    $region222: #{_lambda_.1} parent=1 // pred_check
      _
    $region223: #{_lambda_.1} parent=1 // pred_check_branch
      %479 = sbr.rel (0) target = $region225
    $region224: #{_lambda_.1} parent=1 // pred_region
      %481 = dma.done [#allocation33], 512
    $region225: #{_lambda_.1} parent=1 // pred_fallthru
      _
    // Predicated region
    $region226: #{_lambda_.1} parent=1 // pred_check
      _
    $region227: #{_lambda_.1} parent=1 // pred_check_branch
      %483 = sbr.rel (0) target = $region229
    $region228: #{_lambda_.1} parent=1 // pred_region
      %485 = dma.done [#allocation36], 512
    $region229: #{_lambda_.1} parent=1 // pred_fallthru
      _
    // Predicated region
    $region230: #{_lambda_.1} parent=1 // pred_check
      _
    $region231: #{_lambda_.1} parent=1 // pred_check_branch
      %487 = sbr.rel (0) target = $region233
    $region232: #{_lambda_.1} parent=1 // pred_region
      %489 = dma.done [#allocation36], 512
    $region233: #{_lambda_.1} parent=1 // pred_fallthru
      _
    // Predicated region
    $region234: #{_lambda_.1} parent=1 // pred_check
      _
    $region235: #{_lambda_.1} parent=1 // pred_check_branch
      %491 = sbr.rel (0) target = $region237
    $region236: #{_lambda_.1} parent=1 // pred_region
      %493 = dma.done [#allocation39], 512
    $region237: #{_lambda_.1} parent=1 // pred_fallthru
      _
    %v494 = vld [vmem:[#allocation5] sm:$0xff]
    %v495 = vld [vmem:[#allocation5 + $0x8] sm:$0xff]
    %v496 = vld [vmem:[#allocation8] sm:$0xff]
    %v497 = vld [vmem:[#allocation8 + $0x8] sm:$0xff]
    %v498 = vld [vmem:[#allocation10] sm:$0xff]
    %v499 = vld [vmem:[#allocation10 + $0x8] sm:$0xff]
    %v500 = vld [vmem:[#allocation10 + $0x10] sm:$0xff]
    %v501 = vld [vmem:[#allocation10 + $0x18] sm:$0xff]
    %v502 = vld [vmem:[#allocation10 + $0x20] sm:$0xff]
    %v503 = vld [vmem:[#allocation10 + $0x28] sm:$0xff]
    %v504 = vld [vmem:[#allocation10 + $0x30] sm:$0xff]
    %v505 = vld [vmem:[#allocation10 + $0x38] sm:$0xff]
    %v506 = vld [vmem:[#allocation10 + $0x40] sm:$0xff]
    %v507 = vld [vmem:[#allocation10 + $0x48] sm:$0xff]
    %v508 = vld [vmem:[#allocation10 + $0x50] sm:$0xff]
    %v509 = vld [vmem:[#allocation10 + $0x58] sm:$0xff]
    %v510 = vld [vmem:[#allocation10 + $0x60] sm:$0xff]
    %v511 = vld [vmem:[#allocation10 + $0x68] sm:$0xff]
    %v512 = vld [vmem:[#allocation10 + $0x70] sm:$0xff]
    %v513 = vld [vmem:[#allocation10 + $0x78] sm:$0xff]
    %v514 = vld [vmem:[#allocation10 + $0x80] sm:$0xff]
    %v515 = vld [vmem:[#allocation10 + $0x88] sm:$0xff]
    %v516 = vld [vmem:[#allocation10 + $0x90] sm:$0xff]
    %v517 = vld [vmem:[#allocation10 + $0x98] sm:$0xff]
    %v518 = vld [vmem:[#allocation10 + $0xa0] sm:$0xff]
    %v519 = vld [vmem:[#allocation10 + $0xa8] sm:$0xff]
    %v520 = vld [vmem:[#allocation10 + $0xb0] sm:$0xff]
    %v521 = vld [vmem:[#allocation10 + $0xb8] sm:$0xff]
    %v522 = vld [vmem:[#allocation10 + $0xc0] sm:$0xff]
    %v523 = vld [vmem:[#allocation10 + $0xc8] sm:$0xff]
    %v524 = vld [vmem:[#allocation10 + $0xd0] sm:$0xff]
    %v525 = vld [vmem:[#allocation10 + $0xd8] sm:$0xff]
    %v526 = vld [vmem:[#allocation10 + $0xe0] sm:$0xff]
    %v527 = vld [vmem:[#allocation10 + $0xe8] sm:$0xff]
    %v528 = vld [vmem:[#allocation10 + $0xf0] sm:$0xff]
    %v529 = vld [vmem:[#allocation10 + $0xf8] sm:$0xff]
    %v530 = vld [vmem:[#allocation11] sm:$0xff]
    %v531 = vld [vmem:[#allocation11 + $0x8] sm:$0xff]
    %v532 = vld [vmem:[#allocation11 + $0x10] sm:$0xff]
    %v533 = vld [vmem:[#allocation11 + $0x18] sm:$0xff]
    %v534 = vld [vmem:[#allocation11 + $0x20] sm:$0xff]
    %v535 = vld [vmem:[#allocation11 + $0x28] sm:$0xff]
    %v536 = vld [vmem:[#allocation11 + $0x30] sm:$0xff]
    %v537 = vld [vmem:[#allocation11 + $0x38] sm:$0xff]
    %v538 = vld [vmem:[#allocation13] sm:$0x1]
    %v539 = vld [vmem:[#allocation14] sm:$0xff]
    %v540 = vld [vmem:[#allocation14 + $0x8] sm:$0xff]
    %v541 = vld [vmem:[#allocation14 + $0x10] sm:$0xff]
    %v542 = vld [vmem:[#allocation14 + $0x18] sm:$0xff]
    %v543 = vld [vmem:[#allocation16] sm:$0x1]
    %v544 = vld [vmem:[#allocation17] sm:$0xff]
    %v545 = vld [vmem:[#allocation17 + $0x8] sm:$0xff]
    %v546 = vld [vmem:[#allocation17 + $0x10] sm:$0xff]
    %v547 = vld [vmem:[#allocation17 + $0x18] sm:$0xff]
    %v548 = vld [vmem:[#allocation19] sm:$0xff]
    %v549 = vld [vmem:[#allocation19 + $0x8] sm:$0xff]
    %v550 = vld [vmem:[#allocation19 + $0x10] sm:$0xff]
    %v551 = vld [vmem:[#allocation19 + $0x18] sm:$0xff]
    %v552 = vld [vmem:[#allocation20] sm:$0x1]
    %v553 = vld [vmem:[#allocation22] sm:$0x1]
    %v554 = vld [vmem:[#allocation23] sm:$0x1]
    %v555 = vld [vmem:[#allocation2] sm:$0x1]
    %v556 = vld [vmem:[#allocation25] sm:$0xff]
    %v557 = vld [vmem:[#allocation25 + $0x8] sm:$0xff]
    %v558 = vld [vmem:[#allocation25 + $0x10] sm:$0xff]
    %v559 = vld [vmem:[#allocation25 + $0x18] sm:$0xff]
    %v560 = vld [vmem:[#allocation26] sm:$0x1]
    %v561 = vld [vmem:[#allocation28] sm:$0xff]
    %v562 = vld [vmem:[#allocation28 + $0x8] sm:$0xff]
    %v563 = vld [vmem:[#allocation28 + $0x10] sm:$0xff]
    %v564 = vld [vmem:[#allocation28 + $0x18] sm:$0xff]
    %v565 = vld [vmem:[#allocation29] sm:$0xff]
    %v566 = vld [vmem:[#allocation29 + $0x8] sm:$0xff]
    %v567 = vld [vmem:[#allocation29 + $0x10] sm:$0xff]
    %v568 = vld [vmem:[#allocation29 + $0x18] sm:$0xff]
    %v569 = vld [vmem:[%s35] sm:$0x1]
    %v570 = vld [vmem:[%s37] sm:$0x1]
    %v571 = vld [vmem:[%s39] sm:$0x1]
    %v572 = vld [vmem:[%s41] sm:$0x1]
    %v573 = vld [vmem:[#allocation3] sm:$0x1]
    %v574 = vld [vmem:[#allocation31] sm:$0xff]
    %v575 = vld [vmem:[#allocation31 + $0x8] sm:$0xff]
    %v576 = vld [vmem:[#allocation31 + $0x10] sm:$0xff]
    %v577 = vld [vmem:[#allocation31 + $0x18] sm:$0xff]
    %v578 = vld [vmem:[%s47] sm:$0x1]
    %v579 = vld [vmem:[#allocation32] sm:$0xff]
    %v580 = vld [vmem:[#allocation32 + $0x8] sm:$0xff]
    %v581 = vld [vmem:[#allocation32 + $0x10] sm:$0xff]
    %v582 = vld [vmem:[#allocation32 + $0x18] sm:$0xff]
    %v583 = vld [vmem:[#allocation34] sm:$0xff]
    %v584 = vld [vmem:[#allocation34 + $0x8] sm:$0xff]
    %v585 = vld [vmem:[#allocation34 + $0x10] sm:$0xff]
    %v586 = vld [vmem:[#allocation34 + $0x18] sm:$0xff]
    %v587 = vld [vmem:[%s53] sm:$0x1]
    %v588 = vld [vmem:[%s55] sm:$0x1]
    %v589 = vld [vmem:[%s57] sm:$0x1]
    %v590 = vld [vmem:[%s59] sm:$0x1]
    %v591 = vld [vmem:[#allocation4] sm:$0x1]
    %v592 = vld [vmem:[#allocation35] sm:$0xff]
    %v593 = vld [vmem:[#allocation35 + $0x8] sm:$0xff]
    %v594 = vld [vmem:[#allocation35 + $0x10] sm:$0xff]
    %v595 = vld [vmem:[#allocation35 + $0x18] sm:$0xff]
    %v596 = vld [vmem:[%s65] sm:$0x1]
    %v597 = vld [vmem:[#allocation37] sm:$0xff]
    %v598 = vld [vmem:[#allocation37 + $0x8] sm:$0xff]
    %v599 = vld [vmem:[#allocation37 + $0x10] sm:$0xff]
    %v600 = vld [vmem:[#allocation37 + $0x18] sm:$0xff]
    %v601 = vld [vmem:[#allocation38] sm:$0xff]
    %v602 = vld [vmem:[#allocation38 + $0x8] sm:$0xff]
    %v603 = vld [vmem:[#allocation38 + $0x10] sm:$0xff]
    %v604 = vld [vmem:[#allocation38 + $0x18] sm:$0xff]
    %v605 = vld [vmem:[%s71] sm:$0x1]
    %v606 = vld [vmem:[%s73] sm:$0x1]
    %v608 = vperm.slane %v538, 0
    %vm610 = vcmask 523264
    %v612 = vsel %vm610, %v496, 0
    %v615 = vsel %vm610, %v497, 0
    %617 = vmatpush.msra.mxu0 0.0
    %618 = vmatpush.msra.mxu0 0.0
    %619 = vmatpush.msra.mxu0 0.0
    %620 = vmatpush.msra.mxu0 0.0
    %621 = vmatpush.msra.mxu0 0.0
    %622 = vmatpush.msra.mxu0 0.0
    %623 = vmatpush.msra.mxu0 0.0
    %624 = vmatpush.msra.mxu0 0.0
    %625 = vmatpush.msra.mxu0 %v537
    %626 = vmatpush.msra.mxu0 %v536
    %627 = vmatpush.msra.mxu0 %v535
    %628 = vmatpush.msra.mxu0 %v534
    %629 = vmatpush.msra.mxu0 %v533
    %630 = vmatpush.msra.mxu0 %v532
    %631 = vmatpush.msra.mxu0 %v531
    %632 = vmatpush.msra.mxu0 %v530
    %633 = vmatmul.f32.gmra.mxu0 %v612
    %v634 = vpop.f32.mrf.mxu0
    %v635 = vadd.f32 %v608, %v634
    %636 = vmatmul.f32.gmra.mxu0 %v615
    %v637 = vpop.f32.mrf.mxu0
    %v638 = vadd.f32 %v608, %v637
    %639 = vdwg.mxu0
    %v641 = vperm.slane %v543, 0
    %vm643 = vcmask 261120
    %v645 = vsel %vm643, %v635, 0
    %v648 = vsel %vm643, %v638, 0
    %650 = vmatpush.msra.mxu0 0.0
    %651 = vmatpush.msra.mxu0 0.0
    %652 = vmatpush.msra.mxu0 0.0
    %653 = vmatpush.msra.mxu0 0.0
    %654 = vmatpush.msra.mxu0 0.0
    %655 = vmatpush.msra.mxu0 0.0
    %656 = vmatpush.msra.mxu0 0.0
    %657 = vmatpush.msra.mxu0 0.0
    %658 = vmatpush.msra.mxu0 0.0
    %659 = vmatpush.msra.mxu0 0.0
    %660 = vmatpush.msra.mxu0 0.0
    %661 = vmatpush.msra.mxu0 0.0
    %662 = vmatpush.msra.mxu0 %v542
    %663 = vmatpush.msra.mxu0 %v541
    %664 = vmatpush.msra.mxu0 %v540
    %665 = vmatpush.msra.mxu0 %v539
    %666 = vmatmul.f32.gmra.mxu0 %v645
    %v667 = vpop.f32.mrf.mxu0
    %v668 = vadd.f32 %v641, %v667
    %669 = vmatmul.f32.gmra.mxu0 %v648
    %v670 = vpop.f32.mrf.mxu0
    %v671 = vadd.f32 %v641, %v670
    %672 = vdwg.mxu0
    %vm673 = vcmp.ge.f32.partialorder %v668, 0.0
    %vm674 = vcmp.ge.f32.partialorder %v671, 0.0
    %v675 = vmul.f32 %v668, 0.01
    %v676 = vmul.f32 %v671, 0.01
    %v677 = vsel %vm673, %v668, %v675
    %v678 = vsel %vm674, %v671, %v676
    %v680 = vperm.slane %v552, 0
    %682 = vmatpush.msra.mxu0 0.0
    %683 = vmatpush.msra.mxu0 0.0
    %684 = vmatpush.msra.mxu0 0.0
    %685 = vmatpush.msra.mxu0 0.0
    %686 = vmatpush.msra.mxu0 0.0
    %687 = vmatpush.msra.mxu0 0.0
    %688 = vmatpush.msra.mxu0 0.0
    %689 = vmatpush.msra.mxu0 0.0
    %690 = vmatpush.msra.mxu0 0.0
    %691 = vmatpush.msra.mxu0 0.0
    %692 = vmatpush.msra.mxu0 0.0
    %693 = vmatpush.msra.mxu0 0.0
    %694 = vmatpush.msra.mxu0 %v547
    %695 = vmatpush.msra.mxu0 %v546
    %696 = vmatpush.msra.mxu0 %v545
    %697 = vmatpush.msra.mxu0 %v544
    %698 = vmatmul.f32.gmra.mxu0 %v645
    %v699 = vpop.f32.mrf.mxu0
    %v700 = vadd.f32 %v680, %v699
    %701 = vmatmul.f32.gmra.mxu0 %v648
    %v702 = vpop.f32.mrf.mxu0
    %v703 = vadd.f32 %v680, %v702
    %704 = vdwg.mxu0
    %v706 = vsel %vm643, %v498, 0
    %v709 = vsel %vm643, %v499, 0
    %v712 = vsel %vm643, %v500, 0
    %v715 = vsel %vm643, %v501, 0
    %v718 = vsel %vm643, %v502, 0
    %v721 = vsel %vm643, %v503, 0
    %v724 = vsel %vm643, %v504, 0
    %v727 = vsel %vm643, %v505, 0
    %v730 = vsel %vm643, %v506, 0
    %v733 = vsel %vm643, %v507, 0
    %v736 = vsel %vm643, %v508, 0
    %v739 = vsel %vm643, %v509, 0
    %v742 = vsel %vm643, %v510, 0
    %v745 = vsel %vm643, %v511, 0
    %v748 = vsel %vm643, %v512, 0
    %v751 = vsel %vm643, %v513, 0
    %v754 = vsel %vm643, %v514, 0
    %v757 = vsel %vm643, %v515, 0
    %v760 = vsel %vm643, %v516, 0
    %v763 = vsel %vm643, %v517, 0
    %v766 = vsel %vm643, %v518, 0
    %v769 = vsel %vm643, %v519, 0
    %v772 = vsel %vm643, %v520, 0
    %v775 = vsel %vm643, %v521, 0
    %v778 = vsel %vm643, %v522, 0
    %v781 = vsel %vm643, %v523, 0
    %v784 = vsel %vm643, %v524, 0
    %v787 = vsel %vm643, %v525, 0
    %v790 = vsel %vm643, %v526, 0
    %v793 = vsel %vm643, %v527, 0
    %v796 = vsel %vm643, %v528, 0
    %v799 = vsel %vm643, %v529, 0
    %801 = vmatpush.msra.mxu0 0.0
    %802 = vmatpush.msra.mxu0 0.0
    %803 = vmatpush.msra.mxu0 0.0
    %804 = vmatpush.msra.mxu0 0.0
    %805 = vmatpush.msra.mxu0 0.0
    %806 = vmatpush.msra.mxu0 0.0
    %807 = vmatpush.msra.mxu0 0.0
    %808 = vmatpush.msra.mxu0 0.0
    %809 = vmatpush.msra.mxu0 0.0
    %810 = vmatpush.msra.mxu0 0.0
    %811 = vmatpush.msra.mxu0 0.0
    %812 = vmatpush.msra.mxu0 0.0
    %813 = vmatpush.msra.mxu0 %v551
    %814 = vmatpush.msra.mxu0 %v550
    %815 = vmatpush.msra.mxu0 %v549
    %816 = vmatpush.msra.mxu0 %v548
    %817 = vmatmul.f32.gmra.mxu0 %v706
    %v818 = vpop.f32.mrf.mxu0
    %v819 = vadd.f32 0.0, %v818
    %820 = vmatmul.f32.gmra.mxu0 %v709
    %v821 = vpop.f32.mrf.mxu0
    %v822 = vadd.f32 0.0, %v821
    %823 = vmatmul.f32.gmra.mxu0 %v712
    %v824 = vpop.f32.mrf.mxu0
    %v825 = vadd.f32 0.0, %v824
    %826 = vmatmul.f32.gmra.mxu0 %v715
    %v827 = vpop.f32.mrf.mxu0
    %v828 = vadd.f32 0.0, %v827
    %829 = vmatmul.f32.gmra.mxu0 %v718
    %v830 = vpop.f32.mrf.mxu0
    %v831 = vadd.f32 0.0, %v830
    %832 = vmatmul.f32.gmra.mxu0 %v721
    %v833 = vpop.f32.mrf.mxu0
    %v834 = vadd.f32 0.0, %v833
    %835 = vmatmul.f32.gmra.mxu0 %v724
    %v836 = vpop.f32.mrf.mxu0
    %v837 = vadd.f32 0.0, %v836
    %838 = vmatmul.f32.gmra.mxu0 %v727
    %v839 = vpop.f32.mrf.mxu0
    %v840 = vadd.f32 0.0, %v839
    %841 = vmatmul.f32.gmra.mxu0 %v730
    %v842 = vpop.f32.mrf.mxu0
    %v843 = vadd.f32 0.0, %v842
    %844 = vmatmul.f32.gmra.mxu0 %v733
    %v845 = vpop.f32.mrf.mxu0
    %v846 = vadd.f32 0.0, %v845
    %847 = vmatmul.f32.gmra.mxu0 %v736
    %v848 = vpop.f32.mrf.mxu0
    %v849 = vadd.f32 0.0, %v848
    %850 = vmatmul.f32.gmra.mxu0 %v739
    %v851 = vpop.f32.mrf.mxu0
    %v852 = vadd.f32 0.0, %v851
    %853 = vmatmul.f32.gmra.mxu0 %v742
    %v854 = vpop.f32.mrf.mxu0
    %v855 = vadd.f32 0.0, %v854
    %856 = vmatmul.f32.gmra.mxu0 %v745
    %v857 = vpop.f32.mrf.mxu0
    %v858 = vadd.f32 0.0, %v857
    %859 = vmatmul.f32.gmra.mxu0 %v748
    %v860 = vpop.f32.mrf.mxu0
    %v861 = vadd.f32 0.0, %v860
    %862 = vmatmul.f32.gmra.mxu0 %v751
    %v863 = vpop.f32.mrf.mxu0
    %v864 = vadd.f32 0.0, %v863
    %865 = vmatmul.f32.gmra.mxu0 %v754
    %v866 = vpop.f32.mrf.mxu0
    %v867 = vadd.f32 0.0, %v866
    %868 = vmatmul.f32.gmra.mxu0 %v757
    %v869 = vpop.f32.mrf.mxu0
    %v870 = vadd.f32 0.0, %v869
    %871 = vmatmul.f32.gmra.mxu0 %v760
    %v872 = vpop.f32.mrf.mxu0
    %v873 = vadd.f32 0.0, %v872
    %874 = vmatmul.f32.gmra.mxu0 %v763
    %v875 = vpop.f32.mrf.mxu0
    %v876 = vadd.f32 0.0, %v875
    %877 = vmatmul.f32.gmra.mxu0 %v766
    %v878 = vpop.f32.mrf.mxu0
    %v879 = vadd.f32 0.0, %v878
    %880 = vmatmul.f32.gmra.mxu0 %v769
    %v881 = vpop.f32.mrf.mxu0
    %v882 = vadd.f32 0.0, %v881
    %883 = vmatmul.f32.gmra.mxu0 %v772
    %v884 = vpop.f32.mrf.mxu0
    %v885 = vadd.f32 0.0, %v884
    %886 = vmatmul.f32.gmra.mxu0 %v775
    %v887 = vpop.f32.mrf.mxu0
    %v888 = vadd.f32 0.0, %v887
    %889 = vmatmul.f32.gmra.mxu0 %v778
    %v890 = vpop.f32.mrf.mxu0
    %v891 = vadd.f32 0.0, %v890
    %892 = vmatmul.f32.gmra.mxu0 %v781
    %v893 = vpop.f32.mrf.mxu0
    %v894 = vadd.f32 0.0, %v893
    %895 = vmatmul.f32.gmra.mxu0 %v784
    %v896 = vpop.f32.mrf.mxu0
    %v897 = vadd.f32 0.0, %v896
    %898 = vmatmul.f32.gmra.mxu0 %v787
    %v899 = vpop.f32.mrf.mxu0
    %v900 = vadd.f32 0.0, %v899
    %901 = vmatmul.f32.gmra.mxu0 %v790
    %v902 = vpop.f32.mrf.mxu0
    %v903 = vadd.f32 0.0, %v902
    %904 = vmatmul.f32.gmra.mxu0 %v793
    %v905 = vpop.f32.mrf.mxu0
    %v906 = vadd.f32 0.0, %v905
    %907 = vmatmul.f32.gmra.mxu0 %v796
    %v908 = vpop.f32.mrf.mxu0
    %v909 = vadd.f32 0.0, %v908
    %910 = vmatmul.f32.gmra.mxu0 %v799
    %v911 = vpop.f32.mrf.mxu0
    %v912 = vadd.f32 0.0, %v911
    %913 = vdwg.mxu0
    %v914 = vadd.f32 %v819, %v700
    %v915 = vadd.f32 %v822, %v703
    %v916 = vadd.f32 %v825, %v700
    %v917 = vadd.f32 %v828, %v703
    %v918 = vadd.f32 %v831, %v700
    %v919 = vadd.f32 %v834, %v703
    %v920 = vadd.f32 %v837, %v700
    %v921 = vadd.f32 %v840, %v703
    %v922 = vadd.f32 %v843, %v700
    %v923 = vadd.f32 %v846, %v703
    %v924 = vadd.f32 %v849, %v700
    %v925 = vadd.f32 %v852, %v703
    %v926 = vadd.f32 %v855, %v700
    %v927 = vadd.f32 %v858, %v703
    %v928 = vadd.f32 %v861, %v700
    %v929 = vadd.f32 %v864, %v703
    %v930 = vadd.f32 %v867, %v700
    %v931 = vadd.f32 %v870, %v703
    %v932 = vadd.f32 %v873, %v700
    %v933 = vadd.f32 %v876, %v703
    %v934 = vadd.f32 %v879, %v700
    %v935 = vadd.f32 %v882, %v703
    %v936 = vadd.f32 %v885, %v700
    %v937 = vadd.f32 %v888, %v703
    %v938 = vadd.f32 %v891, %v700
    %v939 = vadd.f32 %v894, %v703
    %v940 = vadd.f32 %v897, %v700
    %v941 = vadd.f32 %v900, %v703
    %v942 = vadd.f32 %v903, %v700
    %v943 = vadd.f32 %v906, %v703
    %v944 = vadd.f32 %v909, %v700
    %v945 = vadd.f32 %v912, %v703
    %vm946 = vcmp.ge.f32.partialorder %v914, 0.0
    %vm947 = vcmp.ge.f32.partialorder %v915, 0.0
    %vm948 = vcmp.ge.f32.partialorder %v916, 0.0
    %vm949 = vcmp.ge.f32.partialorder %v917, 0.0
    %vm950 = vcmp.ge.f32.partialorder %v918, 0.0
    %vm951 = vcmp.ge.f32.partialorder %v919, 0.0
    %vm952 = vcmp.ge.f32.partialorder %v920, 0.0
    %vm953 = vcmp.ge.f32.partialorder %v921, 0.0
    %vm954 = vcmp.ge.f32.partialorder %v922, 0.0
    %vm955 = vcmp.ge.f32.partialorder %v923, 0.0
    %vm956 = vcmp.ge.f32.partialorder %v924, 0.0
    %vm957 = vcmp.ge.f32.partialorder %v925, 0.0
    %vm958 = vcmp.ge.f32.partialorder %v926, 0.0
    %vm959 = vcmp.ge.f32.partialorder %v927, 0.0
    %vm960 = vcmp.ge.f32.partialorder %v928, 0.0
    %vm961 = vcmp.ge.f32.partialorder %v929, 0.0
    %vm962 = vcmp.ge.f32.partialorder %v930, 0.0
    %vm963 = vcmp.ge.f32.partialorder %v931, 0.0
    %vm964 = vcmp.ge.f32.partialorder %v932, 0.0
    %vm965 = vcmp.ge.f32.partialorder %v933, 0.0
    %vm966 = vcmp.ge.f32.partialorder %v934, 0.0
    %vm967 = vcmp.ge.f32.partialorder %v935, 0.0
    %vm968 = vcmp.ge.f32.partialorder %v936, 0.0
    %vm969 = vcmp.ge.f32.partialorder %v937, 0.0
    %vm970 = vcmp.ge.f32.partialorder %v938, 0.0
    %vm971 = vcmp.ge.f32.partialorder %v939, 0.0
    %vm972 = vcmp.ge.f32.partialorder %v940, 0.0
    %vm973 = vcmp.ge.f32.partialorder %v941, 0.0
    %vm974 = vcmp.ge.f32.partialorder %v942, 0.0
    %vm975 = vcmp.ge.f32.partialorder %v943, 0.0
    %vm976 = vcmp.ge.f32.partialorder %v944, 0.0
    %vm977 = vcmp.ge.f32.partialorder %v945, 0.0
    %v978 = vmul.f32 %v914, 0.01
    %v979 = vmul.f32 %v915, 0.01
    %v980 = vmul.f32 %v916, 0.01
    %v981 = vmul.f32 %v917, 0.01
    %v982 = vmul.f32 %v918, 0.01
    %v983 = vmul.f32 %v919, 0.01
    %v984 = vmul.f32 %v920, 0.01
    %v985 = vmul.f32 %v921, 0.01
    %v986 = vmul.f32 %v922, 0.01
    %v987 = vmul.f32 %v923, 0.01
    %v988 = vmul.f32 %v924, 0.01
    %v989 = vmul.f32 %v925, 0.01
    %v990 = vmul.f32 %v926, 0.01
    %v991 = vmul.f32 %v927, 0.01
    %v992 = vmul.f32 %v928, 0.01
    %v993 = vmul.f32 %v929, 0.01
    %v994 = vmul.f32 %v930, 0.01
    %v995 = vmul.f32 %v931, 0.01
    %v996 = vmul.f32 %v932, 0.01
    %v997 = vmul.f32 %v933, 0.01
    %v998 = vmul.f32 %v934, 0.01
    %v999 = vmul.f32 %v935, 0.01
    %v1000 = vmul.f32 %v936, 0.01
    %v1001 = vmul.f32 %v937, 0.01
    %v1002 = vmul.f32 %v938, 0.01
    %v1003 = vmul.f32 %v939, 0.01
    %v1004 = vmul.f32 %v940, 0.01
    %v1005 = vmul.f32 %v941, 0.01
    %v1006 = vmul.f32 %v942, 0.01
    %v1007 = vmul.f32 %v943, 0.01
    %v1008 = vmul.f32 %v944, 0.01
    %v1009 = vmul.f32 %v945, 0.01
    %v1010 = vsel %vm946, %v914, %v978
    %v1011 = vsel %vm947, %v915, %v979
    %v1012 = vsel %vm948, %v916, %v980
    %v1013 = vsel %vm949, %v917, %v981
    %v1014 = vsel %vm950, %v918, %v982
    %v1015 = vsel %vm951, %v919, %v983
    %v1016 = vsel %vm952, %v920, %v984
    %v1017 = vsel %vm953, %v921, %v985
    %v1018 = vsel %vm954, %v922, %v986
    %v1019 = vsel %vm955, %v923, %v987
    %v1020 = vsel %vm956, %v924, %v988
    %v1021 = vsel %vm957, %v925, %v989
    %v1022 = vsel %vm958, %v926, %v990
    %v1023 = vsel %vm959, %v927, %v991
    %v1024 = vsel %vm960, %v928, %v992
    %v1025 = vsel %vm961, %v929, %v993
    %v1026 = vsel %vm962, %v930, %v994
    %v1027 = vsel %vm963, %v931, %v995
    %v1028 = vsel %vm964, %v932, %v996
    %v1029 = vsel %vm965, %v933, %v997
    %v1030 = vsel %vm966, %v934, %v998
    %v1031 = vsel %vm967, %v935, %v999
    %v1032 = vsel %vm968, %v936, %v1000
    %v1033 = vsel %vm969, %v937, %v1001
    %v1034 = vsel %vm970, %v938, %v1002
    %v1035 = vsel %vm971, %v939, %v1003
    %v1036 = vsel %vm972, %v940, %v1004
    %v1037 = vsel %vm973, %v941, %v1005
    %v1038 = vsel %vm974, %v942, %v1006
    %v1039 = vsel %vm975, %v943, %v1007
    %v1040 = vsel %vm976, %v944, %v1008
    %v1041 = vsel %vm977, %v945, %v1009
    %v1043 = vperm.slane %v553, 0
    %v1045 = vmul.f32 %v677, %v1043
    %v1046 = vmul.f32 %v678, %v1043
    %v1047 = vsel %vm643, %v1045, 0.0
    %1048 = vadd.xlane.f32.xlu0 %v1047
    %v1049 = vpop.xlane.xlu0 %1048
    %v1050 = vsel %vm643, %v1046, 0.0
    %1051 = vadd.xlane.f32.xlu0 %v1050
    %v1052 = vpop.xlane.xlu0 %1051
    %v1054 = vperm.slane %v555, 0
    %v1056 = vadd.f32 %v1049, %v1054
    %v1057 = vadd.f32 %v1052, %v1054
    %v1059 = vperm.slane %v554, 0
    %v1061 = vmul.f32 %v1010, %v1059
    %v1062 = vmul.f32 %v1011, %v1059
    %v1063 = vmul.f32 %v1012, %v1059
    %v1064 = vmul.f32 %v1013, %v1059
    %v1065 = vmul.f32 %v1014, %v1059
    %v1066 = vmul.f32 %v1015, %v1059
    %v1067 = vmul.f32 %v1016, %v1059
    %v1068 = vmul.f32 %v1017, %v1059
    %v1069 = vmul.f32 %v1018, %v1059
    %v1070 = vmul.f32 %v1019, %v1059
    %v1071 = vmul.f32 %v1020, %v1059
    %v1072 = vmul.f32 %v1021, %v1059
    %v1073 = vmul.f32 %v1022, %v1059
    %v1074 = vmul.f32 %v1023, %v1059
    %v1075 = vmul.f32 %v1024, %v1059
    %v1076 = vmul.f32 %v1025, %v1059
    %v1077 = vmul.f32 %v1026, %v1059
    %v1078 = vmul.f32 %v1027, %v1059
    %v1079 = vmul.f32 %v1028, %v1059
    %v1080 = vmul.f32 %v1029, %v1059
    %v1081 = vmul.f32 %v1030, %v1059
    %v1082 = vmul.f32 %v1031, %v1059
    %v1083 = vmul.f32 %v1032, %v1059
    %v1084 = vmul.f32 %v1033, %v1059
    %v1085 = vmul.f32 %v1034, %v1059
    %v1086 = vmul.f32 %v1035, %v1059
    %v1087 = vmul.f32 %v1036, %v1059
    %v1088 = vmul.f32 %v1037, %v1059
    %v1089 = vmul.f32 %v1038, %v1059
    %v1090 = vmul.f32 %v1039, %v1059
    %v1091 = vmul.f32 %v1040, %v1059
    %v1092 = vmul.f32 %v1041, %v1059
    %v1093 = vsel %vm643, %v1061, 0.0
    %1094 = vadd.xlane.f32.xlu0 %v1093
    %v1095 = vpop.xlane.xlu0 %1094
    %v1096 = vsel %vm643, %v1062, 0.0
    %1097 = vadd.xlane.f32.xlu0 %v1096
    %v1098 = vpop.xlane.xlu0 %1097
    %v1099 = vsel %vm643, %v1063, 0.0
    %1100 = vadd.xlane.f32.xlu0 %v1099
    %v1101 = vpop.xlane.xlu0 %1100
    %v1102 = vsel %vm643, %v1064, 0.0
    %1103 = vadd.xlane.f32.xlu0 %v1102
    %v1104 = vpop.xlane.xlu0 %1103
    %v1105 = vsel %vm643, %v1065, 0.0
    %1106 = vadd.xlane.f32.xlu0 %v1105
    %v1107 = vpop.xlane.xlu0 %1106
    %v1108 = vsel %vm643, %v1066, 0.0
    %1109 = vadd.xlane.f32.xlu0 %v1108
    %v1110 = vpop.xlane.xlu0 %1109
    %v1111 = vsel %vm643, %v1067, 0.0
    %1112 = vadd.xlane.f32.xlu0 %v1111
    %v1113 = vpop.xlane.xlu0 %1112
    %v1114 = vsel %vm643, %v1068, 0.0
    %1115 = vadd.xlane.f32.xlu0 %v1114
    %v1116 = vpop.xlane.xlu0 %1115
    %v1117 = vsel %vm643, %v1069, 0.0
    %1118 = vadd.xlane.f32.xlu0 %v1117
    %v1119 = vpop.xlane.xlu0 %1118
    %v1120 = vsel %vm643, %v1070, 0.0
    %1121 = vadd.xlane.f32.xlu0 %v1120
    %v1122 = vpop.xlane.xlu0 %1121
    %v1123 = vsel %vm643, %v1071, 0.0
    %1124 = vadd.xlane.f32.xlu0 %v1123
    %v1125 = vpop.xlane.xlu0 %1124
    %v1126 = vsel %vm643, %v1072, 0.0
    %1127 = vadd.xlane.f32.xlu0 %v1126
    %v1128 = vpop.xlane.xlu0 %1127
    %v1129 = vsel %vm643, %v1073, 0.0
    %1130 = vadd.xlane.f32.xlu0 %v1129
    %v1131 = vpop.xlane.xlu0 %1130
    %v1132 = vsel %vm643, %v1074, 0.0
    %1133 = vadd.xlane.f32.xlu0 %v1132
    %v1134 = vpop.xlane.xlu0 %1133
    %v1135 = vsel %vm643, %v1075, 0.0
    %1136 = vadd.xlane.f32.xlu0 %v1135
    %v1137 = vpop.xlane.xlu0 %1136
    %v1138 = vsel %vm643, %v1076, 0.0
    %1139 = vadd.xlane.f32.xlu0 %v1138
    %v1140 = vpop.xlane.xlu0 %1139
    %v1141 = vsel %vm643, %v1077, 0.0
    %1142 = vadd.xlane.f32.xlu0 %v1141
    %v1143 = vpop.xlane.xlu0 %1142
    %v1144 = vsel %vm643, %v1078, 0.0
    %1145 = vadd.xlane.f32.xlu0 %v1144
    %v1146 = vpop.xlane.xlu0 %1145
    %v1147 = vsel %vm643, %v1079, 0.0
    %1148 = vadd.xlane.f32.xlu0 %v1147
    %v1149 = vpop.xlane.xlu0 %1148
    %v1150 = vsel %vm643, %v1080, 0.0
    %1151 = vadd.xlane.f32.xlu0 %v1150
    %v1152 = vpop.xlane.xlu0 %1151
    %v1153 = vsel %vm643, %v1081, 0.0
    %1154 = vadd.xlane.f32.xlu0 %v1153
    %v1155 = vpop.xlane.xlu0 %1154
    %v1156 = vsel %vm643, %v1082, 0.0
    %1157 = vadd.xlane.f32.xlu0 %v1156
    %v1158 = vpop.xlane.xlu0 %1157
    %v1159 = vsel %vm643, %v1083, 0.0
    %1160 = vadd.xlane.f32.xlu0 %v1159
    %v1161 = vpop.xlane.xlu0 %1160
    %v1162 = vsel %vm643, %v1084, 0.0
    %1163 = vadd.xlane.f32.xlu0 %v1162
    %v1164 = vpop.xlane.xlu0 %1163
    %v1165 = vsel %vm643, %v1085, 0.0
    %1166 = vadd.xlane.f32.xlu0 %v1165
    %v1167 = vpop.xlane.xlu0 %1166
    %v1168 = vsel %vm643, %v1086, 0.0
    %1169 = vadd.xlane.f32.xlu0 %v1168
    %v1170 = vpop.xlane.xlu0 %1169
    %v1171 = vsel %vm643, %v1087, 0.0
    %1172 = vadd.xlane.f32.xlu0 %v1171
    %v1173 = vpop.xlane.xlu0 %1172
    %v1174 = vsel %vm643, %v1088, 0.0
    %1175 = vadd.xlane.f32.xlu0 %v1174
    %v1176 = vpop.xlane.xlu0 %1175
    %v1177 = vsel %vm643, %v1089, 0.0
    %1178 = vadd.xlane.f32.xlu0 %v1177
    %v1179 = vpop.xlane.xlu0 %1178
    %v1180 = vsel %vm643, %v1090, 0.0
    %1181 = vadd.xlane.f32.xlu0 %v1180
    %v1182 = vpop.xlane.xlu0 %1181
    %v1183 = vsel %vm643, %v1091, 0.0
    %1184 = vadd.xlane.f32.xlu0 %v1183
    %v1185 = vpop.xlane.xlu0 %1184
    %v1186 = vsel %vm643, %v1092, 0.0
    %1187 = vadd.xlane.f32.xlu0 %v1186
    %v1188 = vpop.xlane.xlu0 %1187
    %1190 = vset.pattern.permute.xlu0 0
    %1191 = vperm.xlu0 %1190, %v1056
    %v1192 = vpop.permute.xlu0 %1191
    %1195 = vset.pattern.permute.xlu0 0
    %1196 = vperm.xlu0 %1195, %v1057
    %v1197 = vpop.permute.xlu0 %1196
    %v1231 = vlaneseq
    %v1232 = vand.u32 %v1231, 127
    %v1233 = vperm.slane %v1095, %v1232
    %v1234 = vadd.s32 %v1232, 4294967288
    %v1235 = vperm.slane %v1098, %v1234
    %vm1236 = vcmask 130112
    %v1237 = vsel %vm1236, %v1235, %v1233
    %v1238 = vperm.slane %v1101, %v1232
    %v1239 = vperm.slane %v1104, %v1234
    %v1240 = vsel %vm1236, %v1239, %v1238
    %v1241 = vperm.slane %v1107, %v1232
    %v1242 = vperm.slane %v1110, %v1234
    %v1243 = vsel %vm1236, %v1242, %v1241
    %v1244 = vperm.slane %v1113, %v1232
    %v1245 = vperm.slane %v1116, %v1234
    %v1246 = vsel %vm1236, %v1245, %v1244
    %v1247 = vperm.slane %v1119, %v1232
    %v1248 = vperm.slane %v1122, %v1234
    %v1249 = vsel %vm1236, %v1248, %v1247
    %v1250 = vperm.slane %v1125, %v1232
    %v1251 = vperm.slane %v1128, %v1234
    %v1252 = vsel %vm1236, %v1251, %v1250
    %v1253 = vperm.slane %v1131, %v1232
    %v1254 = vperm.slane %v1134, %v1234
    %v1255 = vsel %vm1236, %v1254, %v1253
    %v1256 = vperm.slane %v1137, %v1232
    %v1257 = vperm.slane %v1140, %v1234
    %v1258 = vsel %vm1236, %v1257, %v1256
    %v1259 = vperm.slane %v1143, %v1232
    %v1260 = vperm.slane %v1146, %v1234
    %v1261 = vsel %vm1236, %v1260, %v1259
    %v1262 = vperm.slane %v1149, %v1232
    %v1263 = vperm.slane %v1152, %v1234
    %v1264 = vsel %vm1236, %v1263, %v1262
    %v1265 = vperm.slane %v1155, %v1232
    %v1266 = vperm.slane %v1158, %v1234
    %v1267 = vsel %vm1236, %v1266, %v1265
    %v1268 = vperm.slane %v1161, %v1232
    %v1269 = vperm.slane %v1164, %v1234
    %v1270 = vsel %vm1236, %v1269, %v1268
    %v1271 = vperm.slane %v1167, %v1232
    %v1272 = vperm.slane %v1170, %v1234
    %v1273 = vsel %vm1236, %v1272, %v1271
    %v1274 = vperm.slane %v1173, %v1232
    %v1275 = vperm.slane %v1176, %v1234
    %v1276 = vsel %vm1236, %v1275, %v1274
    %v1277 = vperm.slane %v1179, %v1232
    %v1278 = vperm.slane %v1182, %v1234
    %v1279 = vsel %vm1236, %v1278, %v1277
    %v1280 = vperm.slane %v1185, %v1232
    %v1281 = vperm.slane %v1188, %v1234
    %v1282 = vsel %vm1236, %v1281, %v1280
    %vm1283 = vcmask 1041409
    %v1284 = vsel %vm1283, %v1240, %v1237
    %vm1285 = vcmask 1042434
    %v1286 = vsel %vm1285, %v1243, %v1284
    %vm1287 = vcmask 1043459
    %v1288 = vsel %vm1287, %v1246, %v1286
    %vm1289 = vcmask 1044484
    %v1290 = vsel %vm1289, %v1249, %v1288
    %vm1291 = vcmask 1045509
    %v1292 = vsel %vm1291, %v1252, %v1290
    %vm1293 = vcmask 1046534
    %v1294 = vsel %vm1293, %v1255, %v1292
    %vm1295 = vcmask 1047559
    %v1296 = vsel %vm1295, %v1258, %v1294
    %v1297 = vsel %vm1283, %v1264, %v1261
    %v1298 = vsel %vm1285, %v1267, %v1297
    %v1299 = vsel %vm1287, %v1270, %v1298
    %v1300 = vsel %vm1289, %v1273, %v1299
    %v1301 = vsel %vm1291, %v1276, %v1300
    %v1302 = vsel %vm1293, %v1279, %v1301
    %v1303 = vsel %vm1295, %v1282, %v1302
    %v1306 = vadd.f32 %v1192, %v1296
    %v1307 = vadd.f32 %v1197, %v1303
    %vm1308 = vcmp.ge.f32.partialorder %v1306, 0.0
    %vm1309 = vcmp.ge.f32.partialorder %v1307, 0.0
    %v1310 = vmul.f32 %v1306, 0.01
    %v1311 = vmul.f32 %v1307, 0.01
    %v1312 = vsel %vm1308, %v1306, %v1310
    %v1313 = vsel %vm1309, %v1307, %v1311
    %vm1314 = vcmp.gt.f32.partialorder %v494, 0.0
    %vm1315 = vcmp.gt.f32.partialorder %v495, 0.0
    %v1316 = vsel %vm1314, %v1312, -1e+30
    %v1317 = vsel %vm1315, %v1313, -1e+30
    %vm1318 = vcmask 130048
    %v1319 = vsel %vm1318, %v1316, -inf
    %1320 = vmax.xlane.f32.xlu0 %v1319
    %v1321 = vpop.xlane.xlu0 %1320
    %v1322 = vsel %vm1318, %v1317, -inf
    %1323 = vmax.xlane.f32.xlu0 %v1322
    %v1324 = vpop.xlane.xlu0 %1323
    %v1325 = vsub.f32 %v1316, %v1321
    %v1326 = vsub.f32 %v1317, %v1324
    %v1327 = vmul.f32 %v1325, 1.442695
    %v1328 = vpow.pop %v1327
    %v1329 = vmul.f32 %v1326, 1.442695
    %v1330 = vpow.pop %v1329
    %v1331 = vsel %vm1314, %v1328, 0.0
    %v1332 = vsel %vm1315, %v1330, 0.0
    %v1333 = vsel %vm1318, %v1331, 0.0
    %1334 = vadd.xlane.f32.xlu0 %v1333
    %v1335 = vpop.xlane.xlu0 %1334
    %v1336 = vsel %vm1318, %v1332, 0.0
    %1337 = vadd.xlane.f32.xlu0 %v1336
    %v1338 = vpop.xlane.xlu0 %1337
    %v1339 = vmax.f32 %v1335, 1e-12
    %v1340 = vmax.f32 %v1338, 1e-12
    %v1341 = vrcp.pop %v1339
    %v1342 = vrcp.pop %v1340
    %v1343 = vmul.f32 %v1331, %v1341
    %v1344 = vmul.f32 %v1332, %v1342
    %v1346 = vperm.slane %v560, 0
    %v1349 = vsel %vm643, %v1010, 0
    %v1352 = vsel %vm643, %v1011, 0
    %v1355 = vsel %vm643, %v1012, 0
    %v1358 = vsel %vm643, %v1013, 0
    %v1361 = vsel %vm643, %v1014, 0
    %v1364 = vsel %vm643, %v1015, 0
    %v1367 = vsel %vm643, %v1016, 0
    %v1370 = vsel %vm643, %v1017, 0
    %v1373 = vsel %vm643, %v1018, 0
    %v1376 = vsel %vm643, %v1019, 0
    %v1379 = vsel %vm643, %v1020, 0
    %v1382 = vsel %vm643, %v1021, 0
    %v1385 = vsel %vm643, %v1022, 0
    %v1388 = vsel %vm643, %v1023, 0
    %v1391 = vsel %vm643, %v1024, 0
    %v1394 = vsel %vm643, %v1025, 0
    %v1397 = vsel %vm643, %v1026, 0
    %v1400 = vsel %vm643, %v1027, 0
    %v1403 = vsel %vm643, %v1028, 0
    %v1406 = vsel %vm643, %v1029, 0
    %v1409 = vsel %vm643, %v1030, 0
    %v1412 = vsel %vm643, %v1031, 0
    %v1415 = vsel %vm643, %v1032, 0
    %v1418 = vsel %vm643, %v1033, 0
    %v1421 = vsel %vm643, %v1034, 0
    %v1424 = vsel %vm643, %v1035, 0
    %v1427 = vsel %vm643, %v1036, 0
    %v1430 = vsel %vm643, %v1037, 0
    %v1433 = vsel %vm643, %v1038, 0
    %v1436 = vsel %vm643, %v1039, 0
    %v1439 = vsel %vm643, %v1040, 0
    %v1442 = vsel %vm643, %v1041, 0
    %1444 = vmatpush.msra.mxu0 0.0
    %1445 = vmatpush.msra.mxu0 0.0
    %1446 = vmatpush.msra.mxu0 0.0
    %1447 = vmatpush.msra.mxu0 0.0
    %1448 = vmatpush.msra.mxu0 0.0
    %1449 = vmatpush.msra.mxu0 0.0
    %1450 = vmatpush.msra.mxu0 0.0
    %1451 = vmatpush.msra.mxu0 0.0
    %1452 = vmatpush.msra.mxu0 0.0
    %1453 = vmatpush.msra.mxu0 0.0
    %1454 = vmatpush.msra.mxu0 0.0
    %1455 = vmatpush.msra.mxu0 0.0
    %1456 = vmatpush.msra.mxu0 %v559
    %1457 = vmatpush.msra.mxu0 %v558
    %1458 = vmatpush.msra.mxu0 %v557
    %1459 = vmatpush.msra.mxu0 %v556
    %1460 = vmatmul.f32.gmra.mxu0 %v1349
    %v1461 = vpop.f32.mrf.mxu0
    %v1462 = vadd.f32 %v1346, %v1461
    %1463 = vmatmul.f32.gmra.mxu0 %v1352
    %v1464 = vpop.f32.mrf.mxu0
    %v1465 = vadd.f32 %v1346, %v1464
    %1466 = vmatmul.f32.gmra.mxu0 %v1355
    %v1467 = vpop.f32.mrf.mxu0
    %v1468 = vadd.f32 %v1346, %v1467
    %1469 = vmatmul.f32.gmra.mxu0 %v1358
    %v1470 = vpop.f32.mrf.mxu0
    %v1471 = vadd.f32 %v1346, %v1470
    %1472 = vmatmul.f32.gmra.mxu0 %v1361
    %v1473 = vpop.f32.mrf.mxu0
    %v1474 = vadd.f32 %v1346, %v1473
    %1475 = vmatmul.f32.gmra.mxu0 %v1364
    %v1476 = vpop.f32.mrf.mxu0
    %v1477 = vadd.f32 %v1346, %v1476
    %1478 = vmatmul.f32.gmra.mxu0 %v1367
    %v1479 = vpop.f32.mrf.mxu0
    %v1480 = vadd.f32 %v1346, %v1479
    %1481 = vmatmul.f32.gmra.mxu0 %v1370
    %v1482 = vpop.f32.mrf.mxu0
    %v1483 = vadd.f32 %v1346, %v1482
    %1484 = vmatmul.f32.gmra.mxu0 %v1373
    %v1485 = vpop.f32.mrf.mxu0
    %v1486 = vadd.f32 %v1346, %v1485
    %1487 = vmatmul.f32.gmra.mxu0 %v1376
    %v1488 = vpop.f32.mrf.mxu0
    %v1489 = vadd.f32 %v1346, %v1488
    %1490 = vmatmul.f32.gmra.mxu0 %v1379
    %v1491 = vpop.f32.mrf.mxu0
    %v1492 = vadd.f32 %v1346, %v1491
    %1493 = vmatmul.f32.gmra.mxu0 %v1382
    %v1494 = vpop.f32.mrf.mxu0
    %v1495 = vadd.f32 %v1346, %v1494
    %1496 = vmatmul.f32.gmra.mxu0 %v1385
    %v1497 = vpop.f32.mrf.mxu0
    %v1498 = vadd.f32 %v1346, %v1497
    %1499 = vmatmul.f32.gmra.mxu0 %v1388
    %v1500 = vpop.f32.mrf.mxu0
    %v1501 = vadd.f32 %v1346, %v1500
    %1502 = vmatmul.f32.gmra.mxu0 %v1391
    %v1503 = vpop.f32.mrf.mxu0
    %v1504 = vadd.f32 %v1346, %v1503
    %1505 = vmatmul.f32.gmra.mxu0 %v1394
    %v1506 = vpop.f32.mrf.mxu0
    %v1507 = vadd.f32 %v1346, %v1506
    %1508 = vmatmul.f32.gmra.mxu0 %v1397
    %v1509 = vpop.f32.mrf.mxu0
    %v1510 = vadd.f32 %v1346, %v1509
    %1511 = vmatmul.f32.gmra.mxu0 %v1400
    %v1512 = vpop.f32.mrf.mxu0
    %v1513 = vadd.f32 %v1346, %v1512
    %1514 = vmatmul.f32.gmra.mxu0 %v1403
    %v1515 = vpop.f32.mrf.mxu0
    %v1516 = vadd.f32 %v1346, %v1515
    %1517 = vmatmul.f32.gmra.mxu0 %v1406
    %v1518 = vpop.f32.mrf.mxu0
    %v1519 = vadd.f32 %v1346, %v1518
    %1520 = vmatmul.f32.gmra.mxu0 %v1409
    %v1521 = vpop.f32.mrf.mxu0
    %v1522 = vadd.f32 %v1346, %v1521
    %1523 = vmatmul.f32.gmra.mxu0 %v1412
    %v1524 = vpop.f32.mrf.mxu0
    %v1525 = vadd.f32 %v1346, %v1524
    %1526 = vmatmul.f32.gmra.mxu0 %v1415
    %v1527 = vpop.f32.mrf.mxu0
    %v1528 = vadd.f32 %v1346, %v1527
    %1529 = vmatmul.f32.gmra.mxu0 %v1418
    %v1530 = vpop.f32.mrf.mxu0
    %v1531 = vadd.f32 %v1346, %v1530
    %1532 = vmatmul.f32.gmra.mxu0 %v1421
    %v1533 = vpop.f32.mrf.mxu0
    %v1534 = vadd.f32 %v1346, %v1533
    %1535 = vmatmul.f32.gmra.mxu0 %v1424
    %v1536 = vpop.f32.mrf.mxu0
    %v1537 = vadd.f32 %v1346, %v1536
    %1538 = vmatmul.f32.gmra.mxu0 %v1427
    %v1539 = vpop.f32.mrf.mxu0
    %v1540 = vadd.f32 %v1346, %v1539
    %1541 = vmatmul.f32.gmra.mxu0 %v1430
    %v1542 = vpop.f32.mrf.mxu0
    %v1543 = vadd.f32 %v1346, %v1542
    %1544 = vmatmul.f32.gmra.mxu0 %v1433
    %v1545 = vpop.f32.mrf.mxu0
    %v1546 = vadd.f32 %v1346, %v1545
    %1547 = vmatmul.f32.gmra.mxu0 %v1436
    %v1548 = vpop.f32.mrf.mxu0
    %v1549 = vadd.f32 %v1346, %v1548
    %1550 = vmatmul.f32.gmra.mxu0 %v1439
    %v1551 = vpop.f32.mrf.mxu0
    %v1552 = vadd.f32 %v1346, %v1551
    %1553 = vmatmul.f32.gmra.mxu0 %v1442
    %v1554 = vpop.f32.mrf.mxu0
    %v1555 = vadd.f32 %v1346, %v1554
    %1556 = vdwg.mxu0
    %v1557 = vperm.slane %v1343, 0
    %v1558 = vlaneseq
    %v1559 = vshrl.u32 %v1558, 7
    %1561 = vset.pattern.permute.xlu0 %v1559
    %1562 = vperm.xlu0 %1561, %v1557
    %v1563 = vpop.permute.xlu0 %1562
    %v1564 = vlaneseq
    %v1565 = vshrl.u32 %v1564, 7
    %v1566 = vadd.s32 %v1565, 8
    %1567 = vset.pattern.permute.xlu0 %v1566
    %1568 = vperm.xlu0 %1567, %v1557
    %v1569 = vpop.permute.xlu0 %1568
    %v1570 = vperm.slane %v1343, 1
    %v1571 = vlaneseq
    %v1572 = vshrl.u32 %v1571, 7
    %1574 = vset.pattern.permute.xlu0 %v1572
    %1575 = vperm.xlu0 %1574, %v1570
    %v1576 = vpop.permute.xlu0 %1575
    %v1577 = vlaneseq
    %v1578 = vshrl.u32 %v1577, 7
    %v1579 = vadd.s32 %v1578, 8
    %1580 = vset.pattern.permute.xlu0 %v1579
    %1581 = vperm.xlu0 %1580, %v1570
    %v1582 = vpop.permute.xlu0 %1581
    %v1583 = vperm.slane %v1343, 2
    %v1584 = vlaneseq
    %v1585 = vshrl.u32 %v1584, 7
    %1587 = vset.pattern.permute.xlu0 %v1585
    %1588 = vperm.xlu0 %1587, %v1583
    %v1589 = vpop.permute.xlu0 %1588
    %v1590 = vlaneseq
    %v1591 = vshrl.u32 %v1590, 7
    %v1592 = vadd.s32 %v1591, 8
    %1593 = vset.pattern.permute.xlu0 %v1592
    %1594 = vperm.xlu0 %1593, %v1583
    %v1595 = vpop.permute.xlu0 %1594
    %v1596 = vperm.slane %v1343, 3
    %v1597 = vlaneseq
    %v1598 = vshrl.u32 %v1597, 7
    %1600 = vset.pattern.permute.xlu0 %v1598
    %1601 = vperm.xlu0 %1600, %v1596
    %v1602 = vpop.permute.xlu0 %1601
    %v1603 = vlaneseq
    %v1604 = vshrl.u32 %v1603, 7
    %v1605 = vadd.s32 %v1604, 8
    %1606 = vset.pattern.permute.xlu0 %v1605
    %1607 = vperm.xlu0 %1606, %v1596
    %v1608 = vpop.permute.xlu0 %1607
    %v1609 = vperm.slane %v1343, 4
    %v1610 = vlaneseq
    %v1611 = vshrl.u32 %v1610, 7
    %1613 = vset.pattern.permute.xlu0 %v1611
    %1614 = vperm.xlu0 %1613, %v1609
    %v1615 = vpop.permute.xlu0 %1614
    %v1616 = vlaneseq
    %v1617 = vshrl.u32 %v1616, 7
    %v1618 = vadd.s32 %v1617, 8
    %1619 = vset.pattern.permute.xlu0 %v1618
    %1620 = vperm.xlu0 %1619, %v1609
    %v1621 = vpop.permute.xlu0 %1620
    %v1622 = vperm.slane %v1343, 5
    %v1623 = vlaneseq
    %v1624 = vshrl.u32 %v1623, 7
    %1626 = vset.pattern.permute.xlu0 %v1624
    %1627 = vperm.xlu0 %1626, %v1622
    %v1628 = vpop.permute.xlu0 %1627
    %v1629 = vlaneseq
    %v1630 = vshrl.u32 %v1629, 7
    %v1631 = vadd.s32 %v1630, 8
    %1632 = vset.pattern.permute.xlu0 %v1631
    %1633 = vperm.xlu0 %1632, %v1622
    %v1634 = vpop.permute.xlu0 %1633
    %v1635 = vperm.slane %v1343, 6
    %v1636 = vlaneseq
    %v1637 = vshrl.u32 %v1636, 7
    %1639 = vset.pattern.permute.xlu0 %v1637
    %1640 = vperm.xlu0 %1639, %v1635
    %v1641 = vpop.permute.xlu0 %1640
    %v1642 = vlaneseq
    %v1643 = vshrl.u32 %v1642, 7
    %v1644 = vadd.s32 %v1643, 8
    %1645 = vset.pattern.permute.xlu0 %v1644
    %1646 = vperm.xlu0 %1645, %v1635
    %v1647 = vpop.permute.xlu0 %1646
    %v1648 = vperm.slane %v1343, 7
    %v1649 = vlaneseq
    %v1650 = vshrl.u32 %v1649, 7
    %1652 = vset.pattern.permute.xlu0 %v1650
    %1653 = vperm.xlu0 %1652, %v1648
    %v1654 = vpop.permute.xlu0 %1653
    %v1655 = vlaneseq
    %v1656 = vshrl.u32 %v1655, 7
    %v1657 = vadd.s32 %v1656, 8
    %1658 = vset.pattern.permute.xlu0 %v1657
    %1659 = vperm.xlu0 %1658, %v1648
    %v1660 = vpop.permute.xlu0 %1659
    %v1661 = vperm.slane %v1344, 0
    %v1662 = vlaneseq
    %v1663 = vshrl.u32 %v1662, 7
    %1665 = vset.pattern.permute.xlu0 %v1663
    %1666 = vperm.xlu0 %1665, %v1661
    %v1667 = vpop.permute.xlu0 %1666
    %v1668 = vlaneseq
    %v1669 = vshrl.u32 %v1668, 7
    %v1670 = vadd.s32 %v1669, 8
    %1671 = vset.pattern.permute.xlu0 %v1670
    %1672 = vperm.xlu0 %1671, %v1661
    %v1673 = vpop.permute.xlu0 %1672
    %v1674 = vperm.slane %v1344, 1
    %v1675 = vlaneseq
    %v1676 = vshrl.u32 %v1675, 7
    %1678 = vset.pattern.permute.xlu0 %v1676
    %1679 = vperm.xlu0 %1678, %v1674
    %v1680 = vpop.permute.xlu0 %1679
    %v1681 = vlaneseq
    %v1682 = vshrl.u32 %v1681, 7
    %v1683 = vadd.s32 %v1682, 8
    %1684 = vset.pattern.permute.xlu0 %v1683
    %1685 = vperm.xlu0 %1684, %v1674
    %v1686 = vpop.permute.xlu0 %1685
    %v1687 = vperm.slane %v1344, 2
    %v1688 = vlaneseq
    %v1689 = vshrl.u32 %v1688, 7
    %1691 = vset.pattern.permute.xlu0 %v1689
    %1692 = vperm.xlu0 %1691, %v1687
    %v1693 = vpop.permute.xlu0 %1692
    %v1694 = vlaneseq
    %v1695 = vshrl.u32 %v1694, 7
    %v1696 = vadd.s32 %v1695, 8
    %1697 = vset.pattern.permute.xlu0 %v1696
    %1698 = vperm.xlu0 %1697, %v1687
    %v1699 = vpop.permute.xlu0 %1698
    %v1700 = vperm.slane %v1344, 3
    %v1701 = vlaneseq
    %v1702 = vshrl.u32 %v1701, 7
    %1704 = vset.pattern.permute.xlu0 %v1702
    %1705 = vperm.xlu0 %1704, %v1700
    %v1706 = vpop.permute.xlu0 %1705
    %v1707 = vlaneseq
    %v1708 = vshrl.u32 %v1707, 7
    %v1709 = vadd.s32 %v1708, 8
    %1710 = vset.pattern.permute.xlu0 %v1709
    %1711 = vperm.xlu0 %1710, %v1700
    %v1712 = vpop.permute.xlu0 %1711
    %v1713 = vperm.slane %v1344, 4
    %v1714 = vlaneseq
    %v1715 = vshrl.u32 %v1714, 7
    %1717 = vset.pattern.permute.xlu0 %v1715
    %1718 = vperm.xlu0 %1717, %v1713
    %v1719 = vpop.permute.xlu0 %1718
    %v1720 = vlaneseq
    %v1721 = vshrl.u32 %v1720, 7
    %v1722 = vadd.s32 %v1721, 8
    %1723 = vset.pattern.permute.xlu0 %v1722
    %1724 = vperm.xlu0 %1723, %v1713
    %v1725 = vpop.permute.xlu0 %1724
    %v1726 = vperm.slane %v1344, 5
    %v1727 = vlaneseq
    %v1728 = vshrl.u32 %v1727, 7
    %1730 = vset.pattern.permute.xlu0 %v1728
    %1731 = vperm.xlu0 %1730, %v1726
    %v1732 = vpop.permute.xlu0 %1731
    %v1733 = vlaneseq
    %v1734 = vshrl.u32 %v1733, 7
    %v1735 = vadd.s32 %v1734, 8
    %1736 = vset.pattern.permute.xlu0 %v1735
    %1737 = vperm.xlu0 %1736, %v1726
    %v1738 = vpop.permute.xlu0 %1737
    %v1739 = vperm.slane %v1344, 6
    %v1740 = vlaneseq
    %v1741 = vshrl.u32 %v1740, 7
    %1743 = vset.pattern.permute.xlu0 %v1741
    %1744 = vperm.xlu0 %1743, %v1739
    %v1745 = vpop.permute.xlu0 %1744
    %v1746 = vlaneseq
    %v1747 = vshrl.u32 %v1746, 7
    %v1748 = vadd.s32 %v1747, 8
    %1749 = vset.pattern.permute.xlu0 %v1748
    %1750 = vperm.xlu0 %1749, %v1739
    %v1751 = vpop.permute.xlu0 %1750
    %v1752 = vperm.slane %v1344, 7
    %v1753 = vlaneseq
    %v1754 = vshrl.u32 %v1753, 7
    %1756 = vset.pattern.permute.xlu0 %v1754
    %1757 = vperm.xlu0 %1756, %v1752
    %v1758 = vpop.permute.xlu0 %1757
    %v1759 = vlaneseq
    %v1760 = vshrl.u32 %v1759, 7
    %v1761 = vadd.s32 %v1760, 8
    %1762 = vset.pattern.permute.xlu0 %v1761
    %1763 = vperm.xlu0 %1762, %v1752
    %v1764 = vpop.permute.xlu0 %1763
    %v1765 = vmul.f32 %v1563, %v1462
    %v1766 = vmul.f32 %v1569, %v1465
    %v1767 = vmul.f32 %v1576, %v1468
    %v1768 = vmul.f32 %v1582, %v1471
    %v1769 = vmul.f32 %v1589, %v1474
    %v1770 = vmul.f32 %v1595, %v1477
    %v1771 = vmul.f32 %v1602, %v1480
    %v1772 = vmul.f32 %v1608, %v1483
    %v1773 = vmul.f32 %v1615, %v1486
    %v1774 = vmul.f32 %v1621, %v1489
    %v1775 = vmul.f32 %v1628, %v1492
    %v1776 = vmul.f32 %v1634, %v1495
    %v1777 = vmul.f32 %v1641, %v1498
    %v1778 = vmul.f32 %v1647, %v1501
    %v1779 = vmul.f32 %v1654, %v1504
    %v1780 = vmul.f32 %v1660, %v1507
    %v1781 = vmul.f32 %v1667, %v1510
    %v1782 = vmul.f32 %v1673, %v1513
    %v1783 = vmul.f32 %v1680, %v1516
    %v1784 = vmul.f32 %v1686, %v1519
    %v1785 = vmul.f32 %v1693, %v1522
    %v1786 = vmul.f32 %v1699, %v1525
    %v1787 = vmul.f32 %v1706, %v1528
    %v1788 = vmul.f32 %v1712, %v1531
    %v1789 = vmul.f32 %v1719, %v1534
    %v1790 = vmul.f32 %v1725, %v1537
    %v1791 = vmul.f32 %v1732, %v1540
    %v1792 = vmul.f32 %v1738, %v1543
    %v1793 = vmul.f32 %v1745, %v1546
    %v1794 = vmul.f32 %v1751, %v1549
    %v1795 = vmul.f32 %v1758, %v1552
    %v1796 = vmul.f32 %v1764, %v1555
    %v1797 = vsel %vm643, %v1765, 0.0
    %v1798 = vsel %vm643, %v1766, 0.0
    %v1799 = vadd.f32 %v1797, %v1798
    %v1800 = vrot.slane %v1799, 4
    %v1801 = vadd.f32 %v1799, %v1800
    %v1802 = vrot.slane %v1801, 2
    %v1803 = vadd.f32 %v1801, %v1802
    %v1804 = vrot.slane %v1803, 1
    %v1805 = vadd.f32 %v1803, %v1804
    %v1806 = vsel %vm643, %v1767, 0.0
    %v1807 = vsel %vm643, %v1768, 0.0
    %v1808 = vadd.f32 %v1806, %v1807
    %v1809 = vrot.slane %v1808, 4
    %v1810 = vadd.f32 %v1808, %v1809
    %v1811 = vrot.slane %v1810, 2
    %v1812 = vadd.f32 %v1810, %v1811
    %v1813 = vrot.slane %v1812, 1
    %v1814 = vadd.f32 %v1812, %v1813
    %v1815 = vsel %vm643, %v1769, 0.0
    %v1816 = vsel %vm643, %v1770, 0.0
    %v1817 = vadd.f32 %v1815, %v1816
    %v1818 = vrot.slane %v1817, 4
    %v1819 = vadd.f32 %v1817, %v1818
    %v1820 = vrot.slane %v1819, 2
    %v1821 = vadd.f32 %v1819, %v1820
    %v1822 = vrot.slane %v1821, 1
    %v1823 = vadd.f32 %v1821, %v1822
    %v1824 = vsel %vm643, %v1771, 0.0
    %v1825 = vsel %vm643, %v1772, 0.0
    %v1826 = vadd.f32 %v1824, %v1825
    %v1827 = vrot.slane %v1826, 4
    %v1828 = vadd.f32 %v1826, %v1827
    %v1829 = vrot.slane %v1828, 2
    %v1830 = vadd.f32 %v1828, %v1829
    %v1831 = vrot.slane %v1830, 1
    %v1832 = vadd.f32 %v1830, %v1831
    %v1833 = vsel %vm643, %v1773, 0.0
    %v1834 = vsel %vm643, %v1774, 0.0
    %v1835 = vadd.f32 %v1833, %v1834
    %v1836 = vrot.slane %v1835, 4
    %v1837 = vadd.f32 %v1835, %v1836
    %v1838 = vrot.slane %v1837, 2
    %v1839 = vadd.f32 %v1837, %v1838
    %v1840 = vrot.slane %v1839, 1
    %v1841 = vadd.f32 %v1839, %v1840
    %v1842 = vsel %vm643, %v1775, 0.0
    %v1843 = vsel %vm643, %v1776, 0.0
    %v1844 = vadd.f32 %v1842, %v1843
    %v1845 = vrot.slane %v1844, 4
    %v1846 = vadd.f32 %v1844, %v1845
    %v1847 = vrot.slane %v1846, 2
    %v1848 = vadd.f32 %v1846, %v1847
    %v1849 = vrot.slane %v1848, 1
    %v1850 = vadd.f32 %v1848, %v1849
    %v1851 = vsel %vm643, %v1777, 0.0
    %v1852 = vsel %vm643, %v1778, 0.0
    %v1853 = vadd.f32 %v1851, %v1852
    %v1854 = vrot.slane %v1853, 4
    %v1855 = vadd.f32 %v1853, %v1854
    %v1856 = vrot.slane %v1855, 2
    %v1857 = vadd.f32 %v1855, %v1856
    %v1858 = vrot.slane %v1857, 1
    %v1859 = vadd.f32 %v1857, %v1858
    %v1860 = vsel %vm643, %v1779, 0.0
    %v1861 = vsel %vm643, %v1780, 0.0
    %v1862 = vadd.f32 %v1860, %v1861
    %v1863 = vrot.slane %v1862, 4
    %v1864 = vadd.f32 %v1862, %v1863
    %v1865 = vrot.slane %v1864, 2
    %v1866 = vadd.f32 %v1864, %v1865
    %v1867 = vrot.slane %v1866, 1
    %v1868 = vadd.f32 %v1866, %v1867
    %v1869 = vsel %vm643, %v1781, 0.0
    %v1870 = vsel %vm643, %v1782, 0.0
    %v1871 = vadd.f32 %v1869, %v1870
    %v1872 = vrot.slane %v1871, 4
    %v1873 = vadd.f32 %v1871, %v1872
    %v1874 = vrot.slane %v1873, 2
    %v1875 = vadd.f32 %v1873, %v1874
    %v1876 = vrot.slane %v1875, 1
    %v1877 = vadd.f32 %v1875, %v1876
    %v1878 = vsel %vm643, %v1783, 0.0
    %v1879 = vsel %vm643, %v1784, 0.0
    %v1880 = vadd.f32 %v1878, %v1879
    %v1881 = vrot.slane %v1880, 4
    %v1882 = vadd.f32 %v1880, %v1881
    %v1883 = vrot.slane %v1882, 2
    %v1884 = vadd.f32 %v1882, %v1883
    %v1885 = vrot.slane %v1884, 1
    %v1886 = vadd.f32 %v1884, %v1885
    %v1887 = vsel %vm643, %v1785, 0.0
    %v1888 = vsel %vm643, %v1786, 0.0
    %v1889 = vadd.f32 %v1887, %v1888
    %v1890 = vrot.slane %v1889, 4
    %v1891 = vadd.f32 %v1889, %v1890
    %v1892 = vrot.slane %v1891, 2
    %v1893 = vadd.f32 %v1891, %v1892
    %v1894 = vrot.slane %v1893, 1
    %v1895 = vadd.f32 %v1893, %v1894
    %v1896 = vsel %vm643, %v1787, 0.0
    %v1897 = vsel %vm643, %v1788, 0.0
    %v1898 = vadd.f32 %v1896, %v1897
    %v1899 = vrot.slane %v1898, 4
    %v1900 = vadd.f32 %v1898, %v1899
    %v1901 = vrot.slane %v1900, 2
    %v1902 = vadd.f32 %v1900, %v1901
    %v1903 = vrot.slane %v1902, 1
    %v1904 = vadd.f32 %v1902, %v1903
    %v1905 = vsel %vm643, %v1789, 0.0
    %v1906 = vsel %vm643, %v1790, 0.0
    %v1907 = vadd.f32 %v1905, %v1906
    %v1908 = vrot.slane %v1907, 4
    %v1909 = vadd.f32 %v1907, %v1908
    %v1910 = vrot.slane %v1909, 2
    %v1911 = vadd.f32 %v1909, %v1910
    %v1912 = vrot.slane %v1911, 1
    %v1913 = vadd.f32 %v1911, %v1912
    %v1914 = vsel %vm643, %v1791, 0.0
    %v1915 = vsel %vm643, %v1792, 0.0
    %v1916 = vadd.f32 %v1914, %v1915
    %v1917 = vrot.slane %v1916, 4
    %v1918 = vadd.f32 %v1916, %v1917
    %v1919 = vrot.slane %v1918, 2
    %v1920 = vadd.f32 %v1918, %v1919
    %v1921 = vrot.slane %v1920, 1
    %v1922 = vadd.f32 %v1920, %v1921
    %v1923 = vsel %vm643, %v1793, 0.0
    %v1924 = vsel %vm643, %v1794, 0.0
    %v1925 = vadd.f32 %v1923, %v1924
    %v1926 = vrot.slane %v1925, 4
    %v1927 = vadd.f32 %v1925, %v1926
    %v1928 = vrot.slane %v1927, 2
    %v1929 = vadd.f32 %v1927, %v1928
    %v1930 = vrot.slane %v1929, 1
    %v1931 = vadd.f32 %v1929, %v1930
    %v1932 = vsel %vm643, %v1795, 0.0
    %v1933 = vsel %vm643, %v1796, 0.0
    %v1934 = vadd.f32 %v1932, %v1933
    %v1935 = vrot.slane %v1934, 4
    %v1936 = vadd.f32 %v1934, %v1935
    %v1937 = vrot.slane %v1936, 2
    %v1938 = vadd.f32 %v1936, %v1937
    %v1939 = vrot.slane %v1938, 1
    %v1940 = vadd.f32 %v1938, %v1939
    %vm1941 = vcmp.gt.f32.partialorder %v1805, 0.0
    %vm1942 = vcmp.gt.f32.partialorder %v1814, 0.0
    %vm1943 = vcmp.gt.f32.partialorder %v1823, 0.0
    %vm1944 = vcmp.gt.f32.partialorder %v1832, 0.0
    %vm1945 = vcmp.gt.f32.partialorder %v1841, 0.0
    %vm1946 = vcmp.gt.f32.partialorder %v1850, 0.0
    %vm1947 = vcmp.gt.f32.partialorder %v1859, 0.0
    %vm1948 = vcmp.gt.f32.partialorder %v1868, 0.0
    %vm1949 = vcmp.gt.f32.partialorder %v1877, 0.0
    %vm1950 = vcmp.gt.f32.partialorder %v1886, 0.0
    %vm1951 = vcmp.gt.f32.partialorder %v1895, 0.0
    %vm1952 = vcmp.gt.f32.partialorder %v1904, 0.0
    %vm1953 = vcmp.gt.f32.partialorder %v1913, 0.0
    %vm1954 = vcmp.gt.f32.partialorder %v1922, 0.0
    %vm1955 = vcmp.gt.f32.partialorder %v1931, 0.0
    %vm1956 = vcmp.gt.f32.partialorder %v1940, 0.0
    %v1957 = vmul.f32 %v1805, 1.442695
    %v1958 = vpow.pop %v1957
    %v1959 = vmul.f32 %v1814, 1.442695
    %v1960 = vpow.pop %v1959
    %v1961 = vmul.f32 %v1823, 1.442695
    %v1962 = vpow.pop %v1961
    %v1963 = vmul.f32 %v1832, 1.442695
    %v1964 = vpow.pop %v1963
    %v1965 = vmul.f32 %v1841, 1.442695
    %v1966 = vpow.pop %v1965
    %v1967 = vmul.f32 %v1850, 1.442695
    %v1968 = vpow.pop %v1967
    %v1969 = vmul.f32 %v1859, 1.442695
    %v1970 = vpow.pop %v1969
    %v1971 = vmul.f32 %v1868, 1.442695
    %v1972 = vpow.pop %v1971
    %v1973 = vmul.f32 %v1877, 1.442695
    %v1974 = vpow.pop %v1973
    %v1975 = vmul.f32 %v1886, 1.442695
    %v1976 = vpow.pop %v1975
    %v1977 = vmul.f32 %v1895, 1.442695
    %v1978 = vpow.pop %v1977
    %v1979 = vmul.f32 %v1904, 1.442695
    %v1980 = vpow.pop %v1979
    %v1981 = vmul.f32 %v1913, 1.442695
    %v1982 = vpow.pop %v1981
    %v1983 = vmul.f32 %v1922, 1.442695
    %v1984 = vpow.pop %v1983
    %v1985 = vmul.f32 %v1931, 1.442695
    %v1986 = vpow.pop %v1985
    %v1987 = vmul.f32 %v1940, 1.442695
    %v1988 = vpow.pop %v1987
    %v1989 = vsub.f32 %v1958, 1.0
    %v1990 = vsub.f32 %v1960, 1.0
    %v1991 = vsub.f32 %v1962, 1.0
    %v1992 = vsub.f32 %v1964, 1.0
    %v1993 = vsub.f32 %v1966, 1.0
    %v1994 = vsub.f32 %v1968, 1.0
    %v1995 = vsub.f32 %v1970, 1.0
    %v1996 = vsub.f32 %v1972, 1.0
    %v1997 = vsub.f32 %v1974, 1.0
    %v1998 = vsub.f32 %v1976, 1.0
    %v1999 = vsub.f32 %v1978, 1.0
    %v2000 = vsub.f32 %v1980, 1.0
    %v2001 = vsub.f32 %v1982, 1.0
    %v2002 = vsub.f32 %v1984, 1.0
    %v2003 = vsub.f32 %v1986, 1.0
    %v2004 = vsub.f32 %v1988, 1.0
    %v2005 = vsel %vm1941, %v1805, %v1989
    %v2006 = vsel %vm1942, %v1814, %v1990
    %v2007 = vsel %vm1943, %v1823, %v1991
    %v2008 = vsel %vm1944, %v1832, %v1992
    %v2009 = vsel %vm1945, %v1841, %v1993
    %v2010 = vsel %vm1946, %v1850, %v1994
    %v2011 = vsel %vm1947, %v1859, %v1995
    %v2012 = vsel %vm1948, %v1868, %v1996
    %v2013 = vsel %vm1949, %v1877, %v1997
    %v2014 = vsel %vm1950, %v1886, %v1998
    %v2015 = vsel %vm1951, %v1895, %v1999
    %v2016 = vsel %vm1952, %v1904, %v2000
    %v2017 = vsel %vm1953, %v1913, %v2001
    %v2018 = vsel %vm1954, %v1922, %v2002
    %v2019 = vsel %vm1955, %v1931, %v2003
    %v2020 = vsel %vm1956, %v1940, %v2004
    %v2022 = vperm.slane %v569, 0
    %v2040 = vsel %vm1283, %v2006, %v2005
    %v2041 = vsel %vm1285, %v2007, %v2040
    %v2042 = vsel %vm1287, %v2008, %v2041
    %v2043 = vsel %vm1289, %v2009, %v2042
    %v2044 = vsel %vm1291, %v2010, %v2043
    %v2045 = vsel %vm1293, %v2011, %v2044
    %v2046 = vsel %vm1295, %v2012, %v2045
    %v2047 = vsel %vm1283, %v2014, %v2013
    %v2048 = vsel %vm1285, %v2015, %v2047
    %v2049 = vsel %vm1287, %v2016, %v2048
    %v2050 = vsel %vm1289, %v2017, %v2049
    %v2051 = vsel %vm1291, %v2018, %v2050
    %v2052 = vsel %vm1293, %v2019, %v2051
    %v2053 = vsel %vm1295, %v2020, %v2052
    %v2054 = vsel %vm643, %v2046, 0
    %v2056 = vsel %vm643, %v2053, 0
    %2058 = vmatpush.msra.mxu0 0.0
    %2059 = vmatpush.msra.mxu0 0.0
    %2060 = vmatpush.msra.mxu0 0.0
    %2061 = vmatpush.msra.mxu0 0.0
    %2062 = vmatpush.msra.mxu0 0.0
    %2063 = vmatpush.msra.mxu0 0.0
    %2064 = vmatpush.msra.mxu0 0.0
    %2065 = vmatpush.msra.mxu0 0.0
    %2066 = vmatpush.msra.mxu0 0.0
    %2067 = vmatpush.msra.mxu0 0.0
    %2068 = vmatpush.msra.mxu0 0.0
    %2069 = vmatpush.msra.mxu0 0.0
    %2070 = vmatpush.msra.mxu0 %v564
    %2071 = vmatpush.msra.mxu0 %v563
    %2072 = vmatpush.msra.mxu0 %v562
    %2073 = vmatpush.msra.mxu0 %v561
    %2074 = vmatmul.f32.gmra.mxu0 %v2054
    %v2075 = vpop.f32.mrf.mxu0
    %v2076 = vadd.f32 %v2022, %v2075
    %2077 = vmatmul.f32.gmra.mxu0 %v2056
    %v2078 = vpop.f32.mrf.mxu0
    %v2079 = vadd.f32 %v2022, %v2078
    %2080 = vdwg.mxu0
    %v2082 = vperm.slane %v570, 0
    %v2085 = vsel %vm643, %v677, 0
    %v2088 = vsel %vm643, %v678, 0
    %2090 = vmatpush.msra.mxu0 0.0
    %2091 = vmatpush.msra.mxu0 0.0
    %2092 = vmatpush.msra.mxu0 0.0
    %2093 = vmatpush.msra.mxu0 0.0
    %2094 = vmatpush.msra.mxu0 0.0
    %2095 = vmatpush.msra.mxu0 0.0
    %2096 = vmatpush.msra.mxu0 0.0
    %2097 = vmatpush.msra.mxu0 0.0
    %2098 = vmatpush.msra.mxu0 0.0
    %2099 = vmatpush.msra.mxu0 0.0
    %2100 = vmatpush.msra.mxu0 0.0
    %2101 = vmatpush.msra.mxu0 0.0
    %2102 = vmatpush.msra.mxu0 %v568
    %2103 = vmatpush.msra.mxu0 %v567
    %2104 = vmatpush.msra.mxu0 %v566
    %2105 = vmatpush.msra.mxu0 %v565
    %2106 = vmatmul.f32.gmra.mxu0 %v2085
    %v2107 = vpop.f32.mrf.mxu0
    %v2108 = vadd.f32 %v2082, %v2107
    %2109 = vmatmul.f32.gmra.mxu0 %v2088
    %v2110 = vpop.f32.mrf.mxu0
    %v2111 = vadd.f32 %v2082, %v2110
    %2112 = vdwg.mxu0
    %v2113 = vadd.f32 %v2076, %v2108
    %v2114 = vadd.f32 %v2079, %v2111
    %v2115 = vxor.u32 %v2113, 2147483648
    %v2116 = vxor.u32 %v2114, 2147483648
    %v2117 = vmul.f32 %v2115, 1.442695
    %v2118 = vpow.pop %v2117
    %v2119 = vmul.f32 %v2116, 1.442695
    %v2120 = vpow.pop %v2119
    %v2121 = vadd.f32 %v2118, 1.0
    %v2122 = vadd.f32 %v2120, 1.0
    %v2123 = vrcp.pop %v2121
    %v2124 = vmul.f32 %v2121, %v2123
    %v2125 = vsub.f32 1.0, %v2124
    %v2126 = vmul.f32 %v2123, %v2125
    %v2127 = vadd.f32 %v2123, %v2126
    %vm2128 = vweird.f32 %v2121
    %vm2129 = vweird.f32 %v2123
    %vm2130 = vmor %vm2128, %vm2129
    %v2131 = vsel %vm2130, %v2123, %v2127
    %v2132 = vand.u32 2147483647, %v2121
    %vm2133 = vcmp.eq.f32.partialorder %v2132, 8.507059e+37
    %v2134 = vand.u32 %v2121, 2147483648
    %v2135 = vor.u32 1.1754944e-38, %v2134
    %v2136 = vsel %vm2133, %v2135, %v2131
    %v2137 = vmul.f32 1.0, %v2136
    %v2138 = vrcp.pop %v2122
    %v2139 = vmul.f32 %v2122, %v2138
    %v2140 = vsub.f32 1.0, %v2139
    %v2141 = vmul.f32 %v2138, %v2140
    %v2142 = vadd.f32 %v2138, %v2141
    %vm2143 = vweird.f32 %v2122
    %vm2144 = vweird.f32 %v2138
    %vm2145 = vmor %vm2143, %vm2144
    %v2146 = vsel %vm2145, %v2138, %v2142
    %v2147 = vand.u32 2147483647, %v2122
    %vm2148 = vcmp.eq.f32.partialorder %v2147, 8.507059e+37
    %v2149 = vand.u32 %v2122, 2147483648
    %v2150 = vor.u32 1.1754944e-38, %v2149
    %v2151 = vsel %vm2148, %v2150, %v2146
    %v2152 = vmul.f32 1.0, %v2151
    %2155 = vrot.lane.b32.xlu0 %v2108, 64
    %v2156 = vpop.permute.xlu0 %2155
    %2157 = vrot.lane.b32.xlu0 %v2111, 64
    %v2158 = vpop.permute.xlu0 %2157
    %v2161 = vmul.f32 %v2137, %v2156
    %v2162 = vmul.f32 %v2152, %v2158
    %2165 = vrot.lane.b32.xlu0 %v2161, 64
    %v2166 = vpop.permute.xlu0 %2165
    %2167 = vrot.lane.b32.xlu0 %v2162, 64
    %v2168 = vpop.permute.xlu0 %2167
    %v2171 = vadd.f32 %v2076, %v2166
    %v2172 = vadd.f32 %v2079, %v2168
    %v2173 = vtanh.pop %v2171
    %v2174 = vtanh.pop %v2172
    %v2175 = vsub.f32 1.0, %v2137
    %v2176 = vsub.f32 1.0, %v2152
    %2179 = vrot.lane.b32.xlu0 %v2173, 96
    %v2180 = vpop.permute.xlu0 %2179
    %2181 = vrot.lane.b32.xlu0 %v2174, 96
    %v2182 = vpop.permute.xlu0 %2181
    %v2185 = vmul.f32 %v2175, %v2180
    %v2186 = vmul.f32 %v2176, %v2182
    %2187 = vrot.lane.b32.xlu0 %v677, 32
    %v2188 = vpop.permute.xlu0 %2187
    %2189 = vrot.lane.b32.xlu0 %v678, 32
    %v2190 = vpop.permute.xlu0 %2189
    %v2193 = vmul.f32 %v2137, %v2188
    %v2194 = vmul.f32 %v2152, %v2190
    %v2195 = vadd.f32 %v2185, %v2193
    %v2196 = vadd.f32 %v2186, %v2194
    %v2197 = vmax.f32 %v2195, 0.0
    %v2198 = vmax.f32 %v2196, 0.0
    %v2200 = vperm.slane %v571, 0
    %2201 = vrot.lane.b32.xlu0 %v2200, 32
    %v2202 = vpop.permute.xlu0 %2201
    %v2204 = vmul.f32 %v2197, %v2202
    %v2205 = vmul.f32 %v2198, %v2202
    %2208 = vrot.lane.b32.xlu0 %v2204, 96
    %v2209 = vpop.permute.xlu0 %2208
    %2210 = vrot.lane.b32.xlu0 %v2205, 96
    %v2211 = vpop.permute.xlu0 %2210
    %v2214 = vsel %vm643, %v2209, 0.0
    %2215 = vadd.xlane.f32.xlu0 %v2214
    %v2216 = vpop.xlane.xlu0 %2215
    %v2217 = vsel %vm643, %v2211, 0.0
    %2218 = vadd.xlane.f32.xlu0 %v2217
    %v2219 = vpop.xlane.xlu0 %2218
    %v2221 = vperm.slane %v573, 0
    %v2223 = vadd.f32 %v2216, %v2221
    %v2224 = vadd.f32 %v2219, %v2221
    %v2226 = vperm.slane %v572, 0
    %2227 = vrot.lane.b32.xlu0 %v2226, 32
    %v2228 = vpop.permute.xlu0 %2227
    %v2230 = vmul.f32 %v2197, %v2228
    %v2231 = vmul.f32 %v2198, %v2228
    %2234 = vrot.lane.b32.xlu0 %v2230, 96
    %v2235 = vpop.permute.xlu0 %2234
    %2236 = vrot.lane.b32.xlu0 %v2231, 96
    %v2237 = vpop.permute.xlu0 %2236
    %v2240 = vsel %vm643, %v2235, 0.0
    %2241 = vadd.xlane.f32.xlu0 %v2240
    %v2242 = vpop.xlane.xlu0 %2241
    %v2243 = vsel %vm643, %v2237, 0.0
    %2244 = vadd.xlane.f32.xlu0 %v2243
    %v2245 = vpop.xlane.xlu0 %2244
    %2247 = vset.pattern.permute.xlu0 0
    %2248 = vperm.xlu0 %2247, %v2223
    %v2249 = vpop.permute.xlu0 %2248
    %2252 = vset.pattern.permute.xlu0 0
    %2253 = vperm.xlu0 %2252, %v2224
    %v2254 = vpop.permute.xlu0 %2253
    %v2258 = vperm.slane %v2242, %v1232
    %v2259 = vperm.slane %v2245, %v1234
    %v2260 = vsel %vm1236, %v2259, %v2258
    %v2261 = vsel %vm1285, %v2260, %v2260
    %v2262 = vsel %vm1287, %v2260, %v2261
    %v2263 = vsel %vm1289, %v2260, %v2262
    %v2264 = vsel %vm1291, %v2260, %v2263
    %v2265 = vsel %vm1293, %v2260, %v2264
    %v2266 = vsel %vm1295, %v2260, %v2265
    %v2268 = vadd.f32 %v2249, %v2266
    %v2269 = vadd.f32 %v2254, %v2266
    %vm2270 = vcmp.ge.f32.partialorder %v2268, 0.0
    %vm2271 = vcmp.ge.f32.partialorder %v2269, 0.0
    %v2272 = vmul.f32 %v2268, 0.01
    %v2273 = vmul.f32 %v2269, 0.01
    %v2274 = vsel %vm2270, %v2268, %v2272
    %v2275 = vsel %vm2271, %v2269, %v2273
    %v2276 = vsel %vm1314, %v2274, -1e+30
    %v2277 = vsel %vm1315, %v2275, -1e+30
    %v2278 = vsel %vm1318, %v2276, -inf
    %2279 = vmax.xlane.f32.xlu0 %v2278
    %v2280 = vpop.xlane.xlu0 %2279
    %v2281 = vsel %vm1318, %v2277, -inf
    %2282 = vmax.xlane.f32.xlu0 %v2281
    %v2283 = vpop.xlane.xlu0 %2282
    %v2284 = vsub.f32 %v2276, %v2280
    %v2285 = vsub.f32 %v2277, %v2283
    %v2286 = vmul.f32 %v2284, 1.442695
    %v2287 = vpow.pop %v2286
    %v2288 = vmul.f32 %v2285, 1.442695
    %v2289 = vpow.pop %v2288
    %v2290 = vsel %vm1314, %v2287, 0.0
    %v2291 = vsel %vm1315, %v2289, 0.0
    %v2292 = vsel %vm1318, %v2290, 0.0
    %2293 = vadd.xlane.f32.xlu0 %v2292
    %v2294 = vpop.xlane.xlu0 %2293
    %v2295 = vsel %vm1318, %v2291, 0.0
    %2296 = vadd.xlane.f32.xlu0 %v2295
    %v2297 = vpop.xlane.xlu0 %2296
    %v2298 = vmax.f32 %v2294, 1e-12
    %v2299 = vmax.f32 %v2297, 1e-12
    %v2300 = vrcp.pop %v2298
    %v2301 = vrcp.pop %v2299
    %v2302 = vmul.f32 %v2290, %v2300
    %v2303 = vmul.f32 %v2291, %v2301
    %v2305 = vperm.slane %v578, 0
    %2309 = vrot.lane.b32.xlu0 %v2197, 96
    %v2310 = vpop.permute.xlu0 %2309
    %2311 = vrot.lane.b32.xlu0 %v2198, 96
    %v2312 = vpop.permute.xlu0 %2311
    %v2313 = vsel %vm643, %v2310, 0
    %v2315 = vsel %vm643, %v2312, 0
    %2317 = vmatpush.msra.mxu0 0.0
    %2318 = vmatpush.msra.mxu0 0.0
    %2319 = vmatpush.msra.mxu0 0.0
    %2320 = vmatpush.msra.mxu0 0.0
    %2321 = vmatpush.msra.mxu0 0.0
    %2322 = vmatpush.msra.mxu0 0.0
    %2323 = vmatpush.msra.mxu0 0.0
    %2324 = vmatpush.msra.mxu0 0.0
    %2325 = vmatpush.msra.mxu0 0.0
    %2326 = vmatpush.msra.mxu0 0.0
    %2327 = vmatpush.msra.mxu0 0.0
    %2328 = vmatpush.msra.mxu0 0.0
    %2329 = vmatpush.msra.mxu0 %v577
    %2330 = vmatpush.msra.mxu0 %v576
    %2331 = vmatpush.msra.mxu0 %v575
    %2332 = vmatpush.msra.mxu0 %v574
    %2333 = vmatmul.f32.gmra.mxu0 %v2313
    %v2334 = vpop.f32.mrf.mxu0
    %v2335 = vadd.f32 %v2305, %v2334
    %2336 = vmatmul.f32.gmra.mxu0 %v2315
    %v2337 = vpop.f32.mrf.mxu0
    %v2338 = vadd.f32 %v2305, %v2337
    %2339 = vdwg.mxu0
    %v2341 = vsel %vm1318, %v2302, 0
    %v2344 = vsel %vm1318, %v2303, 0
    %2346 = vmatpush.msra.mxu0 0.0
    %2347 = vmatpush.msra.mxu0 0.0
    %2348 = vmatpush.msra.mxu0 0.0
    %2349 = vmatpush.msra.mxu0 0.0
    %2350 = vmatpush.msra.mxu0 0.0
    %2351 = vmatpush.msra.mxu0 0.0
    %2352 = vmatpush.msra.mxu0 0.0
    %2353 = vmatpush.msra.mxu0 0.0
    %2354 = vmatpush.msra.mxu0 0.0
    %2355 = vmatpush.msra.mxu0 0.0
    %2356 = vmatpush.msra.mxu0 0.0
    %2357 = vmatpush.msra.mxu0 0.0
    %2358 = vmatpush.msra.mxu0 0.0
    %2359 = vmatpush.msra.mxu0 0.0
    %2360 = vmatpush.msra.mxu0 %v2338
    %2361 = vmatpush.msra.mxu0 %v2335
    %2362 = vmatmul.f32.gmra.mxu0 %v2341
    %v2363 = vpop.f32.mrf.mxu0
    %v2364 = vadd.f32 0.0, %v2363
    %2365 = vmatmul.f32.gmra.mxu0 %v2344
    %v2366 = vpop.f32.mrf.mxu0
    %v2367 = vadd.f32 0.0, %v2366
    %2368 = vdwg.mxu0
    %vm2369 = vcmp.gt.f32.partialorder %v2364, 0.0
    %vm2370 = vcmp.gt.f32.partialorder %v2367, 0.0
    %v2371 = vmul.f32 %v2364, 1.442695
    %v2372 = vpow.pop %v2371
    %v2373 = vmul.f32 %v2367, 1.442695
    %v2374 = vpow.pop %v2373
    %v2375 = vsub.f32 %v2372, 1.0
    %v2376 = vsub.f32 %v2374, 1.0
    %v2377 = vsel %vm2369, %v2364, %v2375
    %v2378 = vsel %vm2370, %v2367, %v2376
    %v2380 = vperm.slane %v587, 0
    %v2383 = vsel %vm643, %v2377, 0
    %v2386 = vsel %vm643, %v2378, 0
    %2388 = vmatpush.msra.mxu0 0.0
    %2389 = vmatpush.msra.mxu0 0.0
    %2390 = vmatpush.msra.mxu0 0.0
    %2391 = vmatpush.msra.mxu0 0.0
    %2392 = vmatpush.msra.mxu0 0.0
    %2393 = vmatpush.msra.mxu0 0.0
    %2394 = vmatpush.msra.mxu0 0.0
    %2395 = vmatpush.msra.mxu0 0.0
    %2396 = vmatpush.msra.mxu0 0.0
    %2397 = vmatpush.msra.mxu0 0.0
    %2398 = vmatpush.msra.mxu0 0.0
    %2399 = vmatpush.msra.mxu0 0.0
    %2400 = vmatpush.msra.mxu0 %v582
    %2401 = vmatpush.msra.mxu0 %v581
    %2402 = vmatpush.msra.mxu0 %v580
    %2403 = vmatpush.msra.mxu0 %v579
    %2404 = vmatmul.f32.gmra.mxu0 %v2383
    %v2405 = vpop.f32.mrf.mxu0
    %v2406 = vadd.f32 %v2380, %v2405
    %2407 = vmatmul.f32.gmra.mxu0 %v2386
    %v2408 = vpop.f32.mrf.mxu0
    %v2409 = vadd.f32 %v2380, %v2408
    %2410 = vdwg.mxu0
    %v2412 = vperm.slane %v588, 0
    %2414 = vmatpush.msra.mxu0 0.0
    %2415 = vmatpush.msra.mxu0 0.0
    %2416 = vmatpush.msra.mxu0 0.0
    %2417 = vmatpush.msra.mxu0 0.0
    %2418 = vmatpush.msra.mxu0 0.0
    %2419 = vmatpush.msra.mxu0 0.0
    %2420 = vmatpush.msra.mxu0 0.0
    %2421 = vmatpush.msra.mxu0 0.0
    %2422 = vmatpush.msra.mxu0 0.0
    %2423 = vmatpush.msra.mxu0 0.0
    %2424 = vmatpush.msra.mxu0 0.0
    %2425 = vmatpush.msra.mxu0 0.0
    %2426 = vmatpush.msra.mxu0 %v586
    %2427 = vmatpush.msra.mxu0 %v585
    %2428 = vmatpush.msra.mxu0 %v584
    %2429 = vmatpush.msra.mxu0 %v583
    %2430 = vmatmul.f32.gmra.mxu0 %v2313
    %v2431 = vpop.f32.mrf.mxu0
    %v2432 = vadd.f32 %v2412, %v2431
    %2433 = vmatmul.f32.gmra.mxu0 %v2315
    %v2434 = vpop.f32.mrf.mxu0
    %v2435 = vadd.f32 %v2412, %v2434
    %2436 = vdwg.mxu0
    %v2437 = vadd.f32 %v2406, %v2432
    %v2438 = vadd.f32 %v2409, %v2435
    %v2439 = vxor.u32 %v2437, 2147483648
    %v2440 = vxor.u32 %v2438, 2147483648
    %v2441 = vmul.f32 %v2439, 1.442695
    %v2442 = vpow.pop %v2441
    %v2443 = vmul.f32 %v2440, 1.442695
    %v2444 = vpow.pop %v2443
    %v2445 = vadd.f32 %v2442, 1.0
    %v2446 = vadd.f32 %v2444, 1.0
    %v2447 = vrcp.pop %v2445
    %v2448 = vmul.f32 %v2445, %v2447
    %v2449 = vsub.f32 1.0, %v2448
    %v2450 = vmul.f32 %v2447, %v2449
    %v2451 = vadd.f32 %v2447, %v2450
    %vm2452 = vweird.f32 %v2445
    %vm2453 = vweird.f32 %v2447
    %vm2454 = vmor %vm2452, %vm2453
    %v2455 = vsel %vm2454, %v2447, %v2451
    %v2456 = vand.u32 2147483647, %v2445
    %vm2457 = vcmp.eq.f32.partialorder %v2456, 8.507059e+37
    %v2458 = vand.u32 %v2445, 2147483648
    %v2459 = vor.u32 1.1754944e-38, %v2458
    %v2460 = vsel %vm2457, %v2459, %v2455
    %v2461 = vmul.f32 1.0, %v2460
    %v2462 = vrcp.pop %v2446
    %v2463 = vmul.f32 %v2446, %v2462
    %v2464 = vsub.f32 1.0, %v2463
    %v2465 = vmul.f32 %v2462, %v2464
    %v2466 = vadd.f32 %v2462, %v2465
    %vm2467 = vweird.f32 %v2446
    %vm2468 = vweird.f32 %v2462
    %vm2469 = vmor %vm2467, %vm2468
    %v2470 = vsel %vm2469, %v2462, %v2466
    %v2471 = vand.u32 2147483647, %v2446
    %vm2472 = vcmp.eq.f32.partialorder %v2471, 8.507059e+37
    %v2473 = vand.u32 %v2446, 2147483648
    %v2474 = vor.u32 1.1754944e-38, %v2473
    %v2475 = vsel %vm2472, %v2474, %v2470
    %v2476 = vmul.f32 1.0, %v2475
    %2479 = vrot.lane.b32.xlu0 %v2432, 64
    %v2480 = vpop.permute.xlu0 %2479
    %2481 = vrot.lane.b32.xlu0 %v2435, 64
    %v2482 = vpop.permute.xlu0 %2481
    %v2485 = vmul.f32 %v2461, %v2480
    %v2486 = vmul.f32 %v2476, %v2482
    %2489 = vrot.lane.b32.xlu0 %v2485, 64
    %v2490 = vpop.permute.xlu0 %2489
    %2491 = vrot.lane.b32.xlu0 %v2486, 64
    %v2492 = vpop.permute.xlu0 %2491
    %v2495 = vadd.f32 %v2406, %v2490
    %v2496 = vadd.f32 %v2409, %v2492
    %v2497 = vtanh.pop %v2495
    %v2498 = vtanh.pop %v2496
    %v2499 = vsub.f32 1.0, %v2461
    %v2500 = vsub.f32 1.0, %v2476
    %2503 = vrot.lane.b32.xlu0 %v2497, 96
    %v2504 = vpop.permute.xlu0 %2503
    %2505 = vrot.lane.b32.xlu0 %v2498, 96
    %v2506 = vpop.permute.xlu0 %2505
    %v2509 = vmul.f32 %v2499, %v2504
    %v2510 = vmul.f32 %v2500, %v2506
    %v2511 = vmul.f32 %v2461, %v2197
    %v2512 = vmul.f32 %v2476, %v2198
    %v2513 = vadd.f32 %v2509, %v2511
    %v2514 = vadd.f32 %v2510, %v2512
    %v2515 = vmax.f32 %v2513, 0.0
    %v2516 = vmax.f32 %v2514, 0.0
    %vm2517 = vcmask 523520
    %v2518 = vsel %vm2517, %v2515, 0.0
    %v2519 = vsel %vm2517, %v2516, 0.0
    %v2520 = vadd.f32 %v2518, %v2519
    %v2521 = vrot.slane %v2520, 4
    %v2522 = vadd.f32 %v2520, %v2521
    %v2523 = vrot.slane %v2522, 2
    %v2524 = vadd.f32 %v2522, %v2523
    %v2525 = vrot.slane %v2524, 1
    %v2526 = vadd.f32 %v2524, %v2525
    %v2527 = vmax.f32 %v2526, 0.0
    %v2529 = vperm.slane %v589, 0
    %2530 = vrot.lane.b32.xlu0 %v2529, 32
    %v2531 = vpop.permute.xlu0 %2530
    %v2533 = vmul.f32 %v2527, %v2531
    %2535 = vrot.lane.b32.xlu0 %v2533, 96
    %v2536 = vpop.permute.xlu0 %2535
    %vm2538 = vcmask 253952
    %v2539 = vsel %vm2538, %v2536, 0.0
    %2540 = vadd.xlane.f32.xlu0 %v2539
    %v2541 = vpop.xlane.xlu0 %2540
    %v2542 = vadd.f32 %v2541, %v591
    %v2544 = vperm.slane %v590, 0
    %2545 = vrot.lane.b32.xlu0 %v2544, 32
    %v2546 = vpop.permute.xlu0 %2545
    %v2548 = vmul.f32 %v2515, %v2546
    %v2549 = vmul.f32 %v2516, %v2546
    %2552 = vrot.lane.b32.xlu0 %v2548, 96
    %v2553 = vpop.permute.xlu0 %2552
    %2554 = vrot.lane.b32.xlu0 %v2549, 96
    %v2555 = vpop.permute.xlu0 %2554
    %v2558 = vsel %vm643, %v2553, 0.0
    %2559 = vadd.xlane.f32.xlu0 %v2558
    %v2560 = vpop.xlane.xlu0 %2559
    %v2561 = vsel %vm643, %v2555, 0.0
    %2562 = vadd.xlane.f32.xlu0 %v2561
    %v2563 = vpop.xlane.xlu0 %2562
    %v2564 = vperm.slane %v2542, 0
    %v2565 = vadd.f32 %v2560, %v2564
    %v2566 = vadd.f32 %v2563, %v2564
    %vm2567 = vcmp.ge.f32.partialorder %v2565, 0.0
    %vm2568 = vcmp.ge.f32.partialorder %v2566, 0.0
    %v2569 = vmul.f32 %v2565, 0.01
    %v2570 = vmul.f32 %v2566, 0.01
    %v2571 = vsel %vm2567, %v2565, %v2569
    %v2572 = vsel %vm2568, %v2566, %v2570
    %vm2573 = vcmask 7168
    %v2574 = vsel %vm2573, %v2571, -inf
    %v2575 = vsel %vm2573, %v2572, -inf
    %v2576 = vmax.f32 %v2574, %v2575
    %v2577 = vrot.slane %v2576, 4
    %v2578 = vmax.f32 %v2576, %v2577
    %v2579 = vrot.slane %v2578, 2
    %v2580 = vmax.f32 %v2578, %v2579
    %v2581 = vrot.slane %v2580, 1
    %v2582 = vmax.f32 %v2580, %v2581
    %v2583 = vsub.f32 %v2571, %v2582
    %v2584 = vsub.f32 %v2572, %v2582
    %v2585 = vmul.f32 %v2583, 1.442695
    %v2586 = vpow.pop %v2585
    %v2587 = vmul.f32 %v2584, 1.442695
    %v2588 = vpow.pop %v2587
    %v2589 = vsel %vm2573, %v2586, 0.0
    %v2590 = vsel %vm2573, %v2588, 0.0
    %v2591 = vadd.f32 %v2589, %v2590
    %v2592 = vrot.slane %v2591, 4
    %v2593 = vadd.f32 %v2591, %v2592
    %v2594 = vrot.slane %v2593, 2
    %v2595 = vadd.f32 %v2593, %v2594
    %v2596 = vrot.slane %v2595, 1
    %v2597 = vadd.f32 %v2595, %v2596
    %v2598 = vrcp.pop %v2597
    %v2599 = vmul.f32 %v2586, %v2598
    %v2600 = vmul.f32 %v2588, %v2598
    %v2602 = vperm.slane %v596, 0
    %2606 = vrot.lane.b32.xlu0 %v2515, 96
    %v2607 = vpop.permute.xlu0 %2606
    %2608 = vrot.lane.b32.xlu0 %v2516, 96
    %v2609 = vpop.permute.xlu0 %2608
    %v2610 = vsel %vm643, %v2607, 0
    %v2612 = vsel %vm643, %v2609, 0
    %2614 = vmatpush.msra.mxu0 0.0
    %2615 = vmatpush.msra.mxu0 0.0
    %2616 = vmatpush.msra.mxu0 0.0
    %2617 = vmatpush.msra.mxu0 0.0
    %2618 = vmatpush.msra.mxu0 0.0
    %2619 = vmatpush.msra.mxu0 0.0
    %2620 = vmatpush.msra.mxu0 0.0
    %2621 = vmatpush.msra.mxu0 0.0
    %2622 = vmatpush.msra.mxu0 0.0
    %2623 = vmatpush.msra.mxu0 0.0
    %2624 = vmatpush.msra.mxu0 0.0
    %2625 = vmatpush.msra.mxu0 0.0
    %2626 = vmatpush.msra.mxu0 %v595
    %2627 = vmatpush.msra.mxu0 %v594
    %2628 = vmatpush.msra.mxu0 %v593
    %2629 = vmatpush.msra.mxu0 %v592
    %2630 = vmatmul.f32.gmra.mxu0 %v2610
    %v2631 = vpop.f32.mrf.mxu0
    %v2632 = vadd.f32 %v2602, %v2631
    %2633 = vmatmul.f32.gmra.mxu0 %v2612
    %v2634 = vpop.f32.mrf.mxu0
    %v2635 = vadd.f32 %v2602, %v2634
    %2636 = vdwg.mxu0
    %2638 = vset.pattern.permute.xlu0 0
    %2639 = vperm.xlu0 %2638, %v2599
    %v2640 = vpop.permute.xlu0 %2639
    %2643 = vset.pattern.permute.xlu0 0
    %2644 = vperm.xlu0 %2643, %v2600
    %v2645 = vpop.permute.xlu0 %2644
    %v2647 = vmul.f32 %v2640, %v2632
    %v2648 = vmul.f32 %v2645, %v2635
    %v2649 = vsel %vm643, %v2647, 0.0
    %v2650 = vsel %vm643, %v2648, 0.0
    %v2651 = vadd.f32 %v2649, %v2650
    %v2652 = vrot.slane %v2651, 4
    %v2653 = vadd.f32 %v2651, %v2652
    %v2654 = vrot.slane %v2653, 2
    %v2655 = vadd.f32 %v2653, %v2654
    %v2656 = vrot.slane %v2655, 1
    %v2657 = vadd.f32 %v2655, %v2656
    %vm2658 = vcmp.gt.f32.partialorder %v2657, 0.0
    %v2659 = vmul.f32 %v2657, 1.442695
    %v2660 = vpow.pop %v2659
    %v2661 = vsub.f32 %v2660, 1.0
    %v2662 = vsel %vm2658, %v2657, %v2661
    %v2664 = vsel %vm643, %v2662, 0
    %2666 = vmatpush.msra.mxu0 0.0
    %2667 = vmatpush.msra.mxu0 0.0
    %2668 = vmatpush.msra.mxu0 0.0
    %2669 = vmatpush.msra.mxu0 0.0
    %2670 = vmatpush.msra.mxu0 0.0
    %2671 = vmatpush.msra.mxu0 0.0
    %2672 = vmatpush.msra.mxu0 0.0
    %2673 = vmatpush.msra.mxu0 0.0
    %2674 = vmatpush.msra.mxu0 0.0
    %2675 = vmatpush.msra.mxu0 0.0
    %2676 = vmatpush.msra.mxu0 0.0
    %2677 = vmatpush.msra.mxu0 0.0
    %2678 = vmatpush.msra.mxu0 %v600
    %2679 = vmatpush.msra.mxu0 %v599
    %2680 = vmatpush.msra.mxu0 %v598
    %2681 = vmatpush.msra.mxu0 %v597
    %2682 = vmatmul.f32.gmra.mxu0 %v2664
    %v2683 = vpop.f32.mrf.mxu0
    %v2684 = vadd.f32 %v605, %v2683
    %2685 = vdwg.mxu0
    %2687 = vrot.lane.b32.xlu0 %v2526, 96
    %v2688 = vpop.permute.xlu0 %2687
    %v2689 = vsel %vm643, %v2688, 0
    %2691 = vmatpush.msra.mxu0 0.0
    %2692 = vmatpush.msra.mxu0 0.0
    %2693 = vmatpush.msra.mxu0 0.0
    %2694 = vmatpush.msra.mxu0 0.0
    %2695 = vmatpush.msra.mxu0 0.0
    %2696 = vmatpush.msra.mxu0 0.0
    %2697 = vmatpush.msra.mxu0 0.0
    %2698 = vmatpush.msra.mxu0 0.0
    %2699 = vmatpush.msra.mxu0 0.0
    %2700 = vmatpush.msra.mxu0 0.0
    %2701 = vmatpush.msra.mxu0 0.0
    %2702 = vmatpush.msra.mxu0 0.0
    %2703 = vmatpush.msra.mxu0 %v604
    %2704 = vmatpush.msra.mxu0 %v603
    %2705 = vmatpush.msra.mxu0 %v602
    %2706 = vmatpush.msra.mxu0 %v601
    %2707 = vmatmul.f32.gmra.mxu0 %v2689
    %v2708 = vpop.f32.mrf.mxu0
    %v2709 = vadd.f32 %v606, %v2708
    %2710 = vdwg.mxu0
    %v2711 = vadd.f32 %v2684, %v2709
    %v2712 = vxor.u32 %v2711, 2147483648
    %v2713 = vmul.f32 %v2712, 1.442695
    %v2714 = vpow.pop %v2713
    %v2715 = vadd.f32 %v2714, 1.0
    %v2716 = vrcp.pop %v2715
    %v2717 = vmul.f32 %v2715, %v2716
    %v2718 = vsub.f32 1.0, %v2717
    %v2719 = vmul.f32 %v2716, %v2718
    %v2720 = vadd.f32 %v2716, %v2719
    %vm2721 = vweird.f32 %v2715
    %vm2722 = vweird.f32 %v2716
    %vm2723 = vmor %vm2721, %vm2722
    %v2724 = vsel %vm2723, %v2716, %v2720
    %v2725 = vand.u32 2147483647, %v2715
    %vm2726 = vcmp.eq.f32.partialorder %v2725, 8.507059e+37
    %v2727 = vand.u32 %v2715, 2147483648
    %v2728 = vor.u32 1.1754944e-38, %v2727
    %v2729 = vsel %vm2726, %v2728, %v2724
    %v2730 = vmul.f32 1.0, %v2729
    %2732 = vrot.lane.b32.xlu0 %v2709, 64
    %v2733 = vpop.permute.xlu0 %2732
    %v2735 = vmul.f32 %v2730, %v2733
    %2737 = vrot.lane.b32.xlu0 %v2735, 64
    %v2738 = vpop.permute.xlu0 %2737
    %v2740 = vadd.f32 %v2684, %v2738
    %v2741 = vtanh.pop %v2740
    %v2742 = vsub.f32 1.0, %v2730
    %2744 = vrot.lane.b32.xlu0 %v2741, 96
    %v2745 = vpop.permute.xlu0 %2744
    %v2747 = vmul.f32 %v2742, %v2745
    %v2748 = vmul.f32 %v2730, %v2526
    %v2749 = vadd.f32 %v2747, %v2748
    %v2750 = vmax.f32 %v2749, 0.0
    %v2751 = vmax.f32 %v2750, 0.0
    %v2752 = vmul.f32 %v2751, %v2531
    %2754 = vrot.lane.b32.xlu0 %v2752, 96
    %v2755 = vpop.permute.xlu0 %2754
    %v2757 = vsel %vm2538, %v2755, 0.0
    %2758 = vadd.xlane.f32.xlu0 %v2757
    %v2759 = vpop.xlane.xlu0 %2758
    %v2760 = vadd.f32 %v2759, %v591
    %v2761 = vperm.slane %v2760, 0
    %v2762 = vadd.f32 %v2560, %v2761
    %v2763 = vadd.f32 %v2563, %v2761
    %vm2764 = vcmp.ge.f32.partialorder %v2762, 0.0
    %vm2765 = vcmp.ge.f32.partialorder %v2763, 0.0
    %v2766 = vmul.f32 %v2762, 0.01
    %v2767 = vmul.f32 %v2763, 0.01
    %v2768 = vsel %vm2764, %v2762, %v2766
    %v2769 = vsel %vm2765, %v2763, %v2767
    %v2770 = vsel %vm2573, %v2768, -inf
    %v2771 = vsel %vm2573, %v2769, -inf
    %v2772 = vmax.f32 %v2770, %v2771
    %v2773 = vrot.slane %v2772, 4
    %v2774 = vmax.f32 %v2772, %v2773
    %v2775 = vrot.slane %v2774, 2
    %v2776 = vmax.f32 %v2774, %v2775
    %v2777 = vrot.slane %v2776, 1
    %v2778 = vmax.f32 %v2776, %v2777
    %v2779 = vsub.f32 %v2768, %v2778
    %v2780 = vsub.f32 %v2769, %v2778
    %v2781 = vmul.f32 %v2779, 1.442695
    %v2782 = vpow.pop %v2781
    %v2783 = vmul.f32 %v2780, 1.442695
    %v2784 = vpow.pop %v2783
    %v2785 = vsel %vm2573, %v2782, 0.0
    %v2786 = vsel %vm2573, %v2784, 0.0
    %v2787 = vadd.f32 %v2785, %v2786
    %v2788 = vrot.slane %v2787, 4
    %v2789 = vadd.f32 %v2787, %v2788
    %v2790 = vrot.slane %v2789, 2
    %v2791 = vadd.f32 %v2789, %v2790
    %v2792 = vrot.slane %v2791, 1
    %v2793 = vadd.f32 %v2791, %v2792
    %v2794 = vrcp.pop %v2793
    %v2795 = vmul.f32 %v2782, %v2794
    %v2796 = vmul.f32 %v2784, %v2794
    %2798 = vset.pattern.permute.xlu0 0
    %2799 = vperm.xlu0 %2798, %v2795
    %v2800 = vpop.permute.xlu0 %2799
    %2803 = vset.pattern.permute.xlu0 0
    %2804 = vperm.xlu0 %2803, %v2796
    %v2805 = vpop.permute.xlu0 %2804
    %v2807 = vmul.f32 %v2800, %v2632
    %v2808 = vmul.f32 %v2805, %v2635
    %v2809 = vsel %vm643, %v2807, 0.0
    %v2810 = vsel %vm643, %v2808, 0.0
    %v2811 = vadd.f32 %v2809, %v2810
    %v2812 = vrot.slane %v2811, 4
    %v2813 = vadd.f32 %v2811, %v2812
    %v2814 = vrot.slane %v2813, 2
    %v2815 = vadd.f32 %v2813, %v2814
    %v2816 = vrot.slane %v2815, 1
    %v2817 = vadd.f32 %v2815, %v2816
    %vm2818 = vcmp.gt.f32.partialorder %v2817, 0.0
    %v2819 = vmul.f32 %v2817, 1.442695
    %v2820 = vpow.pop %v2819
    %v2821 = vsub.f32 %v2820, 1.0
    %v2822 = vsel %vm2818, %v2817, %v2821
    %v2824 = vsel %vm643, %v2822, 0
    %2826 = vmatpush.msra.mxu0 0.0
    %2827 = vmatpush.msra.mxu0 0.0
    %2828 = vmatpush.msra.mxu0 0.0
    %2829 = vmatpush.msra.mxu0 0.0
    %2830 = vmatpush.msra.mxu0 0.0
    %2831 = vmatpush.msra.mxu0 0.0
    %2832 = vmatpush.msra.mxu0 0.0
    %2833 = vmatpush.msra.mxu0 0.0
    %2834 = vmatpush.msra.mxu0 0.0
    %2835 = vmatpush.msra.mxu0 0.0
    %2836 = vmatpush.msra.mxu0 0.0
    %2837 = vmatpush.msra.mxu0 0.0
    %2838 = vmatpush.msra.mxu0 %v600
    %2839 = vmatpush.msra.mxu0 %v599
    %2840 = vmatpush.msra.mxu0 %v598
    %2841 = vmatpush.msra.mxu0 %v597
    %2842 = vmatmul.f32.gmra.mxu0 %v2824
    %v2843 = vpop.f32.mrf.mxu0
    %v2844 = vadd.f32 %v605, %v2843
    %2845 = vdwg.mxu0
    %2847 = vrot.lane.b32.xlu0 %v2750, 96
    %v2848 = vpop.permute.xlu0 %2847
    %v2849 = vsel %vm643, %v2848, 0
    %2851 = vmatpush.msra.mxu0 0.0
    %2852 = vmatpush.msra.mxu0 0.0
    %2853 = vmatpush.msra.mxu0 0.0
    %2854 = vmatpush.msra.mxu0 0.0
    %2855 = vmatpush.msra.mxu0 0.0
    %2856 = vmatpush.msra.mxu0 0.0
    %2857 = vmatpush.msra.mxu0 0.0
    %2858 = vmatpush.msra.mxu0 0.0
    %2859 = vmatpush.msra.mxu0 0.0
    %2860 = vmatpush.msra.mxu0 0.0
    %2861 = vmatpush.msra.mxu0 0.0
    %2862 = vmatpush.msra.mxu0 0.0
    %2863 = vmatpush.msra.mxu0 %v604
    %2864 = vmatpush.msra.mxu0 %v603
    %2865 = vmatpush.msra.mxu0 %v602
    %2866 = vmatpush.msra.mxu0 %v601
    %2867 = vmatmul.f32.gmra.mxu0 %v2849
    %v2868 = vpop.f32.mrf.mxu0
    %v2869 = vadd.f32 %v606, %v2868
    %2870 = vdwg.mxu0
    %v2871 = vadd.f32 %v2844, %v2869
    %v2872 = vxor.u32 %v2871, 2147483648
    %v2873 = vmul.f32 %v2872, 1.442695
    %v2874 = vpow.pop %v2873
    %v2875 = vadd.f32 %v2874, 1.0
    %v2876 = vrcp.pop %v2875
    %v2877 = vmul.f32 %v2875, %v2876
    %v2878 = vsub.f32 1.0, %v2877
    %v2879 = vmul.f32 %v2876, %v2878
    %v2880 = vadd.f32 %v2876, %v2879
    %vm2881 = vweird.f32 %v2875
    %vm2882 = vweird.f32 %v2876
    %vm2883 = vmor %vm2881, %vm2882
    %v2884 = vsel %vm2883, %v2876, %v2880
    %v2885 = vand.u32 2147483647, %v2875
    %vm2886 = vcmp.eq.f32.partialorder %v2885, 8.507059e+37
    %v2887 = vand.u32 %v2875, 2147483648
    %v2888 = vor.u32 1.1754944e-38, %v2887
    %v2889 = vsel %vm2886, %v2888, %v2884
    %v2890 = vmul.f32 1.0, %v2889
    %2892 = vrot.lane.b32.xlu0 %v2869, 64
    %v2893 = vpop.permute.xlu0 %2892
    %v2895 = vmul.f32 %v2890, %v2893
    %2897 = vrot.lane.b32.xlu0 %v2895, 64
    %v2898 = vpop.permute.xlu0 %2897
    %v2900 = vadd.f32 %v2844, %v2898
    %v2901 = vtanh.pop %v2900
    %v2902 = vsub.f32 1.0, %v2890
    %2904 = vrot.lane.b32.xlu0 %v2901, 96
    %v2905 = vpop.permute.xlu0 %2904
    %v2907 = vmul.f32 %v2902, %v2905
    %v2908 = vmul.f32 %v2890, %v2750
    %v2909 = vadd.f32 %v2907, %v2908
    %v2910 = vmax.f32 %v2909, 0.0
    %2912 = vrot.lane.b32.xlu0 %v2910, 96
    %v2913 = vpop.permute.xlu0 %2912
    %2915 = vst.msk [vmem:[#allocation40] sm:$0x1] %vm2538, %v2913
    %2916 = vst.msk [vmem:[%s77] sm:$0xff] %vm2573, %v2795
    %2917 = vst.msk [vmem:[%s77 + $0x8] sm:$0xff] %vm2573, %v2796
    // Predicated region
    $region238: #{_lambda_.1} parent=1 // pred_check
      _
    $region239: #{_lambda_.1} parent=1 // pred_check_branch
      %2919 = sbr.rel (0) target = $region241
    $region240: #{_lambda_.1} parent=1 // pred_region
      %2921 = vsyncadd [#allocation7], 0
      %s2923 = sshll.u32 [#allocation40], 4
      %s2924 = int_to_ptr.vmem [resolvable:$true] %s2923
      %s2925 = sshll.u32 %s75, 4
      %s2926 = int_to_ptr.hbm [resolvable:$true] %s2925
      %2928 = dma.vmem_to_hbm [thread:$0]  %s2924, 16, %s2926, [#allocation7]
    $region241: #{_lambda_.1} parent=1 // pred_fallthru
      _
    // Predicated region
    $region242: #{_lambda_.1} parent=1 // pred_check
      _
    $region243: #{_lambda_.1} parent=1 // pred_check_branch
      %2930 = sbr.rel (0) target = $region245
    $region244: #{_lambda_.1} parent=1 // pred_region
      _
    $region245: #{_lambda_.1} parent=1 // pred_fallthru
      _
    // Predicated region
    $region246: #{_lambda_.1} parent=1 // pred_check
      _
    $region247: #{_lambda_.1} parent=1 // pred_check_branch
      %2932 = sbr.rel (0) target = $region249
    $region248: #{_lambda_.1} parent=1 // pred_region
      %2934 = dma.done [#allocation7], 16
    $region249: #{_lambda_.1} parent=1 // pred_fallthru
      _
    // Predicated region
    $region250: #{_lambda_.1} parent=1 // pred_check
      _
    $region251: #{_lambda_.1} parent=1 // pred_check_branch
      %2936 = sbr.rel (0) target = $region253
    $region252: #{_lambda_.1} parent=1 // pred_region
      _
    $region253: #{_lambda_.1} parent=1 // pred_fallthru
      _
    %2937 = vsyncpa [#allocation6], 1
    %2938 = vsyncpa [#allocation9], 1
    %2939 = vsyncpa [#allocation12], 1
    %2940 = vsyncpa [#allocation15], 1
    %2941 = vsyncpa [#allocation18], 1
    %2942 = vsyncpa [#allocation21], 1
    %2943 = vsyncpa [#allocation24], 1
    %2944 = vsyncpa [#allocation27], 1
    %2945 = vsyncpa [#allocation30], 1
    %2946 = vsyncpa [#allocation33], 1
    %2947 = vsyncpa [#allocation36], 1
    %2948 = vsyncpa [#allocation39], 1
    %2949 = vsyncpa [#allocation7], 1

</llo_original>
